<compile_context>
chip_gen: v6e
topology: v6e:2x2x1
jax: 0.10.0
libtpu: 0.0.40
codegen_flags: <defaults>
</compile_context>

<pallas_src>
import functools

import jax
import jax.numpy as jnp
from jax.experimental import pallas as pl
from jax.experimental.pallas import tpu as pltpu


def _layernorm(x, w, b, eps=1e-5):
    mu = jnp.mean(x, axis=-1, keepdims=True)
    var = jnp.mean((x - mu) ** 2, axis=-1, keepdims=True)
    return (x - mu) * jax.lax.rsqrt(var + eps) * w + b


# ------------------------------ Pallas kernel --------------------------------

def _encoder_kernel(xp_ref, cw_ref, add_ref,
                    wq_ref, bq_ref, wk_ref, bk_ref, wv_ref, bv_ref,
                    wo_ref, bo_ref, ln1w_ref, ln1b_ref,
                    w1_ref, b1_ref, w2_ref, b2_ref, ln2w_ref, ln2b_ref,
                    fcw_ref, fcb_ref,
                    out_ref,
                    y_ref,
                    *, num_heads, kv_block, mm_dtype):
    layer = pl.program_id(1)
    num_layers = pl.num_programs(1)
    L, E = y_ref.shape
    dh = E // num_heads
    n_kv = L // kv_block

    # ---- embedding: Conv1d(k=3, pad=1) + conv bias + positional encoding ----
    @pl.when(layer == 0)
    def _embed():
        xp = xp_ref[0]                               # (L+2, C) padded input
        y0 = add_ref[...]                            # (L, E) = pos-enc + conv bias
        for k in range(3):                           # 3 shifted taps, no HBM concat
            y0 = y0 + jnp.dot(xp[k:k + L, :].astype(mm_dtype), cw_ref[k],
                              preferred_element_type=jnp.float32)
        y_ref[...] = y0

    y = y_ref[...]                                   # (L, E) float32, VMEM resident
    ym = y.astype(mm_dtype)

    # ---- multi-head self attention (flash-style online softmax over kv) ----
    attn = jnp.zeros((L, E), jnp.float32)
    for h in range(num_heads):                       # static unroll; weight-side head
        # 1/sqrt(dh) is folded into wq / bq by the wrapper.
        q_h = (jnp.dot(ym, wq_ref[0, h], preferred_element_type=jnp.float32)
               + bq_ref[0, h]).astype(mm_dtype)      # (L, dh)
        k_h = jnp.dot(ym, wk_ref[0, h], preferred_element_type=jnp.float32) + bk_ref[0, h]
        v_h = jnp.dot(ym, wv_ref[0, h], preferred_element_type=jnp.float32) + bv_ref[0, h]

        m_i = jnp.full((L, 1), -jnp.inf, jnp.float32)
        l_i = jnp.zeros((L, 1), jnp.float32)
        acc = jnp.zeros((L, dh), jnp.float32)
        for t in range(n_kv):                        # online softmax: no (L, L) scores
            k_t = k_h[t * kv_block:(t + 1) * kv_block, :].astype(mm_dtype)
            v_t = v_h[t * kv_block:(t + 1) * kv_block, :].astype(mm_dtype)
            s = jnp.einsum('qd,kd->qk', q_h, k_t,
                           preferred_element_type=jnp.float32)
            m_new = jnp.maximum(m_i, jnp.max(s, axis=-1, keepdims=True))
            alpha = jnp.exp(m_i - m_new)
            p = jnp.exp(s - m_new)
            l_i = alpha * l_i + jnp.sum(p, axis=-1, keepdims=True)
            acc = alpha * acc + jnp.dot(p.astype(mm_dtype), v_t,
                                        preferred_element_type=jnp.float32)
            m_i = m_new
        o_h = (acc / l_i).astype(mm_dtype)           # exact softmax normalization
        # accumulate through the per-head out-projection slab: no concat.
        attn = attn + jnp.dot(o_h, wo_ref[0, h], preferred_element_type=jnp.float32)
    attn = attn + bo_ref[0]
    y = _layernorm(y + attn, ln1w_ref[0], ln1b_ref[0])

    # ---- feed forward (ReLU), f32 elementwise, mm_dtype matmul operands ----
    h1 = jnp.maximum(
        jnp.dot(y.astype(mm_dtype), w1_ref[0], preferred_element_type=jnp.float32)
        + b1_ref[0], 0.0)
    ff = jnp.dot(h1.astype(mm_dtype), w2_ref[0],
                 preferred_element_type=jnp.float32) + b2_ref[0]
    y = _layernorm(y + ff, ln2w_ref[0], ln2b_ref[0])
    y_ref[...] = y

    # ---- head: AdaptiveAvgPool1d(1) over L + Linear (lane-padded to 128) ----
    @pl.when(layer == num_layers - 1)
    def _head():
        pooled = jnp.mean(y, axis=0, keepdims=True)                       # (1, E)
        logits = (jnp.dot(pooled.astype(mm_dtype), fcw_ref[...],
                          preferred_element_type=jnp.float32) + fcb_ref[...])
        out_ref[0] = logits.astype(out_ref.dtype)


# -------------------------------- wrappers ------------------------------------

def positional_encoding(L, E):
    position = jnp.arange(L, dtype=jnp.float32)[:, None]
    div_term = jnp.exp(jnp.arange(0, E, 2, dtype=jnp.float32) * (-jnp.log(10000.0) / E))
    pe = jnp.zeros((L, E), jnp.float32)
    pe = pe.at[:, 0::2].set(jnp.sin(position * div_term))
    pe = pe.at[:, 1::2].set(jnp.cos(position * div_term))
    return pe


def init_params(key, C, E, num_layers, num_classes):
    """PyTorch-layout parameters of ECG_Transformer_Encoder."""
    def nrm(k, shape, scale=0.05):
        return jax.random.normal(k, shape, jnp.float32) * scale

    keys = iter(jax.random.split(key, 4 + 8 * num_layers))
    params = dict(conv_w=nrm(next(keys), (E, C, 3)), conv_b=nrm(next(keys), (E,)),
                  layers=[])
    for _ in range(num_layers):
        params['layers'].append(dict(
            in_proj_w=nrm(next(keys), (3 * E, E)), in_proj_b=nrm(next(keys), (3 * E,)),
            out_proj_w=nrm(next(keys), (E, E)), out_proj_b=nrm(next(keys), (E,)),
            ln1_w=jnp.ones((E,), jnp.float32), ln1_b=jnp.zeros((E,), jnp.float32),
            lin1_w=nrm(next(keys), (4 * E, E)), lin1_b=nrm(next(keys), (4 * E,)),
            lin2_w=nrm(next(keys), (E, 4 * E)), lin2_b=nrm(next(keys), (E,)),
            ln2_w=jnp.ones((E,), jnp.float32), ln2_b=jnp.zeros((E,), jnp.float32),
        ))
    params['fc_w'] = nrm(next(keys), (num_classes, E))
    params['fc_b'] = nrm(next(keys), (num_classes,))
    return params


def _prepare_kernel_operands(params, pe, L, num_heads, mm_dtype, ncp):
    """Layout plumbing done once in the wrapper (free): per-head weight split,
    1/sqrt(dh) folding, transposes, lane-padding of the classifier."""
    E = params['conv_w'].shape[0]
    dh = E // num_heads
    scale = 1.0 / float(dh) ** 0.5
    nc = params['fc_w'].shape[0]

    cw = jnp.transpose(params['conv_w'], (2, 1, 0)).astype(mm_dtype)       # (3, C, E)
    add = (pe[:L] + params['conv_b'][None, :]).astype(jnp.float32)         # (L, E)

    per_layer = []
    for lp in params['layers']:
        W, bqkv = lp['in_proj_w'], lp['in_proj_b']
        wq = (W[:E].reshape(num_heads, dh, E).transpose(0, 2, 1) * scale)  # (H, E, dh)
        wk = W[E:2 * E].reshape(num_heads, dh, E).transpose(0, 2, 1)
        wv = W[2 * E:].reshape(num_heads, dh, E).transpose(0, 2, 1)
        per_layer.append(dict(
            wq=wq.astype(mm_dtype), wk=wk.astype(mm_dtype), wv=wv.astype(mm_dtype),
            bq=(bqkv[:E].reshape(num_heads, 1, dh) * scale),
            bk=bqkv[E:2 * E].reshape(num_heads, 1, dh),
            bv=bqkv[2 * E:].reshape(num_heads, 1, dh),
            wo=lp['out_proj_w'].T.reshape(num_heads, dh, E).astype(mm_dtype),
            bo=lp['out_proj_b'][None, :],
            ln1w=lp['ln1_w'][None, :], ln1b=lp['ln1_b'][None, :],
            w1=lp['lin1_w'].T.astype(mm_dtype), b1=lp['lin1_b'][None, :],
            w2=lp['lin2_w'].T.astype(mm_dtype), b2=lp['lin2_b'][None, :],
            ln2w=lp['ln2_w'][None, :], ln2b=lp['ln2_b'][None, :],
        ))
    stacked = {k: jnp.stack([lp[k] for lp in per_layer]) for k in per_layer[0]}

    fcw = jnp.pad(params['fc_w'].T, ((0, 0), (0, ncp - nc))).astype(mm_dtype)
    fcb = jnp.pad(params['fc_b'], (0, ncp - nc))[None, :].astype(jnp.float32)
    return cw, add, stacked, fcw, fcb


def ecg_transformer_forward(x, params, pe, *, num_heads,
                            mm_dtype=jnp.float32, kv_block=None):
    B, C, L = x.shape
    E = params['conv_w'].shape[0]
    NC = params['fc_w'].shape[0]
    NCP = max(128, ((NC + 127) // 128) * 128)        # lane-dense padded class dim
    NL = len(params['layers'])
    H = num_heads
    dh = E // H
    F = 4 * E

    if kv_block is None:
        kv_block = L
        for cand in (512, 256, 128, 64, 32, 16, 8):
            if L % cand == 0:
                kv_block = cand
                break
    assert L % kv_block == 0

    # padded input passed once (no 3x tap concat in HBM).
    xp = jnp.transpose(jnp.pad(x, ((0, 0), (0, 0), (1, 1))), (0, 2, 1))    # (B, L+2, C)
    cw, add, lw, fcw, fcb = _prepare_kernel_operands(params, pe, L, H, mm_dtype, NCP)

    kernel = functools.partial(_encoder_kernel, num_heads=H,
                               kv_block=kv_block, mm_dtype=mm_dtype)

    lw4 = lambda b, l: (l, 0, 0, 0)     # streamed per-layer rank-4 weights
    lw3 = lambda b, l: (l, 0, 0)        # streamed per-layer rank-3 weights
    c2 = lambda b, l: (0, 0)            # constant operands
    c3 = lambda b, l: (0, 0, 0)

    out = pl.pallas_call(
        kernel,
        out_shape=jax.ShapeDtypeStruct((B, 1, NCP), jnp.float32),
        grid_spec=pltpu.PrefetchScalarGridSpec(
            num_scalar_prefetch=0,
            grid=(B, NL),                                   # layers innermost
            in_specs=[
                pl.BlockSpec((1, L + 2, C), lambda b, l: (b, 0, 0)),   # padded input
                pl.BlockSpec((3, C, E), c3),                           # conv taps
                pl.BlockSpec((L, E), c2),                              # pos-enc + bias
                pl.BlockSpec((1, H, E, dh), lw4),                      # wq (scaled)
                pl.BlockSpec((1, H, 1, dh), lw4),                      # bq (scaled)
                pl.BlockSpec((1, H, E, dh), lw4),                      # wk
                pl.BlockSpec((1, H, 1, dh), lw4),                      # bk
                pl.BlockSpec((1, H, E, dh), lw4),                      # wv
                pl.BlockSpec((1, H, 1, dh), lw4),                      # bv
                pl.BlockSpec((1, H, dh, E), lw4),                      # wo per head
                pl.BlockSpec((1, 1, E), lw3),                          # bo
                pl.BlockSpec((1, 1, E), lw3),                          # ln1 w
                pl.BlockSpec((1, 1, E), lw3),                          # ln1 b
                pl.BlockSpec((1, E, F), lw3),                          # w1
                pl.BlockSpec((1, 1, F), lw3),                          # b1
                pl.BlockSpec((1, F, E), lw3),                          # w2
                pl.BlockSpec((1, 1, E), lw3),                          # b2
                pl.BlockSpec((1, 1, E), lw3),                          # ln2 w
                pl.BlockSpec((1, 1, E), lw3),                          # ln2 b
                pl.BlockSpec((E, NCP), c2),                            # fc weight
                pl.BlockSpec((1, NCP), c2),                            # fc bias
            ],
            out_specs=pl.BlockSpec((1, 1, NCP), lambda b, l: (b, 0, 0)),
            scratch_shapes=[pltpu.VMEM((L, E), jnp.float32)],          # resident act.
        ),
        compiler_params=pltpu.CompilerParams(
            dimension_semantics=("parallel", "arbitrary"),
            vmem_limit_bytes=64 * 1024 * 1024),
    )(xp, cw, add,
      lw['wq'], lw['bq'], lw['wk'], lw['bk'], lw['wv'], lw['bv'],
      lw['wo'], lw['bo'], lw['ln1w'], lw['ln1b'],
      lw['w1'], lw['b1'], lw['w2'], lw['b2'], lw['ln2w'], lw['ln2b'],
      fcw, fcb)
    return out.reshape(B, NCP)[:, :NC]


# ----------------------------- pure-JAX reference -----------------------------

def _ln_ref(x, w, b, eps=1e-5):
    mu = jnp.mean(x, axis=-1, keepdims=True)
    var = jnp.mean((x - mu) ** 2, axis=-1, keepdims=True)
    return (x - mu) * jax.lax.rsqrt(var + eps) * w + b


def reference_forward(x, params, pe, num_heads):
    P = jax.lax.Precision.HIGHEST
    B, C, L = x.shape
    E = params['conv_w'].shape[0]
    xp = jnp.pad(x, ((0, 0), (0, 0), (1, 1)))
    y = jnp.zeros((B, L, E), jnp.float32)
    for k in range(3):
        y = y + jnp.einsum('bcl,ec->ble', xp[:, :, k:k + L],
                           params['conv_w'][:, :, k], precision=P)
    y = y + params['conv_b'][None, None, :] + pe[None, :L, :]
    dh = E // num_heads
    for lp in params['layers']:
        qkv = jnp.einsum('ble,fe->blf', y, lp['in_proj_w'], precision=P) + lp['in_proj_b']
        q, k_, v = qkv[..., :E], qkv[..., E:2 * E], qkv[..., 2 * E:]
        heads = []
        for h in range(num_heads):
            sl = slice(h * dh, (h + 1) * dh)
            s = jnp.einsum('bqd,bkd->bqk', q[..., sl], k_[..., sl],
                           precision=P) / (dh ** 0.5)
            p = jax.nn.softmax(s, axis=-1)
            heads.append(jnp.einsum('bqk,bkd->bqd', p, v[..., sl], precision=P))
        attn = jnp.concatenate(heads, axis=-1)
        attn = jnp.einsum('ble,fe->blf', attn, lp['out_proj_w'], precision=P) + lp['out_proj_b']
        y = _ln_ref(y + attn, lp['ln1_w'], lp['ln1_b'])
        h1 = jax.nn.relu(jnp.einsum('ble,fe->blf', y, lp['lin1_w'], precision=P) + lp['lin1_b'])
        ff = jnp.einsum('blf,ef->ble', h1, lp['lin2_w'], precision=P) + lp['lin2_b']
        y = _ln_ref(y + ff, lp['ln2_w'], lp['ln2_b'])
    pooled = jnp.mean(y, axis=1)
    return jnp.einsum('be,ce->bc', pooled, params['fc_w'], precision=P) + params['fc_b']


# ----------------------------------- main --------------------------------------

if __name__ == "__main__":
    B, C, L = 2, 4, 16                   # batch, input channels, sequence length
    E, H, LAYERS, CLASSES = 32, 4, 2, 5  # embed_dim, heads, encoder layers, classes

    key = jax.random.PRNGKey(0)
    kx, kp = jax.random.split(key)
    x = jax.random.normal(kx, (B, C, L), jnp.float32)
    params = init_params(kp, C, E, LAYERS, CLASSES)
    pe = positional_encoding(L, E)

    ref = reference_forward(x, params, pe, H)

    # f32 matmul operands (exact path); kv_block=8 -> 2 kv tiles exercises the
    # online-softmax (flash) path.
    fwd = jax.jit(functools.partial(ecg_transformer_forward, num_heads=H,
                                    mm_dtype=jnp.float32, kv_block=8))
    out = jax.block_until_ready(fwd(x, params, pe))
    assert out.shape == (B, CLASSES)
    err = float(jnp.max(jnp.abs(out - ref)))
    assert jnp.allclose(out, ref, atol=2e-3, rtol=2e-3), f"f32 max_err={err}"

    # bf16 matmul-operand path (v6e/v7x MXU feed); LayerNorm / softmax /
    # residual math stays f32, so only a loose check is expected to hold.
    fwd_bf16 = jax.jit(functools.partial(ecg_transformer_forward, num_heads=H,
                                         mm_dtype=jnp.bfloat16, kv_block=8))
    out_bf16 = jax.block_until_ready(fwd_bf16(x, params, pe))
    err_bf16 = float(jnp.max(jnp.abs(out_bf16 - ref)))
    assert jnp.allclose(out_bf16, ref, atol=1e-1, rtol=1e-1), f"bf16 max_err={err_bf16}"

    print("KERNEL_OK")
</pallas_src>

<mosaic_0001>
module attributes {stable_mosaic.version = 11 : i64} {
  func.func @_encoder_kernel(%arg0: i32, %arg1: i32, %arg2: memref<1x18x4xf32, #tpu.memory_space<vmem>>, %arg3: memref<3x4x32xf32, #tpu.memory_space<vmem>>, %arg4: memref<16x32xf32, #tpu.memory_space<vmem>>, %arg5: memref<1x4x32x8xf32, #tpu.memory_space<vmem>>, %arg6: memref<1x4x1x8xf32, #tpu.memory_space<vmem>>, %arg7: memref<1x4x32x8xf32, #tpu.memory_space<vmem>>, %arg8: memref<1x4x1x8xf32, #tpu.memory_space<vmem>>, %arg9: memref<1x4x32x8xf32, #tpu.memory_space<vmem>>, %arg10: memref<1x4x1x8xf32, #tpu.memory_space<vmem>>, %arg11: memref<1x4x8x32xf32, #tpu.memory_space<vmem>>, %arg12: memref<1x1x32xf32, #tpu.memory_space<vmem>>, %arg13: memref<1x1x32xf32, #tpu.memory_space<vmem>>, %arg14: memref<1x1x32xf32, #tpu.memory_space<vmem>>, %arg15: memref<1x32x128xf32, #tpu.memory_space<vmem>>, %arg16: memref<1x1x128xf32, #tpu.memory_space<vmem>>, %arg17: memref<1x128x32xf32, #tpu.memory_space<vmem>>, %arg18: memref<1x1x32xf32, #tpu.memory_space<vmem>>, %arg19: memref<1x1x32xf32, #tpu.memory_space<vmem>>, %arg20: memref<1x1x32xf32, #tpu.memory_space<vmem>>, %arg21: memref<32x128xf32, #tpu.memory_space<vmem>>, %arg22: memref<1x128xf32, #tpu.memory_space<vmem>>, %arg23: memref<1x1x128xf32, #tpu.memory_space<vmem>>, %arg24: memref<16x32xf32, #tpu.memory_space<vmem>>) attributes {dimension_semantics = [#tpu.dimension_semantics<parallel>, #tpu.dimension_semantics<arbitrary>], iteration_bounds = array<i64: 2, 2>, scalar_prefetch = 0 : i64, scratch_operands = 1 : i64, tpu.core_type = #tpu.core_type<tc>, window_params = [{transform_indices = @transform_0, window_bounds = array<i64: 1, 18, 4>}, {pipeline_mode = #tpu.pipeline_mode<synchronous>, transform_indices = @transform_1, window_bounds = array<i64: 3, 4, 32>}, {pipeline_mode = #tpu.pipeline_mode<synchronous>, transform_indices = @transform_2, window_bounds = array<i64: 16, 32>}, {transform_indices = @transform_3, window_bounds = array<i64: 1, 4, 32, 8>}, {transform_indices = @transform_4, window_bounds = array<i64: 1, 4, 1, 8>}, {transform_indices = @transform_5, window_bounds = array<i64: 1, 4, 32, 8>}, {transform_indices = @transform_6, window_bounds = array<i64: 1, 4, 1, 8>}, {transform_indices = @transform_7, window_bounds = array<i64: 1, 4, 32, 8>}, {transform_indices = @transform_8, window_bounds = array<i64: 1, 4, 1, 8>}, {transform_indices = @transform_9, window_bounds = array<i64: 1, 4, 8, 32>}, {transform_indices = @transform_10, window_bounds = array<i64: 1, 1, 32>}, {transform_indices = @transform_11, window_bounds = array<i64: 1, 1, 32>}, {transform_indices = @transform_12, window_bounds = array<i64: 1, 1, 32>}, {transform_indices = @transform_13, window_bounds = array<i64: 1, 32, 128>}, {transform_indices = @transform_14, window_bounds = array<i64: 1, 1, 128>}, {transform_indices = @transform_15, window_bounds = array<i64: 1, 128, 32>}, {transform_indices = @transform_16, window_bounds = array<i64: 1, 1, 32>}, {transform_indices = @transform_17, window_bounds = array<i64: 1, 1, 32>}, {transform_indices = @transform_18, window_bounds = array<i64: 1, 1, 32>}, {pipeline_mode = #tpu.pipeline_mode<synchronous>, transform_indices = @transform_19, window_bounds = array<i64: 32, 128>}, {pipeline_mode = #tpu.pipeline_mode<synchronous>, transform_indices = @transform_20, window_bounds = array<i64: 1, 128>}, {transform_indices = @transform_21, window_bounds = array<i64: 1, 1, 128>}]} {
    %c0_i32 = arith.constant 0 : i32
    %0 = arith.cmpi eq, %arg1, %c0_i32 : i32
    %1 = arith.extui %0 : i1 to i32
    %c0_i32_0 = arith.constant 0 : i32
    %2 = arith.cmpi ne, %1, %c0_i32_0 : i32
    scf.if %2 {
      %c0_214 = arith.constant 0 : index
      %c0_215 = arith.constant 0 : index
      %c0_216 = arith.constant 0 : index
      %355 = vector.load %arg2[%c0_214, %c0_215, %c0_216] : memref<1x18x4xf32, #tpu.memory_space<vmem>>, vector<1x18x4xf32>
      %356 = vector.shape_cast %355 : vector<1x18x4xf32> to vector<18x4xf32>
      %c0_217 = arith.constant 0 : index
      %c0_218 = arith.constant 0 : index
      %357 = vector.load %arg4[%c0_217, %c0_218] : memref<16x32xf32, #tpu.memory_space<vmem>>, vector<16x32xf32>
      %358 = vector.extract_strided_slice %356 {offsets = [0, 0], sizes = [16, 4], strides = [1, 1]} : vector<18x4xf32> to vector<16x4xf32>
      %c0_219 = arith.constant 0 : index
      %c0_220 = arith.constant 0 : index
      %c0_221 = arith.constant 0 : index
      %359 = vector.load %arg3[%c0_219, %c0_220, %c0_221] : memref<3x4x32xf32, #tpu.memory_space<vmem>>, vector<1x4x32xf32>
      %360 = vector.shape_cast %359 : vector<1x4x32xf32> to vector<4x32xf32>
      %cst_222 = arith.constant dense<0.000000e+00> : vector<16x32xf32>
      %361 = tpu.matmul %358, %360, %cst_222 {dimension_numbers = #tpu.dot_dimension_numbers<[1], [0], [0], [1], [0, 0, 1, 1], [], []>} : vector<16x4xf32>, vector<4x32xf32>, vector<16x32xf32> -> vector<16x32xf32>
      %362 = arith.addf %357, %361 : vector<16x32xf32>
      %363 = vector.extract_strided_slice %356 {offsets = [1, 0], sizes = [16, 4], strides = [1, 1]} : vector<18x4xf32> to vector<16x4xf32>
      %c1_223 = arith.constant 1 : index
      %c0_224 = arith.constant 0 : index
      %c0_225 = arith.constant 0 : index
      %364 = vector.load %arg3[%c1_223, %c0_224, %c0_225] : memref<3x4x32xf32, #tpu.memory_space<vmem>>, vector<1x4x32xf32>
      %365 = vector.shape_cast %364 : vector<1x4x32xf32> to vector<4x32xf32>
      %cst_226 = arith.constant dense<0.000000e+00> : vector<16x32xf32>
      %366 = tpu.matmul %363, %365, %cst_226 {dimension_numbers = #tpu.dot_dimension_numbers<[1], [0], [0], [1], [0, 0, 1, 1], [], []>} : vector<16x4xf32>, vector<4x32xf32>, vector<16x32xf32> -> vector<16x32xf32>
      %367 = arith.addf %362, %366 : vector<16x32xf32>
      %368 = vector.extract_strided_slice %356 {offsets = [2, 0], sizes = [16, 4], strides = [1, 1]} : vector<18x4xf32> to vector<16x4xf32>
      %c2_227 = arith.constant 2 : index
      %c0_228 = arith.constant 0 : index
      %c0_229 = arith.constant 0 : index
      %369 = vector.load %arg3[%c2_227, %c0_228, %c0_229] : memref<3x4x32xf32, #tpu.memory_space<vmem>>, vector<1x4x32xf32>
      %370 = vector.shape_cast %369 : vector<1x4x32xf32> to vector<4x32xf32>
      %cst_230 = arith.constant dense<0.000000e+00> : vector<16x32xf32>
      %371 = tpu.matmul %368, %370, %cst_230 {dimension_numbers = #tpu.dot_dimension_numbers<[1], [0], [0], [1], [0, 0, 1, 1], [], []>} : vector<16x4xf32>, vector<4x32xf32>, vector<16x32xf32> -> vector<16x32xf32>
      %372 = arith.addf %367, %371 : vector<16x32xf32>
      %c0_231 = arith.constant 0 : index
      %c0_232 = arith.constant 0 : index
      %373 = vector.load %arg24[%c0_231, %c0_232] : memref<16x32xf32, #tpu.memory_space<vmem>>, vector<16x32xf32>
      tpu.vector_store %arg24[%c0_231, %c0_232], %372 {strides = array<i32>} : memref<16x32xf32, #tpu.memory_space<vmem>>, vector<16x32xf32>,
    } else {
    }
    %c0 = arith.constant 0 : index
    %c0_1 = arith.constant 0 : index
    %3 = vector.load %arg24[%c0, %c0_1] : memref<16x32xf32, #tpu.memory_space<vmem>>, vector<16x32xf32>
    %cst = arith.constant 0.000000e+00 : f32
    %4 = vector.broadcast %cst : f32 to vector<16x32xf32>
    %c0_2 = arith.constant 0 : index
    %c0_3 = arith.constant 0 : index
    %c0_4 = arith.constant 0 : index
    %c0_5 = arith.constant 0 : index
    %5 = vector.load %arg5[%c0_2, %c0_3, %c0_4, %c0_5] : memref<1x4x32x8xf32, #tpu.memory_space<vmem>>, vector<1x1x32x8xf32>
    %6 = vector.shape_cast %5 : vector<1x1x32x8xf32> to vector<32x8xf32>
    %cst_6 = arith.constant dense<0.000000e+00> : vector<16x8xf32>
    %7 = tpu.matmul %3, %6, %cst_6 {dimension_numbers = #tpu.dot_dimension_numbers<[1], [0], [0], [1], [0, 0, 1, 1], [], []>} : vector<16x32xf32>, vector<32x8xf32>, vector<16x8xf32> -> vector<16x8xf32>
    %c0_7 = arith.constant 0 : index
    %c0_8 = arith.constant 0 : index
    %c0_9 = arith.constant 0 : index
    %c0_10 = arith.constant 0 : index
    %8 = vector.load %arg6[%c0_7, %c0_8, %c0_9, %c0_10] : memref<1x4x1x8xf32, #tpu.memory_space<vmem>>, vector<1x1x1x8xf32>
    %9 = vector.shape_cast %8 : vector<1x1x1x8xf32> to vector<1x8xf32>
    %10 = vector.broadcast %9 : vector<1x8xf32> to vector<16x8xf32>
    %11 = arith.addf %7, %10 : vector<16x8xf32>
    %c0_11 = arith.constant 0 : index
    %c0_12 = arith.constant 0 : index
    %c0_13 = arith.constant 0 : index
    %c0_14 = arith.constant 0 : index
    %12 = vector.load %arg7[%c0_11, %c0_12, %c0_13, %c0_14] : memref<1x4x32x8xf32, #tpu.memory_space<vmem>>, vector<1x1x32x8xf32>
    %13 = vector.shape_cast %12 : vector<1x1x32x8xf32> to vector<32x8xf32>
    %cst_15 = arith.constant dense<0.000000e+00> : vector<16x8xf32>
    %14 = tpu.matmul %3, %13, %cst_15 {dimension_numbers = #tpu.dot_dimension_numbers<[1], [0], [0], [1], [0, 0, 1, 1], [], []>} : vector<16x32xf32>, vector<32x8xf32>, vector<16x8xf32> -> vector<16x8xf32>
    %c0_16 = arith.constant 0 : index
    %c0_17 = arith.constant 0 : index
    %c0_18 = arith.constant 0 : index
    %c0_19 = arith.constant 0 : index
    %15 = vector.load %arg8[%c0_16, %c0_17, %c0_18, %c0_19] : memref<1x4x1x8xf32, #tpu.memory_space<vmem>>, vector<1x1x1x8xf32>
    %16 = vector.shape_cast %15 : vector<1x1x1x8xf32> to vector<1x8xf32>
    %17 = vector.broadcast %16 : vector<1x8xf32> to vector<16x8xf32>
    %18 = arith.addf %14, %17 : vector<16x8xf32>
    %c0_20 = arith.constant 0 : index
    %c0_21 = arith.constant 0 : index
    %c0_22 = arith.constant 0 : index
    %c0_23 = arith.constant 0 : index
    %19 = vector.load %arg9[%c0_20, %c0_21, %c0_22, %c0_23] : memref<1x4x32x8xf32, #tpu.memory_space<vmem>>, vector<1x1x32x8xf32>
    %20 = vector.shape_cast %19 : vector<1x1x32x8xf32> to vector<32x8xf32>
    %cst_24 = arith.constant dense<0.000000e+00> : vector<16x8xf32>
    %21 = tpu.matmul %3, %20, %cst_24 {dimension_numbers = #tpu.dot_dimension_numbers<[1], [0], [0], [1], [0, 0, 1, 1], [], []>} : vector<16x32xf32>, vector<32x8xf32>, vector<16x8xf32> -> vector<16x8xf32>
    %c0_25 = arith.constant 0 : index
    %c0_26 = arith.constant 0 : index
    %c0_27 = arith.constant 0 : index
    %c0_28 = arith.constant 0 : index
    %22 = vector.load %arg10[%c0_25, %c0_26, %c0_27, %c0_28] : memref<1x4x1x8xf32, #tpu.memory_space<vmem>>, vector<1x1x1x8xf32>
    %23 = vector.shape_cast %22 : vector<1x1x1x8xf32> to vector<1x8xf32>
    %24 = vector.broadcast %23 : vector<1x8xf32> to vector<16x8xf32>
    %25 = arith.addf %21, %24 : vector<16x8xf32>
    %cst_29 = arith.constant 0xFF800000 : f32
    %26 = vector.broadcast %cst_29 : f32 to vector<16x1xf32>
    %cst_30 = arith.constant 0.000000e+00 : f32
    %27 = vector.broadcast %cst_30 : f32 to vector<16x1xf32>
    %cst_31 = arith.constant 0.000000e+00 : f32
    %28 = vector.broadcast %cst_31 : f32 to vector<16x8xf32>
    %29 = vector.extract_strided_slice %18 {offsets = [0, 0], sizes = [8, 8], strides = [1, 1]} : vector<16x8xf32> to vector<8x8xf32>
    %30 = vector.extract_strided_slice %25 {offsets = [0, 0], sizes = [8, 8], strides = [1, 1]} : vector<16x8xf32> to vector<8x8xf32>
    "tpu.trace_start"() <{level = 10 : i32, message = "qd,kd->qk"}> : () -> ()
    %cst_32 = arith.constant dense<0.000000e+00> : vector<16x8xf32>
    %31 = tpu.matmul %11, %29, %cst_32 {dimension_numbers = #tpu.dot_dimension_numbers<[1], [1], [0], [0], [0, 0, 1, 0], [], []>} : vector<16x8xf32>, vector<8x8xf32>, vector<16x8xf32> -> vector<16x8xf32>
    "tpu.trace_stop"() : () -> ()
    %cst_33 = arith.constant dense<0xFF800000> : vector<16xf32>
    %32 = vector.multi_reduction <maximumf>, %31, %cst_33 [1] : vector<16x8xf32> to vector<16xf32>
    %33 = vector.shape_cast %32 : vector<16xf32> to vector<16x1xf32>
    %34 = arith.maximumf %26, %33 : vector<16x1xf32>
    %35 = arith.subf %26, %34 : vector<16x1xf32>
    %36 = math.exp %35 : vector<16x1xf32>
    %37 = vector.broadcast %34 : vector<16x1xf32> to vector<16x8xf32>
    %38 = arith.subf %31, %37 : vector<16x8xf32>
    %39 = math.exp %38 : vector<16x8xf32>
    %40 = arith.mulf %36, %27 : vector<16x1xf32>
    %cst_34 = arith.constant dense<0.000000e+00> : vector<16xf32>
    %41 = vector.multi_reduction <add>, %39, %cst_34 [1] : vector<16x8xf32> to vector<16xf32>
    %42 = vector.shape_cast %41 : vector<16xf32> to vector<16x1xf32>
    %43 = arith.addf %40, %42 : vector<16x1xf32>
    %44 = vector.broadcast %36 : vector<16x1xf32> to vector<16x8xf32>
    %45 = arith.mulf %44, %28 : vector<16x8xf32>
    %cst_35 = arith.constant dense<0.000000e+00> : vector<16x8xf32>
    %46 = tpu.matmul %39, %30, %cst_35 {dimension_numbers = #tpu.dot_dimension_numbers<[1], [0], [0], [1], [0, 0, 1, 1], [], []>} : vector<16x8xf32>, vector<8x8xf32>, vector<16x8xf32> -> vector<16x8xf32>
    %47 = arith.addf %45, %46 : vector<16x8xf32>
    %48 = vector.extract_strided_slice %18 {offsets = [8, 0], sizes = [8, 8], strides = [1, 1]} : vector<16x8xf32> to vector<8x8xf32>
    %49 = vector.extract_strided_slice %25 {offsets = [8, 0], sizes = [8, 8], strides = [1, 1]} : vector<16x8xf32> to vector<8x8xf32>
    "tpu.trace_start"() <{level = 10 : i32, message = "qd,kd->qk"}> : () -> ()
    %cst_36 = arith.constant dense<0.000000e+00> : vector<16x8xf32>
    %50 = tpu.matmul %11, %48, %cst_36 {dimension_numbers = #tpu.dot_dimension_numbers<[1], [1], [0], [0], [0, 0, 1, 0], [], []>} : vector<16x8xf32>, vector<8x8xf32>, vector<16x8xf32> -> vector<16x8xf32>
    "tpu.trace_stop"() : () -> ()
    %cst_37 = arith.constant dense<0xFF800000> : vector<16xf32>
    %51 = vector.multi_reduction <maximumf>, %50, %cst_37 [1] : vector<16x8xf32> to vector<16xf32>
    %52 = vector.shape_cast %51 : vector<16xf32> to vector<16x1xf32>
    %53 = arith.maximumf %34, %52 : vector<16x1xf32>
    %54 = arith.subf %34, %53 : vector<16x1xf32>
    %55 = math.exp %54 : vector<16x1xf32>
    %56 = vector.broadcast %53 : vector<16x1xf32> to vector<16x8xf32>
    %57 = arith.subf %50, %56 : vector<16x8xf32>
    %58 = math.exp %57 : vector<16x8xf32>
    %59 = arith.mulf %55, %43 : vector<16x1xf32>
    %cst_38 = arith.constant dense<0.000000e+00> : vector<16xf32>
    %60 = vector.multi_reduction <add>, %58, %cst_38 [1] : vector<16x8xf32> to vector<16xf32>
    %61 = vector.shape_cast %60 : vector<16xf32> to vector<16x1xf32>
    %62 = arith.addf %59, %61 : vector<16x1xf32>
    %63 = vector.broadcast %55 : vector<16x1xf32> to vector<16x8xf32>
    %64 = arith.mulf %63, %47 : vector<16x8xf32>
    %cst_39 = arith.constant dense<0.000000e+00> : vector<16x8xf32>
    %65 = tpu.matmul %58, %49, %cst_39 {dimension_numbers = #tpu.dot_dimension_numbers<[1], [0], [0], [1], [0, 0, 1, 1], [], []>} : vector<16x8xf32>, vector<8x8xf32>, vector<16x8xf32> -> vector<16x8xf32>
    %66 = arith.addf %64, %65 : vector<16x8xf32>
    %67 = vector.broadcast %62 : vector<16x1xf32> to vector<16x8xf32>
    %68 = arith.divf %66, %67 : vector<16x8xf32>
    %c0_40 = arith.constant 0 : index
    %c0_41 = arith.constant 0 : index
    %c0_42 = arith.constant 0 : index
    %c0_43 = arith.constant 0 : index
    %69 = vector.load %arg11[%c0_40, %c0_41, %c0_42, %c0_43] : memref<1x4x8x32xf32, #tpu.memory_space<vmem>>, vector<1x1x8x32xf32>
    %70 = vector.shape_cast %69 : vector<1x1x8x32xf32> to vector<8x32xf32>
    %cst_44 = arith.constant dense<0.000000e+00> : vector<16x32xf32>
    %71 = tpu.matmul %68, %70, %cst_44 {dimension_numbers = #tpu.dot_dimension_numbers<[1], [0], [0], [1], [0, 0, 1, 1], [], []>} : vector<16x8xf32>, vector<8x32xf32>, vector<16x32xf32> -> vector<16x32xf32>
    %72 = arith.addf %4, %71 : vector<16x32xf32>
    %c0_45 = arith.constant 0 : index
    %c1 = arith.constant 1 : index
    %c0_46 = arith.constant 0 : index
    %c0_47 = arith.constant 0 : index
    %73 = vector.load %arg5[%c0_45, %c1, %c0_46, %c0_47] : memref<1x4x32x8xf32, #tpu.memory_space<vmem>>, vector<1x1x32x8xf32>
    %74 = vector.shape_cast %73 : vector<1x1x32x8xf32> to vector<32x8xf32>
    %cst_48 = arith.constant dense<0.000000e+00> : vector<16x8xf32>
    %75 = tpu.matmul %3, %74, %cst_48 {dimension_numbers = #tpu.dot_dimension_numbers<[1], [0], [0], [1], [0, 0, 1, 1], [], []>} : vector<16x32xf32>, vector<32x8xf32>, vector<16x8xf32> -> vector<16x8xf32>
    %c0_49 = arith.constant 0 : index
    %c1_50 = arith.constant 1 : index
    %c0_51 = arith.constant 0 : index
    %c0_52 = arith.constant 0 : index
    %76 = vector.load %arg6[%c0_49, %c1_50, %c0_51, %c0_52] : memref<1x4x1x8xf32, #tpu.memory_space<vmem>>, vector<1x1x1x8xf32>
    %77 = vector.shape_cast %76 : vector<1x1x1x8xf32> to vector<1x8xf32>
    %78 = vector.broadcast %77 : vector<1x8xf32> to vector<16x8xf32>
    %79 = arith.addf %75, %78 : vector<16x8xf32>
    %c0_53 = arith.constant 0 : index
    %c1_54 = arith.constant 1 : index
    %c0_55 = arith.constant 0 : index
    %c0_56 = arith.constant 0 : index
    %80 = vector.load %arg7[%c0_53, %c1_54, %c0_55, %c0_56] : memref<1x4x32x8xf32, #tpu.memory_space<vmem>>, vector<1x1x32x8xf32>
    %81 = vector.shape_cast %80 : vector<1x1x32x8xf32> to vector<32x8xf32>
    %cst_57 = arith.constant dense<0.000000e+00> : vector<16x8xf32>
    %82 = tpu.matmul %3, %81, %cst_57 {dimension_numbers = #tpu.dot_dimension_numbers<[1], [0], [0], [1], [0, 0, 1, 1], [], []>} : vector<16x32xf32>, vector<32x8xf32>, vector<16x8xf32> -> vector<16x8xf32>
    %c0_58 = arith.constant 0 : index
    %c1_59 = arith.constant 1 : index
    %c0_60 = arith.constant 0 : index
    %c0_61 = arith.constant 0 : index
    %83 = vector.load %arg8[%c0_58, %c1_59, %c0_60, %c0_61] : memref<1x4x1x8xf32, #tpu.memory_space<vmem>>, vector<1x1x1x8xf32>
    %84 = vector.shape_cast %83 : vector<1x1x1x8xf32> to vector<1x8xf32>
    %85 = vector.broadcast %84 : vector<1x8xf32> to vector<16x8xf32>
    %86 = arith.addf %82, %85 : vector<16x8xf32>
    %c0_62 = arith.constant 0 : index
    %c1_63 = arith.constant 1 : index
    %c0_64 = arith.constant 0 : index
    %c0_65 = arith.constant 0 : index
    %87 = vector.load %arg9[%c0_62, %c1_63, %c0_64, %c0_65] : memref<1x4x32x8xf32, #tpu.memory_space<vmem>>, vector<1x1x32x8xf32>
    %88 = vector.shape_cast %87 : vector<1x1x32x8xf32> to vector<32x8xf32>
    %cst_66 = arith.constant dense<0.000000e+00> : vector<16x8xf32>
    %89 = tpu.matmul %3, %88, %cst_66 {dimension_numbers = #tpu.dot_dimension_numbers<[1], [0], [0], [1], [0, 0, 1, 1], [], []>} : vector<16x32xf32>, vector<32x8xf32>, vector<16x8xf32> -> vector<16x8xf32>
    %c0_67 = arith.constant 0 : index
    %c1_68 = arith.constant 1 : index
    %c0_69 = arith.constant 0 : index
    %c0_70 = arith.constant 0 : index
    %90 = vector.load %arg10[%c0_67, %c1_68, %c0_69, %c0_70] : memref<1x4x1x8xf32, #tpu.memory_space<vmem>>, vector<1x1x1x8xf32>
    %91 = vector.shape_cast %90 : vector<1x1x1x8xf32> to vector<1x8xf32>
    %92 = vector.broadcast %91 : vector<1x8xf32> to vector<16x8xf32>
    %93 = arith.addf %89, %92 : vector<16x8xf32>
    %cst_71 = arith.constant 0xFF800000 : f32
    %94 = vector.broadcast %cst_71 : f32 to vector<16x1xf32>
    %cst_72 = arith.constant 0.000000e+00 : f32
    %95 = vector.broadcast %cst_72 : f32 to vector<16x1xf32>
    %cst_73 = arith.constant 0.000000e+00 : f32
    %96 = vector.broadcast %cst_73 : f32 to vector<16x8xf32>
    %97 = vector.extract_strided_slice %86 {offsets = [0, 0], sizes = [8, 8], strides = [1, 1]} : vector<16x8xf32> to vector<8x8xf32>
    %98 = vector.extract_strided_slice %93 {offsets = [0, 0], sizes = [8, 8], strides = [1, 1]} : vector<16x8xf32> to vector<8x8xf32>
    "tpu.trace_start"() <{level = 10 : i32, message = "qd,kd->qk"}> : () -> ()
    %cst_74 = arith.constant dense<0.000000e+00> : vector<16x8xf32>
    %99 = tpu.matmul %79, %97, %cst_74 {dimension_numbers = #tpu.dot_dimension_numbers<[1], [1], [0], [0], [0, 0, 1, 0], [], []>} : vector<16x8xf32>, vector<8x8xf32>, vector<16x8xf32> -> vector<16x8xf32>
    "tpu.trace_stop"() : () -> ()
    %cst_75 = arith.constant dense<0xFF800000> : vector<16xf32>
    %100 = vector.multi_reduction <maximumf>, %99, %cst_75 [1] : vector<16x8xf32> to vector<16xf32>
    %101 = vector.shape_cast %100 : vector<16xf32> to vector<16x1xf32>
    %102 = arith.maximumf %94, %101 : vector<16x1xf32>
    %103 = arith.subf %94, %102 : vector<16x1xf32>
    %104 = math.exp %103 : vector<16x1xf32>
    %105 = vector.broadcast %102 : vector<16x1xf32> to vector<16x8xf32>
    %106 = arith.subf %99, %105 : vector<16x8xf32>
    %107 = math.exp %106 : vector<16x8xf32>
    %108 = arith.mulf %104, %95 : vector<16x1xf32>
    %cst_76 = arith.constant dense<0.000000e+00> : vector<16xf32>
    %109 = vector.multi_reduction <add>, %107, %cst_76 [1] : vector<16x8xf32> to vector<16xf32>
    %110 = vector.shape_cast %109 : vector<16xf32> to vector<16x1xf32>
    %111 = arith.addf %108, %110 : vector<16x1xf32>
    %112 = vector.broadcast %104 : vector<16x1xf32> to vector<16x8xf32>
    %113 = arith.mulf %112, %96 : vector<16x8xf32>
    %cst_77 = arith.constant dense<0.000000e+00> : vector<16x8xf32>
    %114 = tpu.matmul %107, %98, %cst_77 {dimension_numbers = #tpu.dot_dimension_numbers<[1], [0], [0], [1], [0, 0, 1, 1], [], []>} : vector<16x8xf32>, vector<8x8xf32>, vector<16x8xf32> -> vector<16x8xf32>
    %115 = arith.addf %113, %114 : vector<16x8xf32>
    %116 = vector.extract_strided_slice %86 {offsets = [8, 0], sizes = [8, 8], strides = [1, 1]} : vector<16x8xf32> to vector<8x8xf32>
    %117 = vector.extract_strided_slice %93 {offsets = [8, 0], sizes = [8, 8], strides = [1, 1]} : vector<16x8xf32> to vector<8x8xf32>
    "tpu.trace_start"() <{level = 10 : i32, message = "qd,kd->qk"}> : () -> ()
    %cst_78 = arith.constant dense<0.000000e+00> : vector<16x8xf32>
    %118 = tpu.matmul %79, %116, %cst_78 {dimension_numbers = #tpu.dot_dimension_numbers<[1], [1], [0], [0], [0, 0, 1, 0], [], []>} : vector<16x8xf32>, vector<8x8xf32>, vector<16x8xf32> -> vector<16x8xf32>
    "tpu.trace_stop"() : () -> ()
    %cst_79 = arith.constant dense<0xFF800000> : vector<16xf32>
    %119 = vector.multi_reduction <maximumf>, %118, %cst_79 [1] : vector<16x8xf32> to vector<16xf32>
    %120 = vector.shape_cast %119 : vector<16xf32> to vector<16x1xf32>
    %121 = arith.maximumf %102, %120 : vector<16x1xf32>
    %122 = arith.subf %102, %121 : vector<16x1xf32>
    %123 = math.exp %122 : vector<16x1xf32>
    %124 = vector.broadcast %121 : vector<16x1xf32> to vector<16x8xf32>
    %125 = arith.subf %118, %124 : vector<16x8xf32>
    %126 = math.exp %125 : vector<16x8xf32>
    %127 = arith.mulf %123, %111 : vector<16x1xf32>
    %cst_80 = arith.constant dense<0.000000e+00> : vector<16xf32>
    %128 = vector.multi_reduction <add>, %126, %cst_80 [1] : vector<16x8xf32> to vector<16xf32>
    %129 = vector.shape_cast %128 : vector<16xf32> to vector<16x1xf32>
    %130 = arith.addf %127, %129 : vector<16x1xf32>
    %131 = vector.broadcast %123 : vector<16x1xf32> to vector<16x8xf32>
    %132 = arith.mulf %131, %115 : vector<16x8xf32>
    %cst_81 = arith.constant dense<0.000000e+00> : vector<16x8xf32>
    %133 = tpu.matmul %126, %117, %cst_81 {dimension_numbers = #tpu.dot_dimension_numbers<[1], [0], [0], [1], [0, 0, 1, 1], [], []>} : vector<16x8xf32>, vector<8x8xf32>, vector<16x8xf32> -> vector<16x8xf32>
    %134 = arith.addf %132, %133 : vector<16x8xf32>
    %135 = vector.broadcast %130 : vector<16x1xf32> to vector<16x8xf32>
    %136 = arith.divf %134, %135 : vector<16x8xf32>
    %c0_82 = arith.constant 0 : index
    %c1_83 = arith.constant 1 : index
    %c0_84 = arith.constant 0 : index
    %c0_85 = arith.constant 0 : index
    %137 = vector.load %arg11[%c0_82, %c1_83, %c0_84, %c0_85] : memref<1x4x8x32xf32, #tpu.memory_space<vmem>>, vector<1x1x8x32xf32>
    %138 = vector.shape_cast %137 : vector<1x1x8x32xf32> to vector<8x32xf32>
    %cst_86 = arith.constant dense<0.000000e+00> : vector<16x32xf32>
    %139 = tpu.matmul %136, %138, %cst_86 {dimension_numbers = #tpu.dot_dimension_numbers<[1], [0], [0], [1], [0, 0, 1, 1], [], []>} : vector<16x8xf32>, vector<8x32xf32>, vector<16x32xf32> -> vector<16x32xf32>
    %140 = arith.addf %72, %139 : vector<16x32xf32>
    %c0_87 = arith.constant 0 : index
    %c2 = arith.constant 2 : index
    %c0_88 = arith.constant 0 : index
    %c0_89 = arith.constant 0 : index
    %141 = vector.load %arg5[%c0_87, %c2, %c0_88, %c0_89] : memref<1x4x32x8xf32, #tpu.memory_space<vmem>>, vector<1x1x32x8xf32>
    %142 = vector.shape_cast %141 : vector<1x1x32x8xf32> to vector<32x8xf32>
    %cst_90 = arith.constant dense<0.000000e+00> : vector<16x8xf32>
    %143 = tpu.matmul %3, %142, %cst_90 {dimension_numbers = #tpu.dot_dimension_numbers<[1], [0], [0], [1], [0, 0, 1, 1], [], []>} : vector<16x32xf32>, vector<32x8xf32>, vector<16x8xf32> -> vector<16x8xf32>
    %c0_91 = arith.constant 0 : index
    %c2_92 = arith.constant 2 : index
    %c0_93 = arith.constant 0 : index
    %c0_94 = arith.constant 0 : index
    %144 = vector.load %arg6[%c0_91, %c2_92, %c0_93, %c0_94] : memref<1x4x1x8xf32, #tpu.memory_space<vmem>>, vector<1x1x1x8xf32>
    %145 = vector.shape_cast %144 : vector<1x1x1x8xf32> to vector<1x8xf32>
    %146 = vector.broadcast %145 : vector<1x8xf32> to vector<16x8xf32>
    %147 = arith.addf %143, %146 : vector<16x8xf32>
    %c0_95 = arith.constant 0 : index
    %c2_96 = arith.constant 2 : index
    %c0_97 = arith.constant 0 : index
    %c0_98 = arith.constant 0 : index
    %148 = vector.load %arg7[%c0_95, %c2_96, %c0_97, %c0_98] : memref<1x4x32x8xf32, #tpu.memory_space<vmem>>, vector<1x1x32x8xf32>
    %149 = vector.shape_cast %148 : vector<1x1x32x8xf32> to vector<32x8xf32>
    %cst_99 = arith.constant dense<0.000000e+00> : vector<16x8xf32>
    %150 = tpu.matmul %3, %149, %cst_99 {dimension_numbers = #tpu.dot_dimension_numbers<[1], [0], [0], [1], [0, 0, 1, 1], [], []>} : vector<16x32xf32>, vector<32x8xf32>, vector<16x8xf32> -> vector<16x8xf32>
    %c0_100 = arith.constant 0 : index
    %c2_101 = arith.constant 2 : index
    %c0_102 = arith.constant 0 : index
    %c0_103 = arith.constant 0 : index
    %151 = vector.load %arg8[%c0_100, %c2_101, %c0_102, %c0_103] : memref<1x4x1x8xf32, #tpu.memory_space<vmem>>, vector<1x1x1x8xf32>
    %152 = vector.shape_cast %151 : vector<1x1x1x8xf32> to vector<1x8xf32>
    %153 = vector.broadcast %152 : vector<1x8xf32> to vector<16x8xf32>
    %154 = arith.addf %150, %153 : vector<16x8xf32>
    %c0_104 = arith.constant 0 : index
    %c2_105 = arith.constant 2 : index
    %c0_106 = arith.constant 0 : index
    %c0_107 = arith.constant 0 : index
    %155 = vector.load %arg9[%c0_104, %c2_105, %c0_106, %c0_107] : memref<1x4x32x8xf32, #tpu.memory_space<vmem>>, vector<1x1x32x8xf32>
    %156 = vector.shape_cast %155 : vector<1x1x32x8xf32> to vector<32x8xf32>
    %cst_108 = arith.constant dense<0.000000e+00> : vector<16x8xf32>
    %157 = tpu.matmul %3, %156, %cst_108 {dimension_numbers = #tpu.dot_dimension_numbers<[1], [0], [0], [1], [0, 0, 1, 1], [], []>} : vector<16x32xf32>, vector<32x8xf32>, vector<16x8xf32> -> vector<16x8xf32>
    %c0_109 = arith.constant 0 : index
    %c2_110 = arith.constant 2 : index
    %c0_111 = arith.constant 0 : index
    %c0_112 = arith.constant 0 : index
    %158 = vector.load %arg10[%c0_109, %c2_110, %c0_111, %c0_112] : memref<1x4x1x8xf32, #tpu.memory_space<vmem>>, vector<1x1x1x8xf32>
    %159 = vector.shape_cast %158 : vector<1x1x1x8xf32> to vector<1x8xf32>
    %160 = vector.broadcast %159 : vector<1x8xf32> to vector<16x8xf32>
    %161 = arith.addf %157, %160 : vector<16x8xf32>
    %cst_113 = arith.constant 0xFF800000 : f32
    %162 = vector.broadcast %cst_113 : f32 to vector<16x1xf32>
    %cst_114 = arith.constant 0.000000e+00 : f32
    %163 = vector.broadcast %cst_114 : f32 to vector<16x1xf32>
    %cst_115 = arith.constant 0.000000e+00 : f32
    %164 = vector.broadcast %cst_115 : f32 to vector<16x8xf32>
    %165 = vector.extract_strided_slice %154 {offsets = [0, 0], sizes = [8, 8], strides = [1, 1]} : vector<16x8xf32> to vector<8x8xf32>
    %166 = vector.extract_strided_slice %161 {offsets = [0, 0], sizes = [8, 8], strides = [1, 1]} : vector<16x8xf32> to vector<8x8xf32>
    "tpu.trace_start"() <{level = 10 : i32, message = "qd,kd->qk"}> : () -> ()
    %cst_116 = arith.constant dense<0.000000e+00> : vector<16x8xf32>
    %167 = tpu.matmul %147, %165, %cst_116 {dimension_numbers = #tpu.dot_dimension_numbers<[1], [1], [0], [0], [0, 0, 1, 0], [], []>} : vector<16x8xf32>, vector<8x8xf32>, vector<16x8xf32> -> vector<16x8xf32>
    "tpu.trace_stop"() : () -> ()
    %cst_117 = arith.constant dense<0xFF800000> : vector<16xf32>
    %168 = vector.multi_reduction <maximumf>, %167, %cst_117 [1] : vector<16x8xf32> to vector<16xf32>
    %169 = vector.shape_cast %168 : vector<16xf32> to vector<16x1xf32>
    %170 = arith.maximumf %162, %169 : vector<16x1xf32>
    %171 = arith.subf %162, %170 : vector<16x1xf32>
    %172 = math.exp %171 : vector<16x1xf32>
    %173 = vector.broadcast %170 : vector<16x1xf32> to vector<16x8xf32>
    %174 = arith.subf %167, %173 : vector<16x8xf32>
    %175 = math.exp %174 : vector<16x8xf32>
    %176 = arith.mulf %172, %163 : vector<16x1xf32>
    %cst_118 = arith.constant dense<0.000000e+00> : vector<16xf32>
    %177 = vector.multi_reduction <add>, %175, %cst_118 [1] : vector<16x8xf32> to vector<16xf32>
    %178 = vector.shape_cast %177 : vector<16xf32> to vector<16x1xf32>
    %179 = arith.addf %176, %178 : vector<16x1xf32>
    %180 = vector.broadcast %172 : vector<16x1xf32> to vector<16x8xf32>
    %181 = arith.mulf %180, %164 : vector<16x8xf32>
    %cst_119 = arith.constant dense<0.000000e+00> : vector<16x8xf32>
    %182 = tpu.matmul %175, %166, %cst_119 {dimension_numbers = #tpu.dot_dimension_numbers<[1], [0], [0], [1], [0, 0, 1, 1], [], []>} : vector<16x8xf32>, vector<8x8xf32>, vector<16x8xf32> -> vector<16x8xf32>
    %183 = arith.addf %181, %182 : vector<16x8xf32>
    %184 = vector.extract_strided_slice %154 {offsets = [8, 0], sizes = [8, 8], strides = [1, 1]} : vector<16x8xf32> to vector<8x8xf32>
    %185 = vector.extract_strided_slice %161 {offsets = [8, 0], sizes = [8, 8], strides = [1, 1]} : vector<16x8xf32> to vector<8x8xf32>
    "tpu.trace_start"() <{level = 10 : i32, message = "qd,kd->qk"}> : () -> ()
    %cst_120 = arith.constant dense<0.000000e+00> : vector<16x8xf32>
    %186 = tpu.matmul %147, %184, %cst_120 {dimension_numbers = #tpu.dot_dimension_numbers<[1], [1], [0], [0], [0, 0, 1, 0], [], []>} : vector<16x8xf32>, vector<8x8xf32>, vector<16x8xf32> -> vector<16x8xf32>
    "tpu.trace_stop"() : () -> ()
    %cst_121 = arith.constant dense<0xFF800000> : vector<16xf32>
    %187 = vector.multi_reduction <maximumf>, %186, %cst_121 [1] : vector<16x8xf32> to vector<16xf32>
    %188 = vector.shape_cast %187 : vector<16xf32> to vector<16x1xf32>
    %189 = arith.maximumf %170, %188 : vector<16x1xf32>
    %190 = arith.subf %170, %189 : vector<16x1xf32>
    %191 = math.exp %190 : vector<16x1xf32>
    %192 = vector.broadcast %189 : vector<16x1xf32> to vector<16x8xf32>
    %193 = arith.subf %186, %192 : vector<16x8xf32>
    %194 = math.exp %193 : vector<16x8xf32>
    %195 = arith.mulf %191, %179 : vector<16x1xf32>
    %cst_122 = arith.constant dense<0.000000e+00> : vector<16xf32>
    %196 = vector.multi_reduction <add>, %194, %cst_122 [1] : vector<16x8xf32> to vector<16xf32>
    %197 = vector.shape_cast %196 : vector<16xf32> to vector<16x1xf32>
    %198 = arith.addf %195, %197 : vector<16x1xf32>
    %199 = vector.broadcast %191 : vector<16x1xf32> to vector<16x8xf32>
    %200 = arith.mulf %199, %183 : vector<16x8xf32>
    %cst_123 = arith.constant dense<0.000000e+00> : vector<16x8xf32>
    %201 = tpu.matmul %194, %185, %cst_123 {dimension_numbers = #tpu.dot_dimension_numbers<[1], [0], [0], [1], [0, 0, 1, 1], [], []>} : vector<16x8xf32>, vector<8x8xf32>, vector<16x8xf32> -> vector<16x8xf32>
    %202 = arith.addf %200, %201 : vector<16x8xf32>
    %203 = vector.broadcast %198 : vector<16x1xf32> to vector<16x8xf32>
    %204 = arith.divf %202, %203 : vector<16x8xf32>
    %c0_124 = arith.constant 0 : index
    %c2_125 = arith.constant 2 : index
    %c0_126 = arith.constant 0 : index
    %c0_127 = arith.constant 0 : index
    %205 = vector.load %arg11[%c0_124, %c2_125, %c0_126, %c0_127] : memref<1x4x8x32xf32, #tpu.memory_space<vmem>>, vector<1x1x8x32xf32>
    %206 = vector.shape_cast %205 : vector<1x1x8x32xf32> to vector<8x32xf32>
    %cst_128 = arith.constant dense<0.000000e+00> : vector<16x32xf32>
    %207 = tpu.matmul %204, %206, %cst_128 {dimension_numbers = #tpu.dot_dimension_numbers<[1], [0], [0], [1], [0, 0, 1, 1], [], []>} : vector<16x8xf32>, vector<8x32xf32>, vector<16x32xf32> -> vector<16x32xf32>
    %208 = arith.addf %140, %207 : vector<16x32xf32>
    %c0_129 = arith.constant 0 : index
    %c3 = arith.constant 3 : index
    %c0_130 = arith.constant 0 : index
    %c0_131 = arith.constant 0 : index
    %209 = vector.load %arg5[%c0_129, %c3, %c0_130, %c0_131] : memref<1x4x32x8xf32, #tpu.memory_space<vmem>>, vector<1x1x32x8xf32>
    %210 = vector.shape_cast %209 : vector<1x1x32x8xf32> to vector<32x8xf32>
    %cst_132 = arith.constant dense<0.000000e+00> : vector<16x8xf32>
    %211 = tpu.matmul %3, %210, %cst_132 {dimension_numbers = #tpu.dot_dimension_numbers<[1], [0], [0], [1], [0, 0, 1, 1], [], []>} : vector<16x32xf32>, vector<32x8xf32>, vector<16x8xf32> -> vector<16x8xf32>
    %c0_133 = arith.constant 0 : index
    %c3_134 = arith.constant 3 : index
    %c0_135 = arith.constant 0 : index
    %c0_136 = arith.constant 0 : index
    %212 = vector.load %arg6[%c0_133, %c3_134, %c0_135, %c0_136] : memref<1x4x1x8xf32, #tpu.memory_space<vmem>>, vector<1x1x1x8xf32>
    %213 = vector.shape_cast %212 : vector<1x1x1x8xf32> to vector<1x8xf32>
    %214 = vector.broadcast %213 : vector<1x8xf32> to vector<16x8xf32>
    %215 = arith.addf %211, %214 : vector<16x8xf32>
    %c0_137 = arith.constant 0 : index
    %c3_138 = arith.constant 3 : index
    %c0_139 = arith.constant 0 : index
    %c0_140 = arith.constant 0 : index
    %216 = vector.load %arg7[%c0_137, %c3_138, %c0_139, %c0_140] : memref<1x4x32x8xf32, #tpu.memory_space<vmem>>, vector<1x1x32x8xf32>
    %217 = vector.shape_cast %216 : vector<1x1x32x8xf32> to vector<32x8xf32>
    %cst_141 = arith.constant dense<0.000000e+00> : vector<16x8xf32>
    %218 = tpu.matmul %3, %217, %cst_141 {dimension_numbers = #tpu.dot_dimension_numbers<[1], [0], [0], [1], [0, 0, 1, 1], [], []>} : vector<16x32xf32>, vector<32x8xf32>, vector<16x8xf32> -> vector<16x8xf32>
    %c0_142 = arith.constant 0 : index
    %c3_143 = arith.constant 3 : index
    %c0_144 = arith.constant 0 : index
    %c0_145 = arith.constant 0 : index
    %219 = vector.load %arg8[%c0_142, %c3_143, %c0_144, %c0_145] : memref<1x4x1x8xf32, #tpu.memory_space<vmem>>, vector<1x1x1x8xf32>
    %220 = vector.shape_cast %219 : vector<1x1x1x8xf32> to vector<1x8xf32>
    %221 = vector.broadcast %220 : vector<1x8xf32> to vector<16x8xf32>
    %222 = arith.addf %218, %221 : vector<16x8xf32>
    %c0_146 = arith.constant 0 : index
    %c3_147 = arith.constant 3 : index
    %c0_148 = arith.constant 0 : index
    %c0_149 = arith.constant 0 : index
    %223 = vector.load %arg9[%c0_146, %c3_147, %c0_148, %c0_149] : memref<1x4x32x8xf32, #tpu.memory_space<vmem>>, vector<1x1x32x8xf32>
    %224 = vector.shape_cast %223 : vector<1x1x32x8xf32> to vector<32x8xf32>
    %cst_150 = arith.constant dense<0.000000e+00> : vector<16x8xf32>
    %225 = tpu.matmul %3, %224, %cst_150 {dimension_numbers = #tpu.dot_dimension_numbers<[1], [0], [0], [1], [0, 0, 1, 1], [], []>} : vector<16x32xf32>, vector<32x8xf32>, vector<16x8xf32> -> vector<16x8xf32>
    %c0_151 = arith.constant 0 : index
    %c3_152 = arith.constant 3 : index
    %c0_153 = arith.constant 0 : index
    %c0_154 = arith.constant 0 : index
    %226 = vector.load %arg10[%c0_151, %c3_152, %c0_153, %c0_154] : memref<1x4x1x8xf32, #tpu.memory_space<vmem>>, vector<1x1x1x8xf32>
    %227 = vector.shape_cast %226 : vector<1x1x1x8xf32> to vector<1x8xf32>
    %228 = vector.broadcast %227 : vector<1x8xf32> to vector<16x8xf32>
    %229 = arith.addf %225, %228 : vector<16x8xf32>
    %cst_155 = arith.constant 0xFF800000 : f32
    %230 = vector.broadcast %cst_155 : f32 to vector<16x1xf32>
    %cst_156 = arith.constant 0.000000e+00 : f32
    %231 = vector.broadcast %cst_156 : f32 to vector<16x1xf32>
    %cst_157 = arith.constant 0.000000e+00 : f32
    %232 = vector.broadcast %cst_157 : f32 to vector<16x8xf32>
    %233 = vector.extract_strided_slice %222 {offsets = [0, 0], sizes = [8, 8], strides = [1, 1]} : vector<16x8xf32> to vector<8x8xf32>
    %234 = vector.extract_strided_slice %229 {offsets = [0, 0], sizes = [8, 8], strides = [1, 1]} : vector<16x8xf32> to vector<8x8xf32>
    "tpu.trace_start"() <{level = 10 : i32, message = "qd,kd->qk"}> : () -> ()
    %cst_158 = arith.constant dense<0.000000e+00> : vector<16x8xf32>
    %235 = tpu.matmul %215, %233, %cst_158 {dimension_numbers = #tpu.dot_dimension_numbers<[1], [1], [0], [0], [0, 0, 1, 0], [], []>} : vector<16x8xf32>, vector<8x8xf32>, vector<16x8xf32> -> vector<16x8xf32>
    "tpu.trace_stop"() : () -> ()
    %cst_159 = arith.constant dense<0xFF800000> : vector<16xf32>
    %236 = vector.multi_reduction <maximumf>, %235, %cst_159 [1] : vector<16x8xf32> to vector<16xf32>
    %237 = vector.shape_cast %236 : vector<16xf32> to vector<16x1xf32>
    %238 = arith.maximumf %230, %237 : vector<16x1xf32>
    %239 = arith.subf %230, %238 : vector<16x1xf32>
    %240 = math.exp %239 : vector<16x1xf32>
    %241 = vector.broadcast %238 : vector<16x1xf32> to vector<16x8xf32>
    %242 = arith.subf %235, %241 : vector<16x8xf32>
    %243 = math.exp %242 : vector<16x8xf32>
    %244 = arith.mulf %240, %231 : vector<16x1xf32>
    %cst_160 = arith.constant dense<0.000000e+00> : vector<16xf32>
    %245 = vector.multi_reduction <add>, %243, %cst_160 [1] : vector<16x8xf32> to vector<16xf32>
    %246 = vector.shape_cast %245 : vector<16xf32> to vector<16x1xf32>
    %247 = arith.addf %244, %246 : vector<16x1xf32>
    %248 = vector.broadcast %240 : vector<16x1xf32> to vector<16x8xf32>
    %249 = arith.mulf %248, %232 : vector<16x8xf32>
    %cst_161 = arith.constant dense<0.000000e+00> : vector<16x8xf32>
    %250 = tpu.matmul %243, %234, %cst_161 {dimension_numbers = #tpu.dot_dimension_numbers<[1], [0], [0], [1], [0, 0, 1, 1], [], []>} : vector<16x8xf32>, vector<8x8xf32>, vector<16x8xf32> -> vector<16x8xf32>
    %251 = arith.addf %249, %250 : vector<16x8xf32>
    %252 = vector.extract_strided_slice %222 {offsets = [8, 0], sizes = [8, 8], strides = [1, 1]} : vector<16x8xf32> to vector<8x8xf32>
    %253 = vector.extract_strided_slice %229 {offsets = [8, 0], sizes = [8, 8], strides = [1, 1]} : vector<16x8xf32> to vector<8x8xf32>
    "tpu.trace_start"() <{level = 10 : i32, message = "qd,kd->qk"}> : () -> ()
    %cst_162 = arith.constant dense<0.000000e+00> : vector<16x8xf32>
    %254 = tpu.matmul %215, %252, %cst_162 {dimension_numbers = #tpu.dot_dimension_numbers<[1], [1], [0], [0], [0, 0, 1, 0], [], []>} : vector<16x8xf32>, vector<8x8xf32>, vector<16x8xf32> -> vector<16x8xf32>
    "tpu.trace_stop"() : () -> ()
    %cst_163 = arith.constant dense<0xFF800000> : vector<16xf32>
    %255 = vector.multi_reduction <maximumf>, %254, %cst_163 [1] : vector<16x8xf32> to vector<16xf32>
    %256 = vector.shape_cast %255 : vector<16xf32> to vector<16x1xf32>
    %257 = arith.maximumf %238, %256 : vector<16x1xf32>
    %258 = arith.subf %238, %257 : vector<16x1xf32>
    %259 = math.exp %258 : vector<16x1xf32>
    %260 = vector.broadcast %257 : vector<16x1xf32> to vector<16x8xf32>
    %261 = arith.subf %254, %260 : vector<16x8xf32>
    %262 = math.exp %261 : vector<16x8xf32>
    %263 = arith.mulf %259, %247 : vector<16x1xf32>
    %cst_164 = arith.constant dense<0.000000e+00> : vector<16xf32>
    %264 = vector.multi_reduction <add>, %262, %cst_164 [1] : vector<16x8xf32> to vector<16xf32>
    %265 = vector.shape_cast %264 : vector<16xf32> to vector<16x1xf32>
    %266 = arith.addf %263, %265 : vector<16x1xf32>
    %267 = vector.broadcast %259 : vector<16x1xf32> to vector<16x8xf32>
    %268 = arith.mulf %267, %251 : vector<16x8xf32>
    %cst_165 = arith.constant dense<0.000000e+00> : vector<16x8xf32>
    %269 = tpu.matmul %262, %253, %cst_165 {dimension_numbers = #tpu.dot_dimension_numbers<[1], [0], [0], [1], [0, 0, 1, 1], [], []>} : vector<16x8xf32>, vector<8x8xf32>, vector<16x8xf32> -> vector<16x8xf32>
    %270 = arith.addf %268, %269 : vector<16x8xf32>
    %271 = vector.broadcast %266 : vector<16x1xf32> to vector<16x8xf32>
    %272 = arith.divf %270, %271 : vector<16x8xf32>
    %c0_166 = arith.constant 0 : index
    %c3_167 = arith.constant 3 : index
    %c0_168 = arith.constant 0 : index
    %c0_169 = arith.constant 0 : index
    %273 = vector.load %arg11[%c0_166, %c3_167, %c0_168, %c0_169] : memref<1x4x8x32xf32, #tpu.memory_space<vmem>>, vector<1x1x8x32xf32>
    %274 = vector.shape_cast %273 : vector<1x1x8x32xf32> to vector<8x32xf32>
    %cst_170 = arith.constant dense<0.000000e+00> : vector<16x32xf32>
    %275 = tpu.matmul %272, %274, %cst_170 {dimension_numbers = #tpu.dot_dimension_numbers<[1], [0], [0], [1], [0, 0, 1, 1], [], []>} : vector<16x8xf32>, vector<8x32xf32>, vector<16x32xf32> -> vector<16x32xf32>
    %276 = arith.addf %208, %275 : vector<16x32xf32>
    %c0_171 = arith.constant 0 : index
    %c0_172 = arith.constant 0 : index
    %c0_173 = arith.constant 0 : index
    %277 = vector.load %arg12[%c0_171, %c0_172, %c0_173] : memref<1x1x32xf32, #tpu.memory_space<vmem>>, vector<1x1x32xf32>
    %278 = vector.shape_cast %277 : vector<1x1x32xf32> to vector<1x32xf32>
    %279 = vector.broadcast %278 : vector<1x32xf32> to vector<16x32xf32>
    %280 = arith.addf %276, %279 : vector<16x32xf32>
    %281 = arith.addf %3, %280 : vector<16x32xf32>
    %c0_174 = arith.constant 0 : index
    %c0_175 = arith.constant 0 : index
    %c0_176 = arith.constant 0 : index
    %282 = vector.load %arg13[%c0_174, %c0_175, %c0_176] : memref<1x1x32xf32, #tpu.memory_space<vmem>>, vector<1x1x32xf32>
    %283 = vector.shape_cast %282 : vector<1x1x32xf32> to vector<1x32xf32>
    %c0_177 = arith.constant 0 : index
    %c0_178 = arith.constant 0 : index
    %c0_179 = arith.constant 0 : index
    %284 = vector.load %arg14[%c0_177, %c0_178, %c0_179] : memref<1x1x32xf32, #tpu.memory_space<vmem>>, vector<1x1x32xf32>
    %285 = vector.shape_cast %284 : vector<1x1x32xf32> to vector<1x32xf32>
    %cst_180 = arith.constant dense<0.000000e+00> : vector<16xf32>
    %286 = vector.multi_reduction <add>, %281, %cst_180 [1] : vector<16x32xf32> to vector<16xf32>
    %287 = vector.shape_cast %286 : vector<16xf32> to vector<16x1xf32>
    %cst_181 = arith.constant 3.200000e+01 : f32
    %288 = vector.broadcast %cst_181 : f32 to vector<16x1xf32>
    %289 = arith.divf %287, %288 : vector<16x1xf32>
    %290 = vector.broadcast %289 : vector<16x1xf32> to vector<16x32xf32>
    %291 = arith.subf %281, %290 : vector<16x32xf32>
    %292 = arith.mulf %291, %291 : vector<16x32xf32>
    %cst_182 = arith.constant dense<0.000000e+00> : vector<16xf32>
    %293 = vector.multi_reduction <add>, %292, %cst_182 [1] : vector<16x32xf32> to vector<16xf32>
    %294 = vector.shape_cast %293 : vector<16xf32> to vector<16x1xf32>
    %cst_183 = arith.constant 3.200000e+01 : f32
    %295 = vector.broadcast %cst_183 : f32 to vector<16x1xf32>
    %296 = arith.divf %294, %295 : vector<16x1xf32>
    %297 = vector.broadcast %289 : vector<16x1xf32> to vector<16x32xf32>
    %298 = arith.subf %281, %297 : vector<16x32xf32>
    %cst_184 = arith.constant 9.99999974E-6 : f32
    %299 = vector.broadcast %cst_184 : f32 to vector<16x1xf32>
    %300 = arith.addf %296, %299 : vector<16x1xf32>
    %301 = math.rsqrt %300 : vector<16x1xf32>
    %302 = vector.broadcast %301 : vector<16x1xf32> to vector<16x32xf32>
    %303 = arith.mulf %298, %302 : vector<16x32xf32>
    %304 = vector.broadcast %283 : vector<1x32xf32> to vector<16x32xf32>
    %305 = arith.mulf %303, %304 : vector<16x32xf32>
    %306 = vector.broadcast %285 : vector<1x32xf32> to vector<16x32xf32>
    %307 = arith.addf %305, %306 : vector<16x32xf32>
    %c0_185 = arith.constant 0 : index
    %c0_186 = arith.constant 0 : index
    %c0_187 = arith.constant 0 : index
    %308 = vector.load %arg15[%c0_185, %c0_186, %c0_187] : memref<1x32x128xf32, #tpu.memory_space<vmem>>, vector<1x32x128xf32>
    %309 = vector.shape_cast %308 : vector<1x32x128xf32> to vector<32x128xf32>
    %cst_188 = arith.constant dense<0.000000e+00> : vector<16x128xf32>
    %310 = tpu.matmul %307, %309, %cst_188 {dimension_numbers = #tpu.dot_dimension_numbers<[1], [0], [0], [1], [0, 0, 1, 1], [], []>} : vector<16x32xf32>, vector<32x128xf32>, vector<16x128xf32> -> vector<16x128xf32>
    %c0_189 = arith.constant 0 : index
    %c0_190 = arith.constant 0 : index
    %c0_191 = arith.constant 0 : index
    %311 = vector.load %arg16[%c0_189, %c0_190, %c0_191] : memref<1x1x128xf32, #tpu.memory_space<vmem>>, vector<1x1x128xf32>
    %312 = vector.shape_cast %311 : vector<1x1x128xf32> to vector<1x128xf32>
    %313 = vector.broadcast %312 : vector<1x128xf32> to vector<16x128xf32>
    %314 = arith.addf %310, %313 : vector<16x128xf32>
    %cst_192 = arith.constant 0.000000e+00 : f32
    %315 = vector.broadcast %cst_192 : f32 to vector<16x128xf32>
    %316 = arith.maximumf %314, %315 : vector<16x128xf32>
    %c0_193 = arith.constant 0 : index
    %c0_194 = arith.constant 0 : index
    %c0_195 = arith.constant 0 : index
    %317 = vector.load %arg17[%c0_193, %c0_194, %c0_195] : memref<1x128x32xf32, #tpu.memory_space<vmem>>, vector<1x128x32xf32>
    %318 = vector.shape_cast %317 : vector<1x128x32xf32> to vector<128x32xf32>
    %cst_196 = arith.constant dense<0.000000e+00> : vector<16x32xf32>
    %319 = tpu.matmul %316, %318, %cst_196 {dimension_numbers = #tpu.dot_dimension_numbers<[1], [0], [0], [1], [0, 0, 1, 1], [], []>} : vector<16x128xf32>, vector<128x32xf32>, vector<16x32xf32> -> vector<16x32xf32>
    %c0_197 = arith.constant 0 : index
    %c0_198 = arith.constant 0 : index
    %c0_199 = arith.constant 0 : index
    %320 = vector.load %arg18[%c0_197, %c0_198, %c0_199] : memref<1x1x32xf32, #tpu.memory_space<vmem>>, vector<1x1x32xf32>
    %321 = vector.shape_cast %320 : vector<1x1x32xf32> to vector<1x32xf32>
    %322 = vector.broadcast %321 : vector<1x32xf32> to vector<16x32xf32>
    %323 = arith.addf %319, %322 : vector<16x32xf32>
    %324 = arith.addf %307, %323 : vector<16x32xf32>
    %c0_200 = arith.constant 0 : index
    %c0_201 = arith.constant 0 : index
    %c0_202 = arith.constant 0 : index
    %325 = vector.load %arg19[%c0_200, %c0_201, %c0_202] : memref<1x1x32xf32, #tpu.memory_space<vmem>>, vector<1x1x32xf32>
    %326 = vector.shape_cast %325 : vector<1x1x32xf32> to vector<1x32xf32>
    %c0_203 = arith.constant 0 : index
    %c0_204 = arith.constant 0 : index
    %c0_205 = arith.constant 0 : index
    %327 = vector.load %arg20[%c0_203, %c0_204, %c0_205] : memref<1x1x32xf32, #tpu.memory_space<vmem>>, vector<1x1x32xf32>
    %328 = vector.shape_cast %327 : vector<1x1x32xf32> to vector<1x32xf32>
    %cst_206 = arith.constant dense<0.000000e+00> : vector<16xf32>
    %329 = vector.multi_reduction <add>, %324, %cst_206 [1] : vector<16x32xf32> to vector<16xf32>
    %330 = vector.shape_cast %329 : vector<16xf32> to vector<16x1xf32>
    %cst_207 = arith.constant 3.200000e+01 : f32
    %331 = vector.broadcast %cst_207 : f32 to vector<16x1xf32>
    %332 = arith.divf %330, %331 : vector<16x1xf32>
    %333 = vector.broadcast %332 : vector<16x1xf32> to vector<16x32xf32>
    %334 = arith.subf %324, %333 : vector<16x32xf32>
    %335 = arith.mulf %334, %334 : vector<16x32xf32>
    %cst_208 = arith.constant dense<0.000000e+00> : vector<16xf32>
    %336 = vector.multi_reduction <add>, %335, %cst_208 [1] : vector<16x32xf32> to vector<16xf32>
    %337 = vector.shape_cast %336 : vector<16xf32> to vector<16x1xf32>
    %cst_209 = arith.constant 3.200000e+01 : f32
    %338 = vector.broadcast %cst_209 : f32 to vector<16x1xf32>
    %339 = arith.divf %337, %338 : vector<16x1xf32>
    %340 = vector.broadcast %332 : vector<16x1xf32> to vector<16x32xf32>
    %341 = arith.subf %324, %340 : vector<16x32xf32>
    %cst_210 = arith.constant 9.99999974E-6 : f32
    %342 = vector.broadcast %cst_210 : f32 to vector<16x1xf32>
    %343 = arith.addf %339, %342 : vector<16x1xf32>
    %344 = math.rsqrt %343 : vector<16x1xf32>
    %345 = vector.broadcast %344 : vector<16x1xf32> to vector<16x32xf32>
    %346 = arith.mulf %341, %345 : vector<16x32xf32>
    %347 = vector.broadcast %326 : vector<1x32xf32> to vector<16x32xf32>
    %348 = arith.mulf %346, %347 : vector<16x32xf32>
    %349 = vector.broadcast %328 : vector<1x32xf32> to vector<16x32xf32>
    %350 = arith.addf %348, %349 : vector<16x32xf32>
    %c0_211 = arith.constant 0 : index
    %c0_212 = arith.constant 0 : index
    %351 = vector.load %arg24[%c0_211, %c0_212] : memref<16x32xf32, #tpu.memory_space<vmem>>, vector<16x32xf32>
    tpu.vector_store %arg24[%c0_211, %c0_212], %350 {strides = array<i32>} : memref<16x32xf32, #tpu.memory_space<vmem>>, vector<16x32xf32>,
    %c1_i32 = arith.constant 1 : i32
    %352 = arith.cmpi eq, %arg1, %c1_i32 : i32
    %353 = arith.extui %352 : i1 to i32
    %c0_i32_213 = arith.constant 0 : i32
    %354 = arith.cmpi ne, %353, %c0_i32_213 : i32
    scf.if %354 {
      %cst_214 = arith.constant dense<0.000000e+00> : vector<32xf32>
      %355 = vector.multi_reduction <add>, %350, %cst_214 [0] : vector<16x32xf32> to vector<32xf32>
      %356 = vector.shape_cast %355 : vector<32xf32> to vector<1x32xf32>
      %cst_215 = arith.constant 1.600000e+01 : f32
      %357 = vector.broadcast %cst_215 : f32 to vector<1x32xf32>
      %358 = arith.divf %356, %357 : vector<1x32xf32>
      %c0_216 = arith.constant 0 : index
      %c0_217 = arith.constant 0 : index
      %359 = vector.load %arg21[%c0_216, %c0_217] : memref<32x128xf32, #tpu.memory_space<vmem>>, vector<32x128xf32>
      %cst_218 = arith.constant dense<0.000000e+00> : vector<1x128xf32>
      %360 = tpu.matmul %358, %359, %cst_218 {dimension_numbers = #tpu.dot_dimension_numbers<[1], [0], [0], [1], [0, 0, 1, 1], [], []>} : vector<1x32xf32>, vector<32x128xf32>, vector<1x128xf32> -> vector<1x128xf32>
      %c0_219 = arith.constant 0 : index
      %c0_220 = arith.constant 0 : index
      %361 = vector.load %arg22[%c0_219, %c0_220] : memref<1x128xf32, #tpu.memory_space<vmem>>, vector<1x128xf32>
      %362 = arith.addf %360, %361 : vector<1x128xf32>
      %c0_221 = arith.constant 0 : index
      %c0_222 = arith.constant 0 : index
      %c0_223 = arith.constant 0 : index
      %363 = vector.load %arg23[%c0_221, %c0_222, %c0_223] : memref<1x1x128xf32, #tpu.memory_space<vmem>>, vector<1x1x128xf32>
      %364 = vector.shape_cast %363 : vector<1x1x128xf32> to vector<1x128xf32>
      %365 = vector.shape_cast %362 : vector<1x128xf32> to vector<1x1x128xf32>
      tpu.vector_store %arg23[%c0_221, %c0_222, %c0_223], %365 {strides = array<i32>} : memref<1x1x128xf32, #tpu.memory_space<vmem>>, vector<1x1x128xf32>,
    } else {
    }
    return
  }
  func.func @transform_0(%arg0: i32, %arg1: i32) -> (i32, i32, i32) {
    %c0_i32 = arith.constant 0 : i32
    %c0_i32_0 = arith.constant 0 : i32
    %c0_i32_1 = arith.constant 0 : i32
    return %arg0, %c0_i32, %c0_i32_0 : i32, i32, i32
  }
  func.func @transform_1(%arg0: i32, %arg1: i32) -> (i32, i32, i32) {
    %c0_i32 = arith.constant 0 : i32
    %c0_i32_0 = arith.constant 0 : i32
    %c0_i32_1 = arith.constant 0 : i32
    %c0_i32_2 = arith.constant 0 : i32
    return %c0_i32, %c0_i32_0, %c0_i32_1 : i32, i32, i32
  }
  func.func @transform_2(%arg0: i32, %arg1: i32) -> (i32, i32) {
    %c0_i32 = arith.constant 0 : i32
    %c0_i32_0 = arith.constant 0 : i32
    %c0_i32_1 = arith.constant 0 : i32
    return %c0_i32, %c0_i32_0 : i32, i32
  }
  func.func @transform_3(%arg0: i32, %arg1: i32) -> (i32, i32, i32, i32) {
    %c0_i32 = arith.constant 0 : i32
    %c0_i32_0 = arith.constant 0 : i32
    %c0_i32_1 = arith.constant 0 : i32
    %c0_i32_2 = arith.constant 0 : i32
    return %arg1, %c0_i32, %c0_i32_0, %c0_i32_1 : i32, i32, i32, i32
  }
  func.func @transform_4(%arg0: i32, %arg1: i32) -> (i32, i32, i32, i32) {
    %c0_i32 = arith.constant 0 : i32
    %c0_i32_0 = arith.constant 0 : i32
    %c0_i32_1 = arith.constant 0 : i32
    %c0_i32_2 = arith.constant 0 : i32
    return %arg1, %c0_i32, %c0_i32_0, %c0_i32_1 : i32, i32, i32, i32
  }
  func.func @transform_5(%arg0: i32, %arg1: i32) -> (i32, i32, i32, i32) {
    %c0_i32 = arith.constant 0 : i32
    %c0_i32_0 = arith.constant 0 : i32
    %c0_i32_1 = arith.constant 0 : i32
    %c0_i32_2 = arith.constant 0 : i32
    return %arg1, %c0_i32, %c0_i32_0, %c0_i32_1 : i32, i32, i32, i32
  }
  func.func @transform_6(%arg0: i32, %arg1: i32) -> (i32, i32, i32, i32) {
    %c0_i32 = arith.constant 0 : i32
    %c0_i32_0 = arith.constant 0 : i32
    %c0_i32_1 = arith.constant 0 : i32
    %c0_i32_2 = arith.constant 0 : i32
    return %arg1, %c0_i32, %c0_i32_0, %c0_i32_1 : i32, i32, i32, i32
  }
  func.func @transform_7(%arg0: i32, %arg1: i32) -> (i32, i32, i32, i32) {
    %c0_i32 = arith.constant 0 : i32
    %c0_i32_0 = arith.constant 0 : i32
    %c0_i32_1 = arith.constant 0 : i32
    %c0_i32_2 = arith.constant 0 : i32
    return %arg1, %c0_i32, %c0_i32_0, %c0_i32_1 : i32, i32, i32, i32
  }
  func.func @transform_8(%arg0: i32, %arg1: i32) -> (i32, i32, i32, i32) {
    %c0_i32 = arith.constant 0 : i32
    %c0_i32_0 = arith.constant 0 : i32
    %c0_i32_1 = arith.constant 0 : i32
    %c0_i32_2 = arith.constant 0 : i32
    return %arg1, %c0_i32, %c0_i32_0, %c0_i32_1 : i32, i32, i32, i32
  }
  func.func @transform_9(%arg0: i32, %arg1: i32) -> (i32, i32, i32, i32) {
    %c0_i32 = arith.constant 0 : i32
    %c0_i32_0 = arith.constant 0 : i32
    %c0_i32_1 = arith.constant 0 : i32
    %c0_i32_2 = arith.constant 0 : i32
    return %arg1, %c0_i32, %c0_i32_0, %c0_i32_1 : i32, i32, i32, i32
  }
  func.func @transform_10(%arg0: i32, %arg1: i32) -> (i32, i32, i32) {
    %c0_i32 = arith.constant 0 : i32
    %c0_i32_0 = arith.constant 0 : i32
    %c0_i32_1 = arith.constant 0 : i32
    return %arg1, %c0_i32, %c0_i32_0 : i32, i32, i32
  }
  func.func @transform_11(%arg0: i32, %arg1: i32) -> (i32, i32, i32) {
    %c0_i32 = arith.constant 0 : i32
    %c0_i32_0 = arith.constant 0 : i32
    %c0_i32_1 = arith.constant 0 : i32
    return %arg1, %c0_i32, %c0_i32_0 : i32, i32, i32
  }
  func.func @transform_12(%arg0: i32, %arg1: i32) -> (i32, i32, i32) {
    %c0_i32 = arith.constant 0 : i32
    %c0_i32_0 = arith.constant 0 : i32
    %c0_i32_1 = arith.constant 0 : i32
    return %arg1, %c0_i32, %c0_i32_0 : i32, i32, i32
  }
  func.func @transform_13(%arg0: i32, %arg1: i32) -> (i32, i32, i32) {
    %c0_i32 = arith.constant 0 : i32
    %c0_i32_0 = arith.constant 0 : i32
    %c0_i32_1 = arith.constant 0 : i32
    return %arg1, %c0_i32, %c0_i32_0 : i32, i32, i32
  }
  func.func @transform_14(%arg0: i32, %arg1: i32) -> (i32, i32, i32) {
    %c0_i32 = arith.constant 0 : i32
    %c0_i32_0 = arith.constant 0 : i32
    %c0_i32_1 = arith.constant 0 : i32
    return %arg1, %c0_i32, %c0_i32_0 : i32, i32, i32
  }
  func.func @transform_15(%arg0: i32, %arg1: i32) -> (i32, i32, i32) {
    %c0_i32 = arith.constant 0 : i32
    %c0_i32_0 = arith.constant 0 : i32
    %c0_i32_1 = arith.constant 0 : i32
    return %arg1, %c0_i32, %c0_i32_0 : i32, i32, i32
  }
  func.func @transform_16(%arg0: i32, %arg1: i32) -> (i32, i32, i32) {
    %c0_i32 = arith.constant 0 : i32
    %c0_i32_0 = arith.constant 0 : i32
    %c0_i32_1 = arith.constant 0 : i32
    return %arg1, %c0_i32, %c0_i32_0 : i32, i32, i32
  }
  func.func @transform_17(%arg0: i32, %arg1: i32) -> (i32, i32, i32) {
    %c0_i32 = arith.constant 0 : i32
    %c0_i32_0 = arith.constant 0 : i32
    %c0_i32_1 = arith.constant 0 : i32
    return %arg1, %c0_i32, %c0_i32_0 : i32, i32, i32
  }
  func.func @transform_18(%arg0: i32, %arg1: i32) -> (i32, i32, i32) {
    %c0_i32 = arith.constant 0 : i32
    %c0_i32_0 = arith.constant 0 : i32
    %c0_i32_1 = arith.constant 0 : i32
    return %arg1, %c0_i32, %c0_i32_0 : i32, i32, i32
  }
  func.func @transform_19(%arg0: i32, %arg1: i32) -> (i32, i32) {
    %c0_i32 = arith.constant 0 : i32
    %c0_i32_0 = arith.constant 0 : i32
    %c0_i32_1 = arith.constant 0 : i32
    return %c0_i32, %c0_i32_0 : i32, i32
  }
  func.func @transform_20(%arg0: i32, %arg1: i32) -> (i32, i32) {
    %c0_i32 = arith.constant 0 : i32
    %c0_i32_0 = arith.constant 0 : i32
    %c0_i32_1 = arith.constant 0 : i32
    return %c0_i32, %c0_i32_0 : i32, i32
  }
  func.func @transform_21(%arg0: i32, %arg1: i32) -> (i32, i32, i32) {
    %c0_i32 = arith.constant 0 : i32
    %c0_i32_0 = arith.constant 0 : i32
    %c0_i32_1 = arith.constant 0 : i32
    return %arg0, %c0_i32, %c0_i32_0 : i32, i32, i32
  }
}

</mosaic_0001>

<llo_original>
// kernel: ecg_transformer_forward.1
$region0: #{ecg_transformer_forward.1}
  #allocation0 [shape = 'u32[]', space=smem, size = 0x4, offset = 0x4, fixed_abs, tag = 'smem constant byte address 0x4 - core index']
  #allocation1 [shape = 'u32[144,128]{1,0:T(1,128)}', space=vmem, size = 0x12000, scoped, tag = 'internal scratch']
  #allocation2 [shape = 'f32[16,32]{1,0:T(8,128)}', space=vmem, size = 0x2000, scoped, tag = 'scratch operand']
  %s0 = inlined_call_operand.vmem [shape: f32[2,18,4], index: 0, kind: input, shape index: {}]
  %s1 = inlined_call_operand.vmem [shape: f32[3,4,32], index: 1, kind: input, shape index: {}]
  %s2 = inlined_call_operand.vmem [shape: f32[16,32], index: 2, kind: input, shape index: {}]
  %s3 = inlined_call_operand.vmem [shape: f32[2,4,32,8], index: 3, kind: input, shape index: {}]
  %s4 = inlined_call_operand.vmem [shape: f32[2,4,1,8], index: 4, kind: input, shape index: {}]
  %s5 = inlined_call_operand.vmem [shape: f32[2,4,32,8], index: 5, kind: input, shape index: {}]
  %s6 = inlined_call_operand.vmem [shape: f32[2,4,1,8], index: 6, kind: input, shape index: {}]
  %s7 = inlined_call_operand.vmem [shape: f32[2,4,32,8], index: 7, kind: input, shape index: {}]
  %s8 = inlined_call_operand.vmem [shape: f32[2,4,1,8], index: 8, kind: input, shape index: {}]
  %s9 = inlined_call_operand.vmem [shape: f32[2,4,8,32], index: 9, kind: input, shape index: {}]
  %s10 = inlined_call_operand.vmem [shape: f32[2,1,32], index: 10, kind: input, shape index: {}]
  %s11 = inlined_call_operand.vmem [shape: f32[2,1,32], index: 11, kind: input, shape index: {}]
  %s12 = inlined_call_operand.vmem [shape: f32[2,1,32], index: 12, kind: input, shape index: {}]
  %s13 = inlined_call_operand.vmem [shape: f32[2,32,128], index: 13, kind: input, shape index: {}]
  %s14 = inlined_call_operand.vmem [shape: f32[2,1,128], index: 14, kind: input, shape index: {}]
  %s15 = inlined_call_operand.vmem [shape: f32[2,128,32], index: 15, kind: input, shape index: {}]
  %s16 = inlined_call_operand.vmem [shape: f32[2,1,32], index: 16, kind: input, shape index: {}]
  %s17 = inlined_call_operand.vmem [shape: f32[2,1,32], index: 17, kind: input, shape index: {}]
  %s18 = inlined_call_operand.vmem [shape: f32[2,1,32], index: 18, kind: input, shape index: {}]
  %s19 = inlined_call_operand.vmem [shape: f32[32,128], index: 19, kind: input, shape index: {}]
  %s20 = inlined_call_operand.vmem [shape: f32[1,128], index: 20, kind: input, shape index: {}]
  %s21 = inlined_call_operand.hbm [shape: f32[2,1,128], index: 21, kind: output, shape index: {}]
  %s22 = sld [smem:[#allocation0]]
  $region125: #{ecg_transformer_forward.1} parent=0
    _
  %s24 = ssub.s32 1, %s22
  %s25 = scalar_select 0, %s24, %s22
  $region1: #{ecg_transformer_forward.1} parent=0
    #allocation3 [shape = 'u8[1024]{0}', space=vmem, size = 0x400, scoped, tag = 'output window, operand 0']
    #allocation4 [shape = 's32[2]{0}', space=sflag, size = 0x8, scoped, tag = 'scoped memory for ecg_transformer_forward.1']
    %26 = vsyncpa [#allocation4], 0
    %s27 = scalar_lea.sflag [#allocation4], 1
    %28 = vsyncpa %s27, 0
    loop: start=0, step=1, limit=6
    $region2: #{ecg_transformer_forward.1} parent=1 // loop_pre_header
      _
    $region3: #{ecg_transformer_forward.1} parent=1 // loop_header
      %s30 = sphi 0, %s34
      %p31 = scmp.ge.s32.totalorder %s30, 6
      %s37 = sphi 0, %s49
      %s38 = sphi 0, %s45
      %s39 = sphi 0, %s37
      %s40 = sphi 0, %s38
      %s41 = sphi 0, %s39
      %s42 = sphi 0, %s40
      %s52 = sphi 0, %s54
      %s55 = sphi 0, %s52
      %s56 = sphi 0, %s55
      %s72 = sphi 0, %s56
      %s76 = sphi 0, %s76
      %s78 = sphi 0, %s76
      %s79 = sphi 0, %s78
      %s93 = sphi 0, %s79
      %s97 = sphi 0, %s97
      %s99 = sphi 0, %s97
      %s100 = sphi 0, %s99
      %s114 = sphi 0, %s100
      %s120 = sphi 0, %s122
      %s123 = sphi 0, %s120
      %s124 = sphi 0, %s123
      %s140 = sphi 0, %s124
      %s146 = sphi 0, %s148
      %s149 = sphi 0, %s146
      %s150 = sphi 0, %s149
      %s166 = sphi 0, %s150
      %s172 = sphi 0, %s174
      %s175 = sphi 0, %s172
      %s176 = sphi 0, %s175
      %s192 = sphi 0, %s176
      %s198 = sphi 0, %s200
      %s201 = sphi 0, %s198
      %s202 = sphi 0, %s201
      %s218 = sphi 0, %s202
      %s224 = sphi 0, %s226
      %s227 = sphi 0, %s224
      %s228 = sphi 0, %s227
      %s244 = sphi 0, %s228
      %s250 = sphi 0, %s252
      %s253 = sphi 0, %s250
      %s254 = sphi 0, %s253
      %s270 = sphi 0, %s254
      %s276 = sphi 0, %s278
      %s279 = sphi 0, %s276
      %s280 = sphi 0, %s279
      %s296 = sphi 0, %s280
      %s302 = sphi 0, %s304
      %s305 = sphi 0, %s302
      %s306 = sphi 0, %s305
      %s322 = sphi 0, %s306
      %s328 = sphi 0, %s330
      %s331 = sphi 0, %s328
      %s332 = sphi 0, %s331
      %s348 = sphi 0, %s332
      %s354 = sphi 0, %s356
      %s357 = sphi 0, %s354
      %s358 = sphi 0, %s357
      %s374 = sphi 0, %s358
      %s380 = sphi 0, %s382
      %s383 = sphi 0, %s380
      %s384 = sphi 0, %s383
      %s400 = sphi 0, %s384
      %s406 = sphi 0, %s408
      %s409 = sphi 0, %s406
      %s410 = sphi 0, %s409
      %s426 = sphi 0, %s410
      %s432 = sphi 0, %s434
      %s435 = sphi 0, %s432
      %s436 = sphi 0, %s435
      %s452 = sphi 0, %s436
      %s458 = sphi 0, %s460
      %s461 = sphi 0, %s458
      %s462 = sphi 0, %s461
      %s478 = sphi 0, %s462
      %s484 = sphi 0, %s486
      %s487 = sphi 0, %s484
      %s488 = sphi 0, %s487
      %s504 = sphi 0, %s488
      %s510 = sphi 0, %s512
      %s513 = sphi 0, %s510
      %s514 = sphi 0, %s513
      %s530 = sphi 0, %s514
      %s534 = sphi 0, %s534
      %s536 = sphi 0, %s534
      %s537 = sphi 0, %s536
      %s551 = sphi 0, %s537
      %s555 = sphi 0, %s555
      %s557 = sphi 0, %s555
      %s558 = sphi 0, %s557
      %s572 = sphi 0, %s558
      %s578 = sphi 0, %s580
      %s581 = sphi 0, %s578
      %s582 = sphi 0, %s581
      %s598 = sphi 0, %s582
    $region4: #{ecg_transformer_forward.1} parent=1 // loop_header_branch
      %33 = sbr.rel (%p31) target = $region8
    $region5: #{ecg_transformer_forward.1} parent=1 // loop_body
      %s35 = ssub.s32 %s30, 1
      %s36 = ssub.s32 %s30, 2
      %s43 = sadd.s32 1, %s38
      %p44 = scmp.ge.s32.totalorder %s43, 2
      %s45 = scalar_select %p44, 0, %s43
      %s46 = sadd.s32 1, %s37
      %s47 = scalar_select %p44, %s46, %s37
      %p48 = scmp.ge.s32.totalorder %s47, 2
      %s49 = scalar_select %p48, 0, %s47
      %s50 = ssub.s32 %s37, %s49
      %p51 = scmp.eq.s32.totalorder %s50, 0
      %s53 = sadd.s32 %s52, 1
      %s54 = scalar_select %p51, %s52, %s53
      %p57 = pneg %p51
      %p58 = scmp.eq.s32.totalorder %s30, 3
      %p59 = por %p57, %p58
      %p60 = scmp.ne.s32.totalorder %s52, %s55
      %p61 = scmp.eq.s32.totalorder %s30, 0
      %p62 = por %p60, %p61
      %p63 = scmp.ne.s32.totalorder %s52, %s55
      %p64 = scmp.eq.s32.totalorder %s35, 3
      %p65 = por %p63, %p64
      %p66 = scmp.ne.s32.totalorder %s55, %s56
      %p67 = scmp.eq.s32.totalorder %s35, 0
      %p68 = por %p66, %p67
      %p69 = scmp.ne.s32.totalorder %s55, %s56
      %p70 = scmp.eq.s32.totalorder %s36, 3
      %p71 = por %p69, %p70
      %p73 = scmp.ne.s32.totalorder %s56, %s72
      %p74 = scmp.eq.s32.totalorder %s36, 0
      %p75 = por %p73, %p74
      %s77 = sadd.s32 %s76, 1
      %p80 = scmp.eq.s32.totalorder %s30, 3
      %p81 = scmp.ne.s32.totalorder %s76, %s78
      %p82 = scmp.eq.s32.totalorder %s30, 0
      %p83 = por %p81, %p82
      %p84 = scmp.ne.s32.totalorder %s76, %s78
      %p85 = scmp.eq.s32.totalorder %s35, 3
      %p86 = por %p84, %p85
      %p87 = scmp.ne.s32.totalorder %s78, %s79
      %p88 = scmp.eq.s32.totalorder %s35, 0
      %p89 = por %p87, %p88
      %p90 = scmp.ne.s32.totalorder %s78, %s79
      %p91 = scmp.eq.s32.totalorder %s36, 3
      %p92 = por %p90, %p91
      %p94 = scmp.ne.s32.totalorder %s79, %s93
      %p95 = scmp.eq.s32.totalorder %s36, 0
      %p96 = por %p94, %p95
      %s98 = sadd.s32 %s97, 1
      %p101 = scmp.eq.s32.totalorder %s30, 3
      %p102 = scmp.ne.s32.totalorder %s97, %s99
      %p103 = scmp.eq.s32.totalorder %s30, 0
      %p104 = por %p102, %p103
      %p105 = scmp.ne.s32.totalorder %s97, %s99
      %p106 = scmp.eq.s32.totalorder %s35, 3
      %p107 = por %p105, %p106
      %p108 = scmp.ne.s32.totalorder %s99, %s100
      %p109 = scmp.eq.s32.totalorder %s35, 0
      %p110 = por %p108, %p109
      %p111 = scmp.ne.s32.totalorder %s99, %s100
      %p112 = scmp.eq.s32.totalorder %s36, 3
      %p113 = por %p111, %p112
      %p115 = scmp.ne.s32.totalorder %s100, %s114
      %p116 = scmp.eq.s32.totalorder %s36, 0
      %p117 = por %p115, %p116
      %s118 = ssub.s32 %s38, %s45
      %p119 = scmp.eq.s32.totalorder %s118, 0
      %s121 = sadd.s32 %s120, 1
      %s122 = scalar_select %p119, %s120, %s121
      %p125 = pneg %p119
      %p126 = scmp.eq.s32.totalorder %s30, 3
      %p127 = por %p125, %p126
      %p128 = scmp.ne.s32.totalorder %s120, %s123
      %p129 = scmp.eq.s32.totalorder %s30, 0
      %p130 = por %p128, %p129
      %p131 = scmp.ne.s32.totalorder %s120, %s123
      %p132 = scmp.eq.s32.totalorder %s35, 3
      %p133 = por %p131, %p132
      %p134 = scmp.ne.s32.totalorder %s123, %s124
      %p135 = scmp.eq.s32.totalorder %s35, 0
      %p136 = por %p134, %p135
      %p137 = scmp.ne.s32.totalorder %s123, %s124
      %p138 = scmp.eq.s32.totalorder %s36, 3
      %p139 = por %p137, %p138
      %p141 = scmp.ne.s32.totalorder %s124, %s140
      %p142 = scmp.eq.s32.totalorder %s36, 0
      %p143 = por %p141, %p142
      %s144 = ssub.s32 %s38, %s45
      %p145 = scmp.eq.s32.totalorder %s144, 0
      %s147 = sadd.s32 %s146, 1
      %s148 = scalar_select %p145, %s146, %s147
      %p151 = pneg %p145
      %p152 = scmp.eq.s32.totalorder %s30, 3
      %p153 = por %p151, %p152
      %p154 = scmp.ne.s32.totalorder %s146, %s149
      %p155 = scmp.eq.s32.totalorder %s30, 0
      %p156 = por %p154, %p155
      %p157 = scmp.ne.s32.totalorder %s146, %s149
      %p158 = scmp.eq.s32.totalorder %s35, 3
      %p159 = por %p157, %p158
      %p160 = scmp.ne.s32.totalorder %s149, %s150
      %p161 = scmp.eq.s32.totalorder %s35, 0
      %p162 = por %p160, %p161
      %p163 = scmp.ne.s32.totalorder %s149, %s150
      %p164 = scmp.eq.s32.totalorder %s36, 3
      %p165 = por %p163, %p164
      %p167 = scmp.ne.s32.totalorder %s150, %s166
      %p168 = scmp.eq.s32.totalorder %s36, 0
      %p169 = por %p167, %p168
      %s170 = ssub.s32 %s38, %s45
      %p171 = scmp.eq.s32.totalorder %s170, 0
      %s173 = sadd.s32 %s172, 1
      %s174 = scalar_select %p171, %s172, %s173
      %p177 = pneg %p171
      %p178 = scmp.eq.s32.totalorder %s30, 3
      %p179 = por %p177, %p178
      %p180 = scmp.ne.s32.totalorder %s172, %s175
      %p181 = scmp.eq.s32.totalorder %s30, 0
      %p182 = por %p180, %p181
      %p183 = scmp.ne.s32.totalorder %s172, %s175
      %p184 = scmp.eq.s32.totalorder %s35, 3
      %p185 = por %p183, %p184
      %p186 = scmp.ne.s32.totalorder %s175, %s176
      %p187 = scmp.eq.s32.totalorder %s35, 0
      %p188 = por %p186, %p187
      %p189 = scmp.ne.s32.totalorder %s175, %s176
      %p190 = scmp.eq.s32.totalorder %s36, 3
      %p191 = por %p189, %p190
      %p193 = scmp.ne.s32.totalorder %s176, %s192
      %p194 = scmp.eq.s32.totalorder %s36, 0
      %p195 = por %p193, %p194
      %s196 = ssub.s32 %s38, %s45
      %p197 = scmp.eq.s32.totalorder %s196, 0
      %s199 = sadd.s32 %s198, 1
      %s200 = scalar_select %p197, %s198, %s199
      %p203 = pneg %p197
      %p204 = scmp.eq.s32.totalorder %s30, 3
      %p205 = por %p203, %p204
      %p206 = scmp.ne.s32.totalorder %s198, %s201
      %p207 = scmp.eq.s32.totalorder %s30, 0
      %p208 = por %p206, %p207
      %p209 = scmp.ne.s32.totalorder %s198, %s201
      %p210 = scmp.eq.s32.totalorder %s35, 3
      %p211 = por %p209, %p210
      %p212 = scmp.ne.s32.totalorder %s201, %s202
      %p213 = scmp.eq.s32.totalorder %s35, 0
      %p214 = por %p212, %p213
      %p215 = scmp.ne.s32.totalorder %s201, %s202
      %p216 = scmp.eq.s32.totalorder %s36, 3
      %p217 = por %p215, %p216
      %p219 = scmp.ne.s32.totalorder %s202, %s218
      %p220 = scmp.eq.s32.totalorder %s36, 0
      %p221 = por %p219, %p220
      %s222 = ssub.s32 %s38, %s45
      %p223 = scmp.eq.s32.totalorder %s222, 0
      %s225 = sadd.s32 %s224, 1
      %s226 = scalar_select %p223, %s224, %s225
      %p229 = pneg %p223
      %p230 = scmp.eq.s32.totalorder %s30, 3
      %p231 = por %p229, %p230
      %p232 = scmp.ne.s32.totalorder %s224, %s227
      %p233 = scmp.eq.s32.totalorder %s30, 0
      %p234 = por %p232, %p233
      %p235 = scmp.ne.s32.totalorder %s224, %s227
      %p236 = scmp.eq.s32.totalorder %s35, 3
      %p237 = por %p235, %p236
      %p238 = scmp.ne.s32.totalorder %s227, %s228
      %p239 = scmp.eq.s32.totalorder %s35, 0
      %p240 = por %p238, %p239
      %p241 = scmp.ne.s32.totalorder %s227, %s228
      %p242 = scmp.eq.s32.totalorder %s36, 3
      %p243 = por %p241, %p242
      %p245 = scmp.ne.s32.totalorder %s228, %s244
      %p246 = scmp.eq.s32.totalorder %s36, 0
      %p247 = por %p245, %p246
      %s248 = ssub.s32 %s38, %s45
      %p249 = scmp.eq.s32.totalorder %s248, 0
      %s251 = sadd.s32 %s250, 1
      %s252 = scalar_select %p249, %s250, %s251
      %p255 = pneg %p249
      %p256 = scmp.eq.s32.totalorder %s30, 3
      %p257 = por %p255, %p256
      %p258 = scmp.ne.s32.totalorder %s250, %s253
      %p259 = scmp.eq.s32.totalorder %s30, 0
      %p260 = por %p258, %p259
      %p261 = scmp.ne.s32.totalorder %s250, %s253
      %p262 = scmp.eq.s32.totalorder %s35, 3
      %p263 = por %p261, %p262
      %p264 = scmp.ne.s32.totalorder %s253, %s254
      %p265 = scmp.eq.s32.totalorder %s35, 0
      %p266 = por %p264, %p265
      %p267 = scmp.ne.s32.totalorder %s253, %s254
      %p268 = scmp.eq.s32.totalorder %s36, 3
      %p269 = por %p267, %p268
      %p271 = scmp.ne.s32.totalorder %s254, %s270
      %p272 = scmp.eq.s32.totalorder %s36, 0
      %p273 = por %p271, %p272
      %s274 = ssub.s32 %s38, %s45
      %p275 = scmp.eq.s32.totalorder %s274, 0
      %s277 = sadd.s32 %s276, 1
      %s278 = scalar_select %p275, %s276, %s277
      %p281 = pneg %p275
      %p282 = scmp.eq.s32.totalorder %s30, 3
      %p283 = por %p281, %p282
      %p284 = scmp.ne.s32.totalorder %s276, %s279
      %p285 = scmp.eq.s32.totalorder %s30, 0
      %p286 = por %p284, %p285
      %p287 = scmp.ne.s32.totalorder %s276, %s279
      %p288 = scmp.eq.s32.totalorder %s35, 3
      %p289 = por %p287, %p288
      %p290 = scmp.ne.s32.totalorder %s279, %s280
      %p291 = scmp.eq.s32.totalorder %s35, 0
      %p292 = por %p290, %p291
      %p293 = scmp.ne.s32.totalorder %s279, %s280
      %p294 = scmp.eq.s32.totalorder %s36, 3
      %p295 = por %p293, %p294
      %p297 = scmp.ne.s32.totalorder %s280, %s296
      %p298 = scmp.eq.s32.totalorder %s36, 0
      %p299 = por %p297, %p298
      %s300 = ssub.s32 %s38, %s45
      %p301 = scmp.eq.s32.totalorder %s300, 0
      %s303 = sadd.s32 %s302, 1
      %s304 = scalar_select %p301, %s302, %s303
      %p307 = pneg %p301
      %p308 = scmp.eq.s32.totalorder %s30, 3
      %p309 = por %p307, %p308
      %p310 = scmp.ne.s32.totalorder %s302, %s305
      %p311 = scmp.eq.s32.totalorder %s30, 0
      %p312 = por %p310, %p311
      %p313 = scmp.ne.s32.totalorder %s302, %s305
      %p314 = scmp.eq.s32.totalorder %s35, 3
      %p315 = por %p313, %p314
      %p316 = scmp.ne.s32.totalorder %s305, %s306
      %p317 = scmp.eq.s32.totalorder %s35, 0
      %p318 = por %p316, %p317
      %p319 = scmp.ne.s32.totalorder %s305, %s306
      %p320 = scmp.eq.s32.totalorder %s36, 3
      %p321 = por %p319, %p320
      %p323 = scmp.ne.s32.totalorder %s306, %s322
      %p324 = scmp.eq.s32.totalorder %s36, 0
      %p325 = por %p323, %p324
      %s326 = ssub.s32 %s38, %s45
      %p327 = scmp.eq.s32.totalorder %s326, 0
      %s329 = sadd.s32 %s328, 1
      %s330 = scalar_select %p327, %s328, %s329
      %p333 = pneg %p327
      %p334 = scmp.eq.s32.totalorder %s30, 3
      %p335 = por %p333, %p334
      %p336 = scmp.ne.s32.totalorder %s328, %s331
      %p337 = scmp.eq.s32.totalorder %s30, 0
      %p338 = por %p336, %p337
      %p339 = scmp.ne.s32.totalorder %s328, %s331
      %p340 = scmp.eq.s32.totalorder %s35, 3
      %p341 = por %p339, %p340
      %p342 = scmp.ne.s32.totalorder %s331, %s332
      %p343 = scmp.eq.s32.totalorder %s35, 0
      %p344 = por %p342, %p343
      %p345 = scmp.ne.s32.totalorder %s331, %s332
      %p346 = scmp.eq.s32.totalorder %s36, 3
      %p347 = por %p345, %p346
      %p349 = scmp.ne.s32.totalorder %s332, %s348
      %p350 = scmp.eq.s32.totalorder %s36, 0
      %p351 = por %p349, %p350
      %s352 = ssub.s32 %s38, %s45
      %p353 = scmp.eq.s32.totalorder %s352, 0
      %s355 = sadd.s32 %s354, 1
      %s356 = scalar_select %p353, %s354, %s355
      %p359 = pneg %p353
      %p360 = scmp.eq.s32.totalorder %s30, 3
      %p361 = por %p359, %p360
      %p362 = scmp.ne.s32.totalorder %s354, %s357
      %p363 = scmp.eq.s32.totalorder %s30, 0
      %p364 = por %p362, %p363
      %p365 = scmp.ne.s32.totalorder %s354, %s357
      %p366 = scmp.eq.s32.totalorder %s35, 3
      %p367 = por %p365, %p366
      %p368 = scmp.ne.s32.totalorder %s357, %s358
      %p369 = scmp.eq.s32.totalorder %s35, 0
      %p370 = por %p368, %p369
      %p371 = scmp.ne.s32.totalorder %s357, %s358
      %p372 = scmp.eq.s32.totalorder %s36, 3
      %p373 = por %p371, %p372
      %p375 = scmp.ne.s32.totalorder %s358, %s374
      %p376 = scmp.eq.s32.totalorder %s36, 0
      %p377 = por %p375, %p376
      %s378 = ssub.s32 %s38, %s45
      %p379 = scmp.eq.s32.totalorder %s378, 0
      %s381 = sadd.s32 %s380, 1
      %s382 = scalar_select %p379, %s380, %s381
      %p385 = pneg %p379
      %p386 = scmp.eq.s32.totalorder %s30, 3
      %p387 = por %p385, %p386
      %p388 = scmp.ne.s32.totalorder %s380, %s383
      %p389 = scmp.eq.s32.totalorder %s30, 0
      %p390 = por %p388, %p389
      %p391 = scmp.ne.s32.totalorder %s380, %s383
      %p392 = scmp.eq.s32.totalorder %s35, 3
      %p393 = por %p391, %p392
      %p394 = scmp.ne.s32.totalorder %s383, %s384
      %p395 = scmp.eq.s32.totalorder %s35, 0
      %p396 = por %p394, %p395
      %p397 = scmp.ne.s32.totalorder %s383, %s384
      %p398 = scmp.eq.s32.totalorder %s36, 3
      %p399 = por %p397, %p398
      %p401 = scmp.ne.s32.totalorder %s384, %s400
      %p402 = scmp.eq.s32.totalorder %s36, 0
      %p403 = por %p401, %p402
      %s404 = ssub.s32 %s38, %s45
      %p405 = scmp.eq.s32.totalorder %s404, 0
      %s407 = sadd.s32 %s406, 1
      %s408 = scalar_select %p405, %s406, %s407
      %p411 = pneg %p405
      %p412 = scmp.eq.s32.totalorder %s30, 3
      %p413 = por %p411, %p412
      %p414 = scmp.ne.s32.totalorder %s406, %s409
      %p415 = scmp.eq.s32.totalorder %s30, 0
      %p416 = por %p414, %p415
      %p417 = scmp.ne.s32.totalorder %s406, %s409
      %p418 = scmp.eq.s32.totalorder %s35, 3
      %p419 = por %p417, %p418
      %p420 = scmp.ne.s32.totalorder %s409, %s410
      %p421 = scmp.eq.s32.totalorder %s35, 0
      %p422 = por %p420, %p421
      %p423 = scmp.ne.s32.totalorder %s409, %s410
      %p424 = scmp.eq.s32.totalorder %s36, 3
      %p425 = por %p423, %p424
      %p427 = scmp.ne.s32.totalorder %s410, %s426
      %p428 = scmp.eq.s32.totalorder %s36, 0
      %p429 = por %p427, %p428
      %s430 = ssub.s32 %s38, %s45
      %p431 = scmp.eq.s32.totalorder %s430, 0
      %s433 = sadd.s32 %s432, 1
      %s434 = scalar_select %p431, %s432, %s433
      %p437 = pneg %p431
      %p438 = scmp.eq.s32.totalorder %s30, 3
      %p439 = por %p437, %p438
      %p440 = scmp.ne.s32.totalorder %s432, %s435
      %p441 = scmp.eq.s32.totalorder %s30, 0
      %p442 = por %p440, %p441
      %p443 = scmp.ne.s32.totalorder %s432, %s435
      %p444 = scmp.eq.s32.totalorder %s35, 3
      %p445 = por %p443, %p444
      %p446 = scmp.ne.s32.totalorder %s435, %s436
      %p447 = scmp.eq.s32.totalorder %s35, 0
      %p448 = por %p446, %p447
      %p449 = scmp.ne.s32.totalorder %s435, %s436
      %p450 = scmp.eq.s32.totalorder %s36, 3
      %p451 = por %p449, %p450
      %p453 = scmp.ne.s32.totalorder %s436, %s452
      %p454 = scmp.eq.s32.totalorder %s36, 0
      %p455 = por %p453, %p454
      %s456 = ssub.s32 %s38, %s45
      %p457 = scmp.eq.s32.totalorder %s456, 0
      %s459 = sadd.s32 %s458, 1
      %s460 = scalar_select %p457, %s458, %s459
      %p463 = pneg %p457
      %p464 = scmp.eq.s32.totalorder %s30, 3
      %p465 = por %p463, %p464
      %p466 = scmp.ne.s32.totalorder %s458, %s461
      %p467 = scmp.eq.s32.totalorder %s30, 0
      %p468 = por %p466, %p467
      %p469 = scmp.ne.s32.totalorder %s458, %s461
      %p470 = scmp.eq.s32.totalorder %s35, 3
      %p471 = por %p469, %p470
      %p472 = scmp.ne.s32.totalorder %s461, %s462
      %p473 = scmp.eq.s32.totalorder %s35, 0
      %p474 = por %p472, %p473
      %p475 = scmp.ne.s32.totalorder %s461, %s462
      %p476 = scmp.eq.s32.totalorder %s36, 3
      %p477 = por %p475, %p476
      %p479 = scmp.ne.s32.totalorder %s462, %s478
      %p480 = scmp.eq.s32.totalorder %s36, 0
      %p481 = por %p479, %p480
      %s482 = ssub.s32 %s38, %s45
      %p483 = scmp.eq.s32.totalorder %s482, 0
      %s485 = sadd.s32 %s484, 1
      %s486 = scalar_select %p483, %s484, %s485
      %p489 = pneg %p483
      %p490 = scmp.eq.s32.totalorder %s30, 3
      %p491 = por %p489, %p490
      %p492 = scmp.ne.s32.totalorder %s484, %s487
      %p493 = scmp.eq.s32.totalorder %s30, 0
      %p494 = por %p492, %p493
      %p495 = scmp.ne.s32.totalorder %s484, %s487
      %p496 = scmp.eq.s32.totalorder %s35, 3
      %p497 = por %p495, %p496
      %p498 = scmp.ne.s32.totalorder %s487, %s488
      %p499 = scmp.eq.s32.totalorder %s35, 0
      %p500 = por %p498, %p499
      %p501 = scmp.ne.s32.totalorder %s487, %s488
      %p502 = scmp.eq.s32.totalorder %s36, 3
      %p503 = por %p501, %p502
      %p505 = scmp.ne.s32.totalorder %s488, %s504
      %p506 = scmp.eq.s32.totalorder %s36, 0
      %p507 = por %p505, %p506
      %s508 = ssub.s32 %s38, %s45
      %p509 = scmp.eq.s32.totalorder %s508, 0
      %s511 = sadd.s32 %s510, 1
      %s512 = scalar_select %p509, %s510, %s511
      %p515 = pneg %p509
      %p516 = scmp.eq.s32.totalorder %s30, 3
      %p517 = por %p515, %p516
      %p518 = scmp.ne.s32.totalorder %s510, %s513
      %p519 = scmp.eq.s32.totalorder %s30, 0
      %p520 = por %p518, %p519
      %p521 = scmp.ne.s32.totalorder %s510, %s513
      %p522 = scmp.eq.s32.totalorder %s35, 3
      %p523 = por %p521, %p522
      %p524 = scmp.ne.s32.totalorder %s513, %s514
      %p525 = scmp.eq.s32.totalorder %s35, 0
      %p526 = por %p524, %p525
      %p527 = scmp.ne.s32.totalorder %s513, %s514
      %p528 = scmp.eq.s32.totalorder %s36, 3
      %p529 = por %p527, %p528
      %p531 = scmp.ne.s32.totalorder %s514, %s530
      %p532 = scmp.eq.s32.totalorder %s36, 0
      %p533 = por %p531, %p532
      %s535 = sadd.s32 %s534, 1
      %p538 = scmp.eq.s32.totalorder %s30, 3
      %p539 = scmp.ne.s32.totalorder %s534, %s536
      %p540 = scmp.eq.s32.totalorder %s30, 0
      %p541 = por %p539, %p540
      %p542 = scmp.ne.s32.totalorder %s534, %s536
      %p543 = scmp.eq.s32.totalorder %s35, 3
      %p544 = por %p542, %p543
      %p545 = scmp.ne.s32.totalorder %s536, %s537
      %p546 = scmp.eq.s32.totalorder %s35, 0
      %p547 = por %p545, %p546
      %p548 = scmp.ne.s32.totalorder %s536, %s537
      %p549 = scmp.eq.s32.totalorder %s36, 3
      %p550 = por %p548, %p549
      %p552 = scmp.ne.s32.totalorder %s537, %s551
      %p553 = scmp.eq.s32.totalorder %s36, 0
      %p554 = por %p552, %p553
      %s556 = sadd.s32 %s555, 1
      %p559 = scmp.eq.s32.totalorder %s30, 3
      %p560 = scmp.ne.s32.totalorder %s555, %s557
      %p561 = scmp.eq.s32.totalorder %s30, 0
      %p562 = por %p560, %p561
      %p563 = scmp.ne.s32.totalorder %s555, %s557
      %p564 = scmp.eq.s32.totalorder %s35, 3
      %p565 = por %p563, %p564
      %p566 = scmp.ne.s32.totalorder %s557, %s558
      %p567 = scmp.eq.s32.totalorder %s35, 0
      %p568 = por %p566, %p567
      %p569 = scmp.ne.s32.totalorder %s557, %s558
      %p570 = scmp.eq.s32.totalorder %s36, 3
      %p571 = por %p569, %p570
      %p573 = scmp.ne.s32.totalorder %s558, %s572
      %p574 = scmp.eq.s32.totalorder %s36, 0
      %p575 = por %p573, %p574
      %s576 = ssub.s32 %s37, %s49
      %p577 = scmp.eq.s32.totalorder %s576, 0
      %s579 = sadd.s32 %s578, 1
      %s580 = scalar_select %p577, %s578, %s579
      %p583 = pneg %p577
      %p584 = scmp.eq.s32.totalorder %s30, 3
      %p585 = por %p583, %p584
      %p586 = scmp.ne.s32.totalorder %s578, %s581
      %p587 = scmp.eq.s32.totalorder %s30, 0
      %p588 = por %p586, %p587
      %p589 = scmp.ne.s32.totalorder %s578, %s581
      %p590 = scmp.eq.s32.totalorder %s35, 3
      %p591 = por %p589, %p590
      %p592 = scmp.ne.s32.totalorder %s581, %s582
      %p593 = scmp.eq.s32.totalorder %s35, 0
      %p594 = por %p592, %p593
      %p595 = scmp.ne.s32.totalorder %s581, %s582
      %p596 = scmp.eq.s32.totalorder %s36, 3
      %p597 = por %p595, %p596
      %p599 = scmp.ne.s32.totalorder %s582, %s598
      %p600 = scmp.eq.s32.totalorder %s36, 0
      %p601 = por %p599, %p600
      %p602 = scmp.le.s32.totalorder 1, %s30
      %p603 = scmp.lt.s32.totalorder %s30, 5
      %p604 = pnand %p602, %p603
      %p605 = pneg %p604
      // Predicated region
      $region9: #{ecg_transformer_forward.1} parent=5 // pred_check
        _
      $region10: #{ecg_transformer_forward.1} parent=5 // pred_check_branch
        %607 = sbr.rel (%p604) target = $region12
      $region11: #{ecg_transformer_forward.1} parent=5 // pred_region
        %s608 = ssub.s32 %s30, 1
        // Predicated region
        $region13: #{ecg_transformer_forward.1} parent=11 // pred_check
          %p609 = pneg %p89
        $region14: #{ecg_transformer_forward.1} parent=11 // pred_check_branch
          %611 = sbr.rel (%p609) target = $region16
        $region15: #{ecg_transformer_forward.1} parent=11 // pred_region
          _
        $region16: #{ecg_transformer_forward.1} parent=11 // pred_fallthru
          _
        // Predicated region
        $region17: #{ecg_transformer_forward.1} parent=11 // pred_check
          %p612 = pneg %p110
        $region18: #{ecg_transformer_forward.1} parent=11 // pred_check_branch
          %614 = sbr.rel (%p612) target = $region20
        $region19: #{ecg_transformer_forward.1} parent=11 // pred_region
          _
        $region20: #{ecg_transformer_forward.1} parent=11 // pred_fallthru
          _
        // Predicated region
        $region21: #{ecg_transformer_forward.1} parent=11 // pred_check
          %p615 = pneg %p547
        $region22: #{ecg_transformer_forward.1} parent=11 // pred_check_branch
          %617 = sbr.rel (%p615) target = $region24
        $region23: #{ecg_transformer_forward.1} parent=11 // pred_region
          _
        $region24: #{ecg_transformer_forward.1} parent=11 // pred_fallthru
          _
        // Predicated region
        $region25: #{ecg_transformer_forward.1} parent=11 // pred_check
          %p618 = pneg %p568
        $region26: #{ecg_transformer_forward.1} parent=11 // pred_check_branch
          %620 = sbr.rel (%p618) target = $region28
        $region27: #{ecg_transformer_forward.1} parent=11 // pred_region
          _
        $region28: #{ecg_transformer_forward.1} parent=11 // pred_fallthru
          _
      $region12: #{ecg_transformer_forward.1} parent=5 // pred_fallthru
        _
      %p621 = scmp.lt.s32.totalorder %s30, 4
      // Predicated region
      $region29: #{ecg_transformer_forward.1} parent=5 // pred_check
        %p622 = pneg %p621
      $region30: #{ecg_transformer_forward.1} parent=5 // pred_check_branch
        %624 = sbr.rel (%p622) target = $region32
      $region31: #{ecg_transformer_forward.1} parent=5 // pred_region
        // Predicated region
        $region33: #{ecg_transformer_forward.1} parent=31 // pred_check
          %p625 = pneg %p62
        $region34: #{ecg_transformer_forward.1} parent=31 // pred_check_branch
          %627 = sbr.rel (%p625) target = $region36
        $region35: #{ecg_transformer_forward.1} parent=31 // pred_region
          %p628 = scmp.lt.s32.totalorder %s37, 1
          %s629 = scalar_select %p628, %s37, 1
          %s630 = smul.addr %s629, 3
          %s631 = smul.addr %s630, 8
          %s632 = scalar_lea.vmem %s0, %s631
        $region36: #{ecg_transformer_forward.1} parent=31 // pred_fallthru
          _
        // Predicated region
        $region37: #{ecg_transformer_forward.1} parent=31 // pred_check
          %p633 = pneg %p130
        $region38: #{ecg_transformer_forward.1} parent=31 // pred_check_branch
          %635 = sbr.rel (%p633) target = $region40
        $region39: #{ecg_transformer_forward.1} parent=31 // pred_region
          %p636 = scmp.lt.s32.totalorder %s38, 1
          %s637 = scalar_select %p636, %s38, 1
          %s638 = smul.addr %s637, 16
          %s639 = smul.addr %s638, 8
          %s640 = scalar_lea.vmem %s3, %s639
        $region40: #{ecg_transformer_forward.1} parent=31 // pred_fallthru
          _
        // Predicated region
        $region41: #{ecg_transformer_forward.1} parent=31 // pred_check
          %p641 = pneg %p156
        $region42: #{ecg_transformer_forward.1} parent=31 // pred_check_branch
          %643 = sbr.rel (%p641) target = $region44
        $region43: #{ecg_transformer_forward.1} parent=31 // pred_region
          %p644 = scmp.lt.s32.totalorder %s38, 1
          %s645 = scalar_select %p644, %s38, 1
          %s646 = smul.addr %s645, 4
          %s647 = scalar_lea.vmem %s4, %s646
        $region44: #{ecg_transformer_forward.1} parent=31 // pred_fallthru
          _
        // Predicated region
        $region45: #{ecg_transformer_forward.1} parent=31 // pred_check
          %p648 = pneg %p182
        $region46: #{ecg_transformer_forward.1} parent=31 // pred_check_branch
          %650 = sbr.rel (%p648) target = $region48
        $region47: #{ecg_transformer_forward.1} parent=31 // pred_region
          %p651 = scmp.lt.s32.totalorder %s38, 1
          %s652 = scalar_select %p651, %s38, 1
          %s653 = smul.addr %s652, 16
          %s654 = smul.addr %s653, 8
          %s655 = scalar_lea.vmem %s5, %s654
        $region48: #{ecg_transformer_forward.1} parent=31 // pred_fallthru
          _
        // Predicated region
        $region49: #{ecg_transformer_forward.1} parent=31 // pred_check
          %p656 = pneg %p208
        $region50: #{ecg_transformer_forward.1} parent=31 // pred_check_branch
          %658 = sbr.rel (%p656) target = $region52
        $region51: #{ecg_transformer_forward.1} parent=31 // pred_region
          %p659 = scmp.lt.s32.totalorder %s38, 1
          %s660 = scalar_select %p659, %s38, 1
          %s661 = smul.addr %s660, 4
          %s662 = scalar_lea.vmem %s6, %s661
        $region52: #{ecg_transformer_forward.1} parent=31 // pred_fallthru
          _
        // Predicated region
        $region53: #{ecg_transformer_forward.1} parent=31 // pred_check
          %p663 = pneg %p234
        $region54: #{ecg_transformer_forward.1} parent=31 // pred_check_branch
          %665 = sbr.rel (%p663) target = $region56
        $region55: #{ecg_transformer_forward.1} parent=31 // pred_region
          %p666 = scmp.lt.s32.totalorder %s38, 1
          %s667 = scalar_select %p666, %s38, 1
          %s668 = smul.addr %s667, 16
          %s669 = smul.addr %s668, 8
          %s670 = scalar_lea.vmem %s7, %s669
        $region56: #{ecg_transformer_forward.1} parent=31 // pred_fallthru
          _
        // Predicated region
        $region57: #{ecg_transformer_forward.1} parent=31 // pred_check
          %p671 = pneg %p260
        $region58: #{ecg_transformer_forward.1} parent=31 // pred_check_branch
          %673 = sbr.rel (%p671) target = $region60
        $region59: #{ecg_transformer_forward.1} parent=31 // pred_region
          %p674 = scmp.lt.s32.totalorder %s38, 1
          %s675 = scalar_select %p674, %s38, 1
          %s676 = smul.addr %s675, 4
          %s677 = scalar_lea.vmem %s8, %s676
        $region60: #{ecg_transformer_forward.1} parent=31 // pred_fallthru
          _
        // Predicated region
        $region61: #{ecg_transformer_forward.1} parent=31 // pred_check
          %p678 = pneg %p286
        $region62: #{ecg_transformer_forward.1} parent=31 // pred_check_branch
          %680 = sbr.rel (%p678) target = $region64
        $region63: #{ecg_transformer_forward.1} parent=31 // pred_region
          %p681 = scmp.lt.s32.totalorder %s38, 1
          %s682 = scalar_select %p681, %s38, 1
          %s683 = smul.addr %s682, 4
          %s684 = smul.addr %s683, 8
          %s685 = scalar_lea.vmem %s9, %s684
        $region64: #{ecg_transformer_forward.1} parent=31 // pred_fallthru
          _
        // Predicated region
        $region65: #{ecg_transformer_forward.1} parent=31 // pred_check
          %p686 = pneg %p312
        $region66: #{ecg_transformer_forward.1} parent=31 // pred_check_branch
          %688 = sbr.rel (%p686) target = $region68
        $region67: #{ecg_transformer_forward.1} parent=31 // pred_region
          %p689 = scmp.lt.s32.totalorder %s38, 1
          %s690 = scalar_select %p689, %s38, 1
          %s691 = scalar_lea.vmem %s10, %s690
        $region68: #{ecg_transformer_forward.1} parent=31 // pred_fallthru
          _
        // Predicated region
        $region69: #{ecg_transformer_forward.1} parent=31 // pred_check
          %p692 = pneg %p338
        $region70: #{ecg_transformer_forward.1} parent=31 // pred_check_branch
          %694 = sbr.rel (%p692) target = $region72
        $region71: #{ecg_transformer_forward.1} parent=31 // pred_region
          %p695 = scmp.lt.s32.totalorder %s38, 1
          %s696 = scalar_select %p695, %s38, 1
          %s697 = scalar_lea.vmem %s11, %s696
        $region72: #{ecg_transformer_forward.1} parent=31 // pred_fallthru
          _
        // Predicated region
        $region73: #{ecg_transformer_forward.1} parent=31 // pred_check
          %p698 = pneg %p364
        $region74: #{ecg_transformer_forward.1} parent=31 // pred_check_branch
          %700 = sbr.rel (%p698) target = $region76
        $region75: #{ecg_transformer_forward.1} parent=31 // pred_region
          %p701 = scmp.lt.s32.totalorder %s38, 1
          %s702 = scalar_select %p701, %s38, 1
          %s703 = scalar_lea.vmem %s12, %s702
        $region76: #{ecg_transformer_forward.1} parent=31 // pred_fallthru
          _
        // Predicated region
        $region77: #{ecg_transformer_forward.1} parent=31 // pred_check
          %p704 = pneg %p390
        $region78: #{ecg_transformer_forward.1} parent=31 // pred_check_branch
          %706 = sbr.rel (%p704) target = $region80
        $region79: #{ecg_transformer_forward.1} parent=31 // pred_region
          %p707 = scmp.lt.s32.totalorder %s38, 1
          %s708 = scalar_select %p707, %s38, 1
          %s709 = smul.addr %s708, 4
          %s710 = smul.addr %s709, 8
          %s711 = scalar_lea.vmem %s13, %s710
        $region80: #{ecg_transformer_forward.1} parent=31 // pred_fallthru
          _
        // Predicated region
        $region81: #{ecg_transformer_forward.1} parent=31 // pred_check
          %p712 = pneg %p416
        $region82: #{ecg_transformer_forward.1} parent=31 // pred_check_branch
          %714 = sbr.rel (%p712) target = $region84
        $region83: #{ecg_transformer_forward.1} parent=31 // pred_region
          %p715 = scmp.lt.s32.totalorder %s38, 1
          %s716 = scalar_select %p715, %s38, 1
          %s717 = scalar_lea.vmem %s14, %s716
        $region84: #{ecg_transformer_forward.1} parent=31 // pred_fallthru
          _
        // Predicated region
        $region85: #{ecg_transformer_forward.1} parent=31 // pred_check
          %p718 = pneg %p442
        $region86: #{ecg_transformer_forward.1} parent=31 // pred_check_branch
          %720 = sbr.rel (%p718) target = $region88
        $region87: #{ecg_transformer_forward.1} parent=31 // pred_region
          %p721 = scmp.lt.s32.totalorder %s38, 1
          %s722 = scalar_select %p721, %s38, 1
          %s723 = smul.addr %s722, 16
          %s724 = smul.addr %s723, 8
          %s725 = scalar_lea.vmem %s15, %s724
        $region88: #{ecg_transformer_forward.1} parent=31 // pred_fallthru
          _
        // Predicated region
        $region89: #{ecg_transformer_forward.1} parent=31 // pred_check
          %p726 = pneg %p468
        $region90: #{ecg_transformer_forward.1} parent=31 // pred_check_branch
          %728 = sbr.rel (%p726) target = $region92
        $region91: #{ecg_transformer_forward.1} parent=31 // pred_region
          %p729 = scmp.lt.s32.totalorder %s38, 1
          %s730 = scalar_select %p729, %s38, 1
          %s731 = scalar_lea.vmem %s16, %s730
        $region92: #{ecg_transformer_forward.1} parent=31 // pred_fallthru
          _
        // Predicated region
        $region93: #{ecg_transformer_forward.1} parent=31 // pred_check
          %p732 = pneg %p494
        $region94: #{ecg_transformer_forward.1} parent=31 // pred_check_branch
          %734 = sbr.rel (%p732) target = $region96
        $region95: #{ecg_transformer_forward.1} parent=31 // pred_region
          %p735 = scmp.lt.s32.totalorder %s38, 1
          %s736 = scalar_select %p735, %s38, 1
          %s737 = scalar_lea.vmem %s17, %s736
        $region96: #{ecg_transformer_forward.1} parent=31 // pred_fallthru
          _
        // Predicated region
        $region97: #{ecg_transformer_forward.1} parent=31 // pred_check
          %p738 = pneg %p520
        $region98: #{ecg_transformer_forward.1} parent=31 // pred_check_branch
          %740 = sbr.rel (%p738) target = $region100
        $region99: #{ecg_transformer_forward.1} parent=31 // pred_region
          %p741 = scmp.lt.s32.totalorder %s38, 1
          %s742 = scalar_select %p741, %s38, 1
          %s743 = scalar_lea.vmem %s18, %s742
        $region100: #{ecg_transformer_forward.1} parent=31 // pred_fallthru
          _
      $region32: #{ecg_transformer_forward.1} parent=5 // pred_fallthru
        _
      %p744 = scmp.le.s32.totalorder 1, %s30
      %p745 = scmp.lt.s32.totalorder %s30, 5
      %p746 = pnand %p744, %p745
      %p747 = pneg %p746
      // Predicated region
      $region101: #{ecg_transformer_forward.1} parent=5 // pred_check
        _
      $region102: #{ecg_transformer_forward.1} parent=5 // pred_check_branch
        %749 = sbr.rel (%p746) target = $region104
      $region103: #{ecg_transformer_forward.1} parent=5 // pred_region
        %s750 = ssub.s32 %s30, 1
        %p751 = scmp.lt.s32.totalorder %s39, 1
        %s752 = scalar_select %p751, %s39, 1
        %s753 = smul.addr %s752, 3
        %s754 = smul.addr %s753, 8
        %s755 = scalar_lea.vmem %s0, %s754
        %p756 = pneg %p68
        %p757 = pneg %p65
        %p758 = pneg %p89
        %p759 = pneg %p86
        %p760 = pneg %p110
        %p761 = pneg %p107
        %p762 = scmp.lt.s32.totalorder %s40, 1
        %s763 = scalar_select %p762, %s40, 1
        %s764 = smul.addr %s763, 16
        %s765 = smul.addr %s764, 8
        %s766 = scalar_lea.vmem %s3, %s765
        %p767 = pneg %p136
        %p768 = pneg %p133
        %p769 = scmp.lt.s32.totalorder %s40, 1
        %s770 = scalar_select %p769, %s40, 1
        %s771 = smul.addr %s770, 4
        %s772 = scalar_lea.vmem %s4, %s771
        %p773 = pneg %p162
        %p774 = pneg %p159
        %p775 = scmp.lt.s32.totalorder %s40, 1
        %s776 = scalar_select %p775, %s40, 1
        %s777 = smul.addr %s776, 16
        %s778 = smul.addr %s777, 8
        %s779 = scalar_lea.vmem %s5, %s778
        %p780 = pneg %p188
        %p781 = pneg %p185
        %p782 = scmp.lt.s32.totalorder %s40, 1
        %s783 = scalar_select %p782, %s40, 1
        %s784 = smul.addr %s783, 4
        %s785 = scalar_lea.vmem %s6, %s784
        %p786 = pneg %p214
        %p787 = pneg %p211
        %p788 = scmp.lt.s32.totalorder %s40, 1
        %s789 = scalar_select %p788, %s40, 1
        %s790 = smul.addr %s789, 16
        %s791 = smul.addr %s790, 8
        %s792 = scalar_lea.vmem %s7, %s791
        %p793 = pneg %p240
        %p794 = pneg %p237
        %p795 = scmp.lt.s32.totalorder %s40, 1
        %s796 = scalar_select %p795, %s40, 1
        %s797 = smul.addr %s796, 4
        %s798 = scalar_lea.vmem %s8, %s797
        %p799 = pneg %p266
        %p800 = pneg %p263
        %p801 = scmp.lt.s32.totalorder %s40, 1
        %s802 = scalar_select %p801, %s40, 1
        %s803 = smul.addr %s802, 4
        %s804 = smul.addr %s803, 8
        %s805 = scalar_lea.vmem %s9, %s804
        %p806 = pneg %p292
        %p807 = pneg %p289
        %p808 = scmp.lt.s32.totalorder %s40, 1
        %s809 = scalar_select %p808, %s40, 1
        %s810 = scalar_lea.vmem %s10, %s809
        %p811 = pneg %p318
        %p812 = pneg %p315
        %p813 = scmp.lt.s32.totalorder %s40, 1
        %s814 = scalar_select %p813, %s40, 1
        %s815 = scalar_lea.vmem %s11, %s814
        %p816 = pneg %p344
        %p817 = pneg %p341
        %p818 = scmp.lt.s32.totalorder %s40, 1
        %s819 = scalar_select %p818, %s40, 1
        %s820 = scalar_lea.vmem %s12, %s819
        %p821 = pneg %p370
        %p822 = pneg %p367
        %p823 = scmp.lt.s32.totalorder %s40, 1
        %s824 = scalar_select %p823, %s40, 1
        %s825 = smul.addr %s824, 4
        %s826 = smul.addr %s825, 8
        %s827 = scalar_lea.vmem %s13, %s826
        %p828 = pneg %p396
        %p829 = pneg %p393
        %p830 = scmp.lt.s32.totalorder %s40, 1
        %s831 = scalar_select %p830, %s40, 1
        %s832 = scalar_lea.vmem %s14, %s831
        %p833 = pneg %p422
        %p834 = pneg %p419
        %p835 = scmp.lt.s32.totalorder %s40, 1
        %s836 = scalar_select %p835, %s40, 1
        %s837 = smul.addr %s836, 16
        %s838 = smul.addr %s837, 8
        %s839 = scalar_lea.vmem %s15, %s838
        %p840 = pneg %p448
        %p841 = pneg %p445
        %p842 = scmp.lt.s32.totalorder %s40, 1
        %s843 = scalar_select %p842, %s40, 1
        %s844 = scalar_lea.vmem %s16, %s843
        %p845 = pneg %p474
        %p846 = pneg %p471
        %p847 = scmp.lt.s32.totalorder %s40, 1
        %s848 = scalar_select %p847, %s40, 1
        %s849 = scalar_lea.vmem %s17, %s848
        %p850 = pneg %p500
        %p851 = pneg %p497
        %p852 = scmp.lt.s32.totalorder %s40, 1
        %s853 = scalar_select %p852, %s40, 1
        %s854 = scalar_lea.vmem %s18, %s853
        %p855 = pneg %p526
        %p856 = pneg %p523
        %p857 = pneg %p547
        %p858 = pneg %p544
        %p859 = pneg %p568
        %p860 = pneg %p565
        %p861 = pneg %p594
        %p862 = pneg %p591
        %s863 = sand.u32 %s581, 1
        %s864 = scalar_lea.sflag [#allocation4], %s863
        %s865 = sand.u32 %s581, 1
        %s866 = scalar_lea.vmem [#allocation3], %s865
        %p867 = scmp.lt.s32.totalorder %s39, 1
        %s868 = scalar_select %p867, %s39, 1
        %s869 = smul.addr %s868, 3
        %s870 = smul.addr %s869, 8
        %s871 = scalar_lea.vmem %s0, %s870
        %p872 = scmp.lt.s32.totalorder %s40, 1
        %s873 = scalar_select %p872, %s40, 1
        %s874 = smul.addr %s873, 16
        %s875 = smul.addr %s874, 8
        %s876 = scalar_lea.vmem %s3, %s875
        %p877 = scmp.lt.s32.totalorder %s40, 1
        %s878 = scalar_select %p877, %s40, 1
        %s879 = smul.addr %s878, 4
        %s880 = scalar_lea.vmem %s4, %s879
        %p881 = scmp.lt.s32.totalorder %s40, 1
        %s882 = scalar_select %p881, %s40, 1
        %s883 = smul.addr %s882, 16
        %s884 = smul.addr %s883, 8
        %s885 = scalar_lea.vmem %s5, %s884
        %p886 = scmp.lt.s32.totalorder %s40, 1
        %s887 = scalar_select %p886, %s40, 1
        %s888 = smul.addr %s887, 4
        %s889 = scalar_lea.vmem %s6, %s888
        %p890 = scmp.lt.s32.totalorder %s40, 1
        %s891 = scalar_select %p890, %s40, 1
        %s892 = smul.addr %s891, 16
        %s893 = smul.addr %s892, 8
        %s894 = scalar_lea.vmem %s7, %s893
        %p895 = scmp.lt.s32.totalorder %s40, 1
        %s896 = scalar_select %p895, %s40, 1
        %s897 = smul.addr %s896, 4
        %s898 = scalar_lea.vmem %s8, %s897
        %p899 = scmp.lt.s32.totalorder %s40, 1
        %s900 = scalar_select %p899, %s40, 1
        %s901 = smul.addr %s900, 4
        %s902 = smul.addr %s901, 8
        %s903 = scalar_lea.vmem %s9, %s902
        %p904 = scmp.lt.s32.totalorder %s40, 1
        %s905 = scalar_select %p904, %s40, 1
        %s906 = scalar_lea.vmem %s10, %s905
        %p907 = scmp.lt.s32.totalorder %s40, 1
        %s908 = scalar_select %p907, %s40, 1
        %s909 = scalar_lea.vmem %s11, %s908
        %p910 = scmp.lt.s32.totalorder %s40, 1
        %s911 = scalar_select %p910, %s40, 1
        %s912 = scalar_lea.vmem %s12, %s911
        %p913 = scmp.lt.s32.totalorder %s40, 1
        %s914 = scalar_select %p913, %s40, 1
        %s915 = smul.addr %s914, 4
        %s916 = smul.addr %s915, 8
        %s917 = scalar_lea.vmem %s13, %s916
        %p918 = scmp.lt.s32.totalorder %s40, 1
        %s919 = scalar_select %p918, %s40, 1
        %s920 = scalar_lea.vmem %s14, %s919
        %p921 = scmp.lt.s32.totalorder %s40, 1
        %s922 = scalar_select %p921, %s40, 1
        %s923 = smul.addr %s922, 16
        %s924 = smul.addr %s923, 8
        %s925 = scalar_lea.vmem %s15, %s924
        %p926 = scmp.lt.s32.totalorder %s40, 1
        %s927 = scalar_select %p926, %s40, 1
        %s928 = scalar_lea.vmem %s16, %s927
        %p929 = scmp.lt.s32.totalorder %s40, 1
        %s930 = scalar_select %p929, %s40, 1
        %s931 = scalar_lea.vmem %s17, %s930
        %p932 = scmp.lt.s32.totalorder %s40, 1
        %s933 = scalar_select %p932, %s40, 1
        %s934 = scalar_lea.vmem %s18, %s933
        %p935 = scmp.eq.s32.totalorder %s40, 0
        // Predicated region
        $region105: #{ecg_transformer_forward.1} parent=103 // pred_check
          %p936 = pneg %p935
        $region106: #{ecg_transformer_forward.1} parent=103 // pred_check_branch
          %938 = sbr.rel (%p936) target = $region108
        $region107: #{ecg_transformer_forward.1} parent=103 // pred_region
          %v939 = vld [vmem:[%s871] sm:$0xff]
          %v940 = vld [vmem:[%s871 + $0x8] sm:$0xff]
          %v941 = vld [vmem:[%s871 + $0x10] sm:$0x3]
          %v942 = vld [vmem:[%s2] sm:$0xff]
          %v943 = vld [vmem:[%s2 + $0x8] sm:$0xff]
          %v944 = vld [vmem:[%s1] sm:$0xf]
          %vm945 = vcmask 31744
          %v947 = vsel %vm945, %v939, 0
          %v950 = vsel %vm945, %v940, 0
          %vm952 = vcmask 1043456
          %v954 = vsel %vm952, %v944, 0
          %956 = vmatprep.subr.mxu0 0.0
          %957 = vmatpush1.msra.mxu0 0.0
          %958 = vmatprep.subr.mxu0 0.0
          %959 = vmatpush1.msra.mxu0 0.0
          %960 = vmatprep.subr.mxu0 0.0
          %961 = vmatpush1.msra.mxu0 0.0
          %962 = vmatprep.subr.mxu0 0.0
          %963 = vmatpush1.msra.mxu0 0.0
          %964 = vmatprep.subr.mxu0 0.0
          %965 = vmatpush1.msra.mxu0 0.0
          %966 = vmatprep.subr.mxu0 0.0
          %967 = vmatpush1.msra.mxu0 0.0
          %968 = vmatprep.subr.mxu0 0.0
          %969 = vmatpush1.msra.mxu0 0.0
          %970 = vmatprep.subr.mxu0 0.0
          %971 = vmatpush1.msra.mxu0 0.0
          %972 = vmatprep.subr.mxu0 0.0
          %973 = vmatpush1.msra.mxu0 0.0
          %974 = vmatprep.subr.mxu0 0.0
          %975 = vmatpush1.msra.mxu0 0.0
          %976 = vmatprep.subr.mxu0 0.0
          %977 = vmatpush1.msra.mxu0 0.0
          %978 = vmatprep.subr.mxu0 0.0
          %979 = vmatpush1.msra.mxu0 0.0
          %980 = vmatprep.subr.mxu0 0.0
          %981 = vmatpush1.msra.mxu0 0.0
          %982 = vmatprep.subr.mxu0 0.0
          %983 = vmatpush1.msra.mxu0 0.0
          %984 = vmatprep.subr.mxu0 0.0
          %985 = vmatpush1.msra.mxu0 0.0
          %986 = vmatprep.subr.mxu0 0.0
          %987 = vmatpush1.msra.mxu0 %v954
          %988 = vmatprep.subr.mxu0 0.0
          %989 = vmatpush2.msra.mxu0 0.0
          %990 = vmatprep.subr.mxu0 0.0
          %991 = vmatpush2.msra.mxu0 0.0
          %992 = vmatprep.subr.mxu0 0.0
          %993 = vmatpush2.msra.mxu0 0.0
          %994 = vmatprep.subr.mxu0 0.0
          %995 = vmatpush2.msra.mxu0 0.0
          %996 = vmatprep.subr.mxu0 0.0
          %997 = vmatpush2.msra.mxu0 0.0
          %998 = vmatprep.subr.mxu0 0.0
          %999 = vmatpush2.msra.mxu0 0.0
          %1000 = vmatprep.subr.mxu0 0.0
          %1001 = vmatpush2.msra.mxu0 0.0
          %1002 = vmatprep.subr.mxu0 0.0
          %1003 = vmatpush2.msra.mxu0 0.0
          %1004 = vmatprep.subr.mxu0 0.0
          %1005 = vmatpush2.msra.mxu0 0.0
          %1006 = vmatprep.subr.mxu0 0.0
          %1007 = vmatpush2.msra.mxu0 0.0
          %1008 = vmatprep.subr.mxu0 0.0
          %1009 = vmatpush2.msra.mxu0 0.0
          %1010 = vmatprep.subr.mxu0 0.0
          %1011 = vmatpush2.msra.mxu0 0.0
          %1012 = vmatprep.subr.mxu0 0.0
          %1013 = vmatpush2.msra.mxu0 0.0
          %1014 = vmatprep.subr.mxu0 0.0
          %1015 = vmatpush2.msra.mxu0 0.0
          %1016 = vmatprep.subr.mxu0 0.0
          %1017 = vmatpush2.msra.mxu0 0.0
          %1018 = vmatprep.subr.mxu0 0.0
          %1019 = vmatpush2.msra.mxu0 0.0
          %1020 = vmatprep.mubr.f32.mxu0 0.0
          %1021 = vmatmul.mubr.f32.gmra.mxu0 %v947
          %v1022 = vpop.f32.mrf.mxu0
          %v1023 = vadd.f32 0.0, %v1022
          %v1024 = vpop.f32.mrf.mxu0
          %1025 = vmatprep.mubr.f32.mxu0 0.0
          %1026 = vmatmul.mubr.f32.gmra.mxu0 %v950
          %v1027 = vpop.f32.mrf.mxu0
          %v1028 = vadd.f32 0.0, %v1027
          %v1029 = vpop.f32.mrf.mxu0
          %1030 = vdwg.mxu0
          %v1031 = vadd.f32 %v942, %v1023
          %v1032 = vadd.f32 %v943, %v1028
          %s1033 = scalar_lea.vmem %s1, 4
          %v1034 = vld [vmem:[%s1033] sm:$0xf]
          %vm1036 = vcmask 1046528
          %v1037 = vrot.slane %v939, 1
          %v1038 = vrot.slane %v940, 1
          %v1039 = vsel %vm1036, %v1037, %v1038
          %v1040 = vrot.slane %v941, 1
          %v1041 = vsel %vm1036, %v1038, %v1040
          %v1042 = vsel %vm945, %v1039, 0
          %v1044 = vsel %vm945, %v1041, 0
          %v1047 = vsel %vm952, %v1034, 0
          %1049 = vmatprep.subr.mxu0 0.0
          %1050 = vmatpush1.msra.mxu0 0.0
          %1051 = vmatprep.subr.mxu0 0.0
          %1052 = vmatpush1.msra.mxu0 0.0
          %1053 = vmatprep.subr.mxu0 0.0
          %1054 = vmatpush1.msra.mxu0 0.0
          %1055 = vmatprep.subr.mxu0 0.0
          %1056 = vmatpush1.msra.mxu0 0.0
          %1057 = vmatprep.subr.mxu0 0.0
          %1058 = vmatpush1.msra.mxu0 0.0
          %1059 = vmatprep.subr.mxu0 0.0
          %1060 = vmatpush1.msra.mxu0 0.0
          %1061 = vmatprep.subr.mxu0 0.0
          %1062 = vmatpush1.msra.mxu0 0.0
          %1063 = vmatprep.subr.mxu0 0.0
          %1064 = vmatpush1.msra.mxu0 0.0
          %1065 = vmatprep.subr.mxu0 0.0
          %1066 = vmatpush1.msra.mxu0 0.0
          %1067 = vmatprep.subr.mxu0 0.0
          %1068 = vmatpush1.msra.mxu0 0.0
          %1069 = vmatprep.subr.mxu0 0.0
          %1070 = vmatpush1.msra.mxu0 0.0
          %1071 = vmatprep.subr.mxu0 0.0
          %1072 = vmatpush1.msra.mxu0 0.0
          %1073 = vmatprep.subr.mxu0 0.0
          %1074 = vmatpush1.msra.mxu0 0.0
          %1075 = vmatprep.subr.mxu0 0.0
          %1076 = vmatpush1.msra.mxu0 0.0
          %1077 = vmatprep.subr.mxu0 0.0
          %1078 = vmatpush1.msra.mxu0 0.0
          %1079 = vmatprep.subr.mxu0 0.0
          %1080 = vmatpush1.msra.mxu0 %v1047
          %1081 = vmatprep.subr.mxu0 0.0
          %1082 = vmatpush2.msra.mxu0 0.0
          %1083 = vmatprep.subr.mxu0 0.0
          %1084 = vmatpush2.msra.mxu0 0.0
          %1085 = vmatprep.subr.mxu0 0.0
          %1086 = vmatpush2.msra.mxu0 0.0
          %1087 = vmatprep.subr.mxu0 0.0
          %1088 = vmatpush2.msra.mxu0 0.0
          %1089 = vmatprep.subr.mxu0 0.0
          %1090 = vmatpush2.msra.mxu0 0.0
          %1091 = vmatprep.subr.mxu0 0.0
          %1092 = vmatpush2.msra.mxu0 0.0
          %1093 = vmatprep.subr.mxu0 0.0
          %1094 = vmatpush2.msra.mxu0 0.0
          %1095 = vmatprep.subr.mxu0 0.0
          %1096 = vmatpush2.msra.mxu0 0.0
          %1097 = vmatprep.subr.mxu0 0.0
          %1098 = vmatpush2.msra.mxu0 0.0
          %1099 = vmatprep.subr.mxu0 0.0
          %1100 = vmatpush2.msra.mxu0 0.0
          %1101 = vmatprep.subr.mxu0 0.0
          %1102 = vmatpush2.msra.mxu0 0.0
          %1103 = vmatprep.subr.mxu0 0.0
          %1104 = vmatpush2.msra.mxu0 0.0
          %1105 = vmatprep.subr.mxu0 0.0
          %1106 = vmatpush2.msra.mxu0 0.0
          %1107 = vmatprep.subr.mxu0 0.0
          %1108 = vmatpush2.msra.mxu0 0.0
          %1109 = vmatprep.subr.mxu0 0.0
          %1110 = vmatpush2.msra.mxu0 0.0
          %1111 = vmatprep.subr.mxu0 0.0
          %1112 = vmatpush2.msra.mxu0 0.0
          %1113 = vmatprep.mubr.f32.mxu0 0.0
          %1114 = vmatmul.mubr.f32.gmra.mxu0 %v1042
          %v1115 = vpop.f32.mrf.mxu0
          %v1116 = vadd.f32 0.0, %v1115
          %v1117 = vpop.f32.mrf.mxu0
          %1118 = vmatprep.mubr.f32.mxu0 0.0
          %1119 = vmatmul.mubr.f32.gmra.mxu0 %v1044
          %v1120 = vpop.f32.mrf.mxu0
          %v1121 = vadd.f32 0.0, %v1120
          %v1122 = vpop.f32.mrf.mxu0
          %1123 = vdwg.mxu0
          %v1124 = vadd.f32 %v1031, %v1116
          %v1125 = vadd.f32 %v1032, %v1121
          %s1126 = scalar_lea.vmem %s1, 8
          %v1127 = vld [vmem:[%s1126] sm:$0xf]
          %vm1128 = vcmask 1045504
          %v1129 = vrot.slane %v939, 2
          %v1130 = vrot.slane %v940, 2
          %v1131 = vsel %vm1128, %v1129, %v1130
          %v1132 = vrot.slane %v941, 2
          %v1133 = vsel %vm1128, %v1130, %v1132
          %v1134 = vsel %vm945, %v1131, 0
          %v1136 = vsel %vm945, %v1133, 0
          %v1139 = vsel %vm952, %v1127, 0
          %1141 = vmatprep.subr.mxu0 0.0
          %1142 = vmatpush1.msra.mxu0 0.0
          %1143 = vmatprep.subr.mxu0 0.0
          %1144 = vmatpush1.msra.mxu0 0.0
          %1145 = vmatprep.subr.mxu0 0.0
          %1146 = vmatpush1.msra.mxu0 0.0
          %1147 = vmatprep.subr.mxu0 0.0
          %1148 = vmatpush1.msra.mxu0 0.0
          %1149 = vmatprep.subr.mxu0 0.0
          %1150 = vmatpush1.msra.mxu0 0.0
          %1151 = vmatprep.subr.mxu0 0.0
          %1152 = vmatpush1.msra.mxu0 0.0
          %1153 = vmatprep.subr.mxu0 0.0
          %1154 = vmatpush1.msra.mxu0 0.0
          %1155 = vmatprep.subr.mxu0 0.0
          %1156 = vmatpush1.msra.mxu0 0.0
          %1157 = vmatprep.subr.mxu0 0.0
          %1158 = vmatpush1.msra.mxu0 0.0
          %1159 = vmatprep.subr.mxu0 0.0
          %1160 = vmatpush1.msra.mxu0 0.0
          %1161 = vmatprep.subr.mxu0 0.0
          %1162 = vmatpush1.msra.mxu0 0.0
          %1163 = vmatprep.subr.mxu0 0.0
          %1164 = vmatpush1.msra.mxu0 0.0
          %1165 = vmatprep.subr.mxu0 0.0
          %1166 = vmatpush1.msra.mxu0 0.0
          %1167 = vmatprep.subr.mxu0 0.0
          %1168 = vmatpush1.msra.mxu0 0.0
          %1169 = vmatprep.subr.mxu0 0.0
          %1170 = vmatpush1.msra.mxu0 0.0
          %1171 = vmatprep.subr.mxu0 0.0
          %1172 = vmatpush1.msra.mxu0 %v1139
          %1173 = vmatprep.subr.mxu0 0.0
          %1174 = vmatpush2.msra.mxu0 0.0
          %1175 = vmatprep.subr.mxu0 0.0
          %1176 = vmatpush2.msra.mxu0 0.0
          %1177 = vmatprep.subr.mxu0 0.0
          %1178 = vmatpush2.msra.mxu0 0.0
          %1179 = vmatprep.subr.mxu0 0.0
          %1180 = vmatpush2.msra.mxu0 0.0
          %1181 = vmatprep.subr.mxu0 0.0
          %1182 = vmatpush2.msra.mxu0 0.0
          %1183 = vmatprep.subr.mxu0 0.0
          %1184 = vmatpush2.msra.mxu0 0.0
          %1185 = vmatprep.subr.mxu0 0.0
          %1186 = vmatpush2.msra.mxu0 0.0
          %1187 = vmatprep.subr.mxu0 0.0
          %1188 = vmatpush2.msra.mxu0 0.0
          %1189 = vmatprep.subr.mxu0 0.0
          %1190 = vmatpush2.msra.mxu0 0.0
          %1191 = vmatprep.subr.mxu0 0.0
          %1192 = vmatpush2.msra.mxu0 0.0
          %1193 = vmatprep.subr.mxu0 0.0
          %1194 = vmatpush2.msra.mxu0 0.0
          %1195 = vmatprep.subr.mxu0 0.0
          %1196 = vmatpush2.msra.mxu0 0.0
          %1197 = vmatprep.subr.mxu0 0.0
          %1198 = vmatpush2.msra.mxu0 0.0
          %1199 = vmatprep.subr.mxu0 0.0
          %1200 = vmatpush2.msra.mxu0 0.0
          %1201 = vmatprep.subr.mxu0 0.0
          %1202 = vmatpush2.msra.mxu0 0.0
          %1203 = vmatprep.subr.mxu0 0.0
          %1204 = vmatpush2.msra.mxu0 0.0
          %1205 = vmatprep.mubr.f32.mxu0 0.0
          %1206 = vmatmul.mubr.f32.gmra.mxu0 %v1134
          %v1207 = vpop.f32.mrf.mxu0
          %v1208 = vadd.f32 0.0, %v1207
          %v1209 = vpop.f32.mrf.mxu0
          %1210 = vmatprep.mubr.f32.mxu0 0.0
          %1211 = vmatmul.mubr.f32.gmra.mxu0 %v1136
          %v1212 = vpop.f32.mrf.mxu0
          %v1213 = vadd.f32 0.0, %v1212
          %v1214 = vpop.f32.mrf.mxu0
          %1215 = vdwg.mxu0
          %v1216 = vadd.f32 %v1124, %v1208
          %v1217 = vadd.f32 %v1125, %v1213
          %vm1218 = vcmask 261120
          %1219 = vst.msk [vmem:[#allocation2] sm:$0xff] %vm1218, %v1216
          %1220 = vst.msk [vmem:[#allocation2 + $0x8] sm:$0xff] %vm1218, %v1217
        $region108: #{ecg_transformer_forward.1} parent=103 // pred_fallthru
          _
        %v1221 = vld [vmem:[#allocation2] sm:$0xff]
        %v1222 = vld [vmem:[#allocation2 + $0x8] sm:$0xff]
        %v1223 = vld [vmem:[%s876] sm:$0xff]
        %v1224 = vld [vmem:[%s876 + $0x8] sm:$0xff]
        %v1225 = vld [vmem:[%s876 + $0x10] sm:$0xff]
        %v1226 = vld [vmem:[%s876 + $0x18] sm:$0xff]
        %v1227 = vld [vmem:[%s880] sm:$0x1]
        %v1229 = vlaneseq
        %v1230 = vshrl.u32 %v1229, 7
        %v1231 = vsub.s32 0, %v1230
        %v1232 = vrot.slane %v1227, %v1231
        %vm1234 = vcmask 261120
        %v1236 = vsel %vm1234, %v1221, 0
        %v1239 = vsel %vm1234, %v1222, 0
        %1241 = vmatprep.subr.mxu0 0.0
        %1242 = vmatpush1.msra.mxu0 0.0
        %1243 = vmatprep.subr.mxu0 0.0
        %1244 = vmatpush1.msra.mxu0 0.0
        %1245 = vmatprep.subr.mxu0 0.0
        %1246 = vmatpush1.msra.mxu0 0.0
        %1247 = vmatprep.subr.mxu0 0.0
        %1248 = vmatpush1.msra.mxu0 0.0
        %1249 = vmatprep.subr.mxu0 0.0
        %1250 = vmatpush1.msra.mxu0 0.0
        %1251 = vmatprep.subr.mxu0 0.0
        %1252 = vmatpush1.msra.mxu0 0.0
        %1253 = vmatprep.subr.mxu0 0.0
        %1254 = vmatpush1.msra.mxu0 0.0
        %1255 = vmatprep.subr.mxu0 0.0
        %1256 = vmatpush1.msra.mxu0 0.0
        %1257 = vmatprep.subr.mxu0 0.0
        %1258 = vmatpush1.msra.mxu0 0.0
        %1259 = vmatprep.subr.mxu0 0.0
        %1260 = vmatpush1.msra.mxu0 0.0
        %1261 = vmatprep.subr.mxu0 0.0
        %1262 = vmatpush1.msra.mxu0 0.0
        %1263 = vmatprep.subr.mxu0 0.0
        %1264 = vmatpush1.msra.mxu0 0.0
        %1265 = vmatprep.subr.mxu0 0.0
        %1266 = vmatpush1.msra.mxu0 %v1226
        %1267 = vmatprep.subr.mxu0 0.0
        %1268 = vmatpush1.msra.mxu0 %v1225
        %1269 = vmatprep.subr.mxu0 0.0
        %1270 = vmatpush1.msra.mxu0 %v1224
        %1271 = vmatprep.subr.mxu0 0.0
        %1272 = vmatpush1.msra.mxu0 %v1223
        %1273 = vmatprep.subr.mxu0 0.0
        %1274 = vmatpush2.msra.mxu0 0.0
        %1275 = vmatprep.subr.mxu0 0.0
        %1276 = vmatpush2.msra.mxu0 0.0
        %1277 = vmatprep.subr.mxu0 0.0
        %1278 = vmatpush2.msra.mxu0 0.0
        %1279 = vmatprep.subr.mxu0 0.0
        %1280 = vmatpush2.msra.mxu0 0.0
        %1281 = vmatprep.subr.mxu0 0.0
        %1282 = vmatpush2.msra.mxu0 0.0
        %1283 = vmatprep.subr.mxu0 0.0
        %1284 = vmatpush2.msra.mxu0 0.0
        %1285 = vmatprep.subr.mxu0 0.0
        %1286 = vmatpush2.msra.mxu0 0.0
        %1287 = vmatprep.subr.mxu0 0.0
        %1288 = vmatpush2.msra.mxu0 0.0
        %1289 = vmatprep.subr.mxu0 0.0
        %1290 = vmatpush2.msra.mxu0 0.0
        %1291 = vmatprep.subr.mxu0 0.0
        %1292 = vmatpush2.msra.mxu0 0.0
        %1293 = vmatprep.subr.mxu0 0.0
        %1294 = vmatpush2.msra.mxu0 0.0
        %1295 = vmatprep.subr.mxu0 0.0
        %1296 = vmatpush2.msra.mxu0 0.0
        %1297 = vmatprep.subr.mxu0 0.0
        %1298 = vmatpush2.msra.mxu0 0.0
        %1299 = vmatprep.subr.mxu0 0.0
        %1300 = vmatpush2.msra.mxu0 0.0
        %1301 = vmatprep.subr.mxu0 0.0
        %1302 = vmatpush2.msra.mxu0 0.0
        %1303 = vmatprep.subr.mxu0 0.0
        %1304 = vmatpush2.msra.mxu0 0.0
        %1305 = vmatprep.mubr.f32.mxu0 0.0
        %1306 = vmatmul.mubr.f32.gmra.mxu0 %v1236
        %v1307 = vpop.f32.mrf.mxu0
        %v1308 = vadd.f32 %v1232, %v1307
        %v1309 = vpop.f32.mrf.mxu0
        %1310 = vmatprep.mubr.f32.mxu0 0.0
        %1311 = vmatmul.mubr.f32.gmra.mxu0 %v1239
        %v1312 = vpop.f32.mrf.mxu0
        %v1313 = vadd.f32 %v1232, %v1312
        %v1314 = vpop.f32.mrf.mxu0
        %1315 = vdwg.mxu0
        %v1316 = vld [vmem:[%s885] sm:$0xff]
        %v1317 = vld [vmem:[%s885 + $0x8] sm:$0xff]
        %v1318 = vld [vmem:[%s885 + $0x10] sm:$0xff]
        %v1319 = vld [vmem:[%s885 + $0x18] sm:$0xff]
        %v1320 = vld [vmem:[%s889] sm:$0x1]
        %v1322 = vlaneseq
        %v1323 = vshrl.u32 %v1322, 7
        %v1324 = vsub.s32 0, %v1323
        %v1325 = vrot.slane %v1320, %v1324
        %1327 = vmatprep.subr.mxu0 0.0
        %1328 = vmatpush1.msra.mxu0 0.0
        %1329 = vmatprep.subr.mxu0 0.0
        %1330 = vmatpush1.msra.mxu0 0.0
        %1331 = vmatprep.subr.mxu0 0.0
        %1332 = vmatpush1.msra.mxu0 0.0
        %1333 = vmatprep.subr.mxu0 0.0
        %1334 = vmatpush1.msra.mxu0 0.0
        %1335 = vmatprep.subr.mxu0 0.0
        %1336 = vmatpush1.msra.mxu0 0.0
        %1337 = vmatprep.subr.mxu0 0.0
        %1338 = vmatpush1.msra.mxu0 0.0
        %1339 = vmatprep.subr.mxu0 0.0
        %1340 = vmatpush1.msra.mxu0 0.0
        %1341 = vmatprep.subr.mxu0 0.0
        %1342 = vmatpush1.msra.mxu0 0.0
        %1343 = vmatprep.subr.mxu0 0.0
        %1344 = vmatpush1.msra.mxu0 0.0
        %1345 = vmatprep.subr.mxu0 0.0
        %1346 = vmatpush1.msra.mxu0 0.0
        %1347 = vmatprep.subr.mxu0 0.0
        %1348 = vmatpush1.msra.mxu0 0.0
        %1349 = vmatprep.subr.mxu0 0.0
        %1350 = vmatpush1.msra.mxu0 0.0
        %1351 = vmatprep.subr.mxu0 0.0
        %1352 = vmatpush1.msra.mxu0 %v1319
        %1353 = vmatprep.subr.mxu0 0.0
        %1354 = vmatpush1.msra.mxu0 %v1318
        %1355 = vmatprep.subr.mxu0 0.0
        %1356 = vmatpush1.msra.mxu0 %v1317
        %1357 = vmatprep.subr.mxu0 0.0
        %1358 = vmatpush1.msra.mxu0 %v1316
        %1359 = vmatprep.subr.mxu0 0.0
        %1360 = vmatpush2.msra.mxu0 0.0
        %1361 = vmatprep.subr.mxu0 0.0
        %1362 = vmatpush2.msra.mxu0 0.0
        %1363 = vmatprep.subr.mxu0 0.0
        %1364 = vmatpush2.msra.mxu0 0.0
        %1365 = vmatprep.subr.mxu0 0.0
        %1366 = vmatpush2.msra.mxu0 0.0
        %1367 = vmatprep.subr.mxu0 0.0
        %1368 = vmatpush2.msra.mxu0 0.0
        %1369 = vmatprep.subr.mxu0 0.0
        %1370 = vmatpush2.msra.mxu0 0.0
        %1371 = vmatprep.subr.mxu0 0.0
        %1372 = vmatpush2.msra.mxu0 0.0
        %1373 = vmatprep.subr.mxu0 0.0
        %1374 = vmatpush2.msra.mxu0 0.0
        %1375 = vmatprep.subr.mxu0 0.0
        %1376 = vmatpush2.msra.mxu0 0.0
        %1377 = vmatprep.subr.mxu0 0.0
        %1378 = vmatpush2.msra.mxu0 0.0
        %1379 = vmatprep.subr.mxu0 0.0
        %1380 = vmatpush2.msra.mxu0 0.0
        %1381 = vmatprep.subr.mxu0 0.0
        %1382 = vmatpush2.msra.mxu0 0.0
        %1383 = vmatprep.subr.mxu0 0.0
        %1384 = vmatpush2.msra.mxu0 0.0
        %1385 = vmatprep.subr.mxu0 0.0
        %1386 = vmatpush2.msra.mxu0 0.0
        %1387 = vmatprep.subr.mxu0 0.0
        %1388 = vmatpush2.msra.mxu0 0.0
        %1389 = vmatprep.subr.mxu0 0.0
        %1390 = vmatpush2.msra.mxu0 0.0
        %1391 = vmatprep.mubr.f32.mxu0 0.0
        %1392 = vmatmul.mubr.f32.gmra.mxu0 %v1236
        %v1393 = vpop.f32.mrf.mxu0
        %v1394 = vadd.f32 %v1325, %v1393
        %v1395 = vpop.f32.mrf.mxu0
        %1396 = vmatprep.mubr.f32.mxu0 0.0
        %1397 = vmatmul.mubr.f32.gmra.mxu0 %v1239
        %v1398 = vpop.f32.mrf.mxu0
        %v1399 = vadd.f32 %v1325, %v1398
        %v1400 = vpop.f32.mrf.mxu0
        %1401 = vdwg.mxu0
        %v1402 = vld [vmem:[%s894] sm:$0xff]
        %v1403 = vld [vmem:[%s894 + $0x8] sm:$0xff]
        %v1404 = vld [vmem:[%s894 + $0x10] sm:$0xff]
        %v1405 = vld [vmem:[%s894 + $0x18] sm:$0xff]
        %v1406 = vld [vmem:[%s898] sm:$0x1]
        %v1408 = vlaneseq
        %v1409 = vshrl.u32 %v1408, 7
        %v1410 = vsub.s32 0, %v1409
        %v1411 = vrot.slane %v1406, %v1410
        %1413 = vmatprep.subr.mxu0 0.0
        %1414 = vmatpush1.msra.mxu0 0.0
        %1415 = vmatprep.subr.mxu0 0.0
        %1416 = vmatpush1.msra.mxu0 0.0
        %1417 = vmatprep.subr.mxu0 0.0
        %1418 = vmatpush1.msra.mxu0 0.0
        %1419 = vmatprep.subr.mxu0 0.0
        %1420 = vmatpush1.msra.mxu0 0.0
        %1421 = vmatprep.subr.mxu0 0.0
        %1422 = vmatpush1.msra.mxu0 0.0
        %1423 = vmatprep.subr.mxu0 0.0
        %1424 = vmatpush1.msra.mxu0 0.0
        %1425 = vmatprep.subr.mxu0 0.0
        %1426 = vmatpush1.msra.mxu0 0.0
        %1427 = vmatprep.subr.mxu0 0.0
        %1428 = vmatpush1.msra.mxu0 0.0
        %1429 = vmatprep.subr.mxu0 0.0
        %1430 = vmatpush1.msra.mxu0 0.0
        %1431 = vmatprep.subr.mxu0 0.0
        %1432 = vmatpush1.msra.mxu0 0.0
        %1433 = vmatprep.subr.mxu0 0.0
        %1434 = vmatpush1.msra.mxu0 0.0
        %1435 = vmatprep.subr.mxu0 0.0
        %1436 = vmatpush1.msra.mxu0 0.0
        %1437 = vmatprep.subr.mxu0 0.0
        %1438 = vmatpush1.msra.mxu0 %v1405
        %1439 = vmatprep.subr.mxu0 0.0
        %1440 = vmatpush1.msra.mxu0 %v1404
        %1441 = vmatprep.subr.mxu0 0.0
        %1442 = vmatpush1.msra.mxu0 %v1403
        %1443 = vmatprep.subr.mxu0 0.0
        %1444 = vmatpush1.msra.mxu0 %v1402
        %1445 = vmatprep.subr.mxu0 0.0
        %1446 = vmatpush2.msra.mxu0 0.0
        %1447 = vmatprep.subr.mxu0 0.0
        %1448 = vmatpush2.msra.mxu0 0.0
        %1449 = vmatprep.subr.mxu0 0.0
        %1450 = vmatpush2.msra.mxu0 0.0
        %1451 = vmatprep.subr.mxu0 0.0
        %1452 = vmatpush2.msra.mxu0 0.0
        %1453 = vmatprep.subr.mxu0 0.0
        %1454 = vmatpush2.msra.mxu0 0.0
        %1455 = vmatprep.subr.mxu0 0.0
        %1456 = vmatpush2.msra.mxu0 0.0
        %1457 = vmatprep.subr.mxu0 0.0
        %1458 = vmatpush2.msra.mxu0 0.0
        %1459 = vmatprep.subr.mxu0 0.0
        %1460 = vmatpush2.msra.mxu0 0.0
        %1461 = vmatprep.subr.mxu0 0.0
        %1462 = vmatpush2.msra.mxu0 0.0
        %1463 = vmatprep.subr.mxu0 0.0
        %1464 = vmatpush2.msra.mxu0 0.0
        %1465 = vmatprep.subr.mxu0 0.0
        %1466 = vmatpush2.msra.mxu0 0.0
        %1467 = vmatprep.subr.mxu0 0.0
        %1468 = vmatpush2.msra.mxu0 0.0
        %1469 = vmatprep.subr.mxu0 0.0
        %1470 = vmatpush2.msra.mxu0 0.0
        %1471 = vmatprep.subr.mxu0 0.0
        %1472 = vmatpush2.msra.mxu0 0.0
        %1473 = vmatprep.subr.mxu0 0.0
        %1474 = vmatpush2.msra.mxu0 0.0
        %1475 = vmatprep.subr.mxu0 0.0
        %1476 = vmatpush2.msra.mxu0 0.0
        %1477 = vmatprep.mubr.f32.mxu0 0.0
        %1478 = vmatmul.mubr.f32.gmra.mxu0 %v1236
        %v1479 = vpop.f32.mrf.mxu0
        %v1480 = vadd.f32 %v1411, %v1479
        %v1481 = vpop.f32.mrf.mxu0
        %1482 = vmatprep.mubr.f32.mxu0 0.0
        %1483 = vmatmul.mubr.f32.gmra.mxu0 %v1239
        %v1484 = vpop.f32.mrf.mxu0
        %v1485 = vadd.f32 %v1411, %v1484
        %v1486 = vpop.f32.mrf.mxu0
        %1487 = vdwg.mxu0
        %vm1488 = vcmask 64512
        %v1490 = vsel %vm1488, %v1308, 0
        %v1493 = vsel %vm1488, %v1313, 0
        %v1496 = vsel %vm1488, %v1394, 0
        %1498 = vmatprep.subr.mxu0 0.0
        %1499 = vmatpush1.xpose.msra.mxu0 0.0
        %1500 = vmatprep.subr.mxu0 0.0
        %1501 = vmatpush1.xpose.msra.mxu0 0.0
        %1502 = vmatprep.subr.mxu0 0.0
        %1503 = vmatpush1.xpose.msra.mxu0 0.0
        %1504 = vmatprep.subr.mxu0 0.0
        %1505 = vmatpush1.xpose.msra.mxu0 0.0
        %1506 = vmatprep.subr.mxu0 0.0
        %1507 = vmatpush1.xpose.msra.mxu0 0.0
        %1508 = vmatprep.subr.mxu0 0.0
        %1509 = vmatpush1.xpose.msra.mxu0 0.0
        %1510 = vmatprep.subr.mxu0 0.0
        %1511 = vmatpush1.xpose.msra.mxu0 0.0
        %1512 = vmatprep.subr.mxu0 0.0
        %1513 = vmatpush1.xpose.msra.mxu0 0.0
        %1514 = vmatprep.subr.mxu0 0.0
        %1515 = vmatpush1.xpose.msra.mxu0 0.0
        %1516 = vmatprep.subr.mxu0 0.0
        %1517 = vmatpush1.xpose.msra.mxu0 0.0
        %1518 = vmatprep.subr.mxu0 0.0
        %1519 = vmatpush1.xpose.msra.mxu0 0.0
        %1520 = vmatprep.subr.mxu0 0.0
        %1521 = vmatpush1.xpose.msra.mxu0 0.0
        %1522 = vmatprep.subr.mxu0 0.0
        %1523 = vmatpush1.xpose.msra.mxu0 0.0
        %1524 = vmatprep.subr.mxu0 0.0
        %1525 = vmatpush1.xpose.msra.mxu0 0.0
        %1526 = vmatprep.subr.mxu0 0.0
        %1527 = vmatpush1.xpose.msra.mxu0 0.0
        %1528 = vmatprep.subr.mxu0 0.0
        %1529 = vmatpush1.xpose.msra.mxu0 %v1496
        %1530 = vmatprep.subr.mxu0 0.0
        %1531 = vmatpush2.xpose.msra.mxu0 0.0
        %1532 = vmatprep.subr.mxu0 0.0
        %1533 = vmatpush2.xpose.msra.mxu0 0.0
        %1534 = vmatprep.subr.mxu0 0.0
        %1535 = vmatpush2.xpose.msra.mxu0 0.0
        %1536 = vmatprep.subr.mxu0 0.0
        %1537 = vmatpush2.xpose.msra.mxu0 0.0
        %1538 = vmatprep.subr.mxu0 0.0
        %1539 = vmatpush2.xpose.msra.mxu0 0.0
        %1540 = vmatprep.subr.mxu0 0.0
        %1541 = vmatpush2.xpose.msra.mxu0 0.0
        %1542 = vmatprep.subr.mxu0 0.0
        %1543 = vmatpush2.xpose.msra.mxu0 0.0
        %1544 = vmatprep.subr.mxu0 0.0
        %1545 = vmatpush2.xpose.msra.mxu0 0.0
        %1546 = vmatprep.subr.mxu0 0.0
        %1547 = vmatpush2.xpose.msra.mxu0 0.0
        %1548 = vmatprep.subr.mxu0 0.0
        %1549 = vmatpush2.xpose.msra.mxu0 0.0
        %1550 = vmatprep.subr.mxu0 0.0
        %1551 = vmatpush2.xpose.msra.mxu0 0.0
        %1552 = vmatprep.subr.mxu0 0.0
        %1553 = vmatpush2.xpose.msra.mxu0 0.0
        %1554 = vmatprep.subr.mxu0 0.0
        %1555 = vmatpush2.xpose.msra.mxu0 0.0
        %1556 = vmatprep.subr.mxu0 0.0
        %1557 = vmatpush2.xpose.msra.mxu0 0.0
        %1558 = vmatprep.subr.mxu0 0.0
        %1559 = vmatpush2.xpose.msra.mxu0 0.0
        %1560 = vmatprep.subr.mxu0 0.0
        %1561 = vmatpush2.xpose.msra.mxu0 0.0
        %1562 = vmatprep.mubr.f32.mxu0 0.0
        %1563 = vmatmul.mubr.f32.gmra.mxu0 %v1490
        %v1564 = vpop.f32.mrf.mxu0
        %v1565 = vadd.f32 0.0, %v1564
        %v1566 = vpop.f32.mrf.mxu0
        %1567 = vmatprep.mubr.f32.mxu0 0.0
        %1568 = vmatmul.mubr.f32.gmra.mxu0 %v1493
        %v1569 = vpop.f32.mrf.mxu0
        %v1570 = vadd.f32 0.0, %v1569
        %v1571 = vpop.f32.mrf.mxu0
        %1572 = vdwg.mxu0
        %v1573 = vsel %vm1488, %v1565, -inf
        %1574 = vmax.xlane.f32.xlu0 %v1573
        %v1575 = vpop.xlane.xlu0 %1574
        %v1576 = vsel %vm1488, %v1570, -inf
        %1577 = vmax.xlane.f32.xlu0 %v1576
        %v1578 = vpop.xlane.xlu0 %1577
        %v1579 = vsub.f32 -inf, %v1575
        %v1580 = vsub.f32 -inf, %v1578
        %v1581 = vmul.f32 %v1579, 1.442695
        %v1582 = vpow.pop %v1581
        %v1583 = vmul.f32 %v1580, 1.442695
        %v1584 = vpow.pop %v1583
        %v1585 = vsub.f32 %v1565, %v1575
        %v1586 = vsub.f32 %v1570, %v1578
        %v1587 = vmul.f32 %v1585, 1.442695
        %v1588 = vpow.pop %v1587
        %v1589 = vmul.f32 %v1586, 1.442695
        %v1590 = vpow.pop %v1589
        %v1591 = vmul.f32 %v1582, 0.0
        %v1592 = vmul.f32 %v1584, 0.0
        %v1593 = vsel %vm1488, %v1588, 0.0
        %1594 = vadd.xlane.f32.xlu0 %v1593
        %v1595 = vpop.xlane.xlu0 %1594
        %v1596 = vsel %vm1488, %v1590, 0.0
        %1597 = vadd.xlane.f32.xlu0 %v1596
        %v1598 = vpop.xlane.xlu0 %1597
        %v1599 = vadd.f32 %v1591, %v1595
        %v1600 = vadd.f32 %v1592, %v1598
        %v1602 = vsel %vm1488, %v1588, 0
        %v1605 = vsel %vm1488, %v1590, 0
        %1607 = vmatprep.subr.mxu0 0.0
        %1608 = vmatpush1.msra.mxu0 0.0
        %1609 = vmatprep.subr.mxu0 0.0
        %1610 = vmatpush1.msra.mxu0 0.0
        %1611 = vmatprep.subr.mxu0 0.0
        %1612 = vmatpush1.msra.mxu0 0.0
        %1613 = vmatprep.subr.mxu0 0.0
        %1614 = vmatpush1.msra.mxu0 0.0
        %1615 = vmatprep.subr.mxu0 0.0
        %1616 = vmatpush1.msra.mxu0 0.0
        %1617 = vmatprep.subr.mxu0 0.0
        %1618 = vmatpush1.msra.mxu0 0.0
        %1619 = vmatprep.subr.mxu0 0.0
        %1620 = vmatpush1.msra.mxu0 0.0
        %1621 = vmatprep.subr.mxu0 0.0
        %1622 = vmatpush1.msra.mxu0 0.0
        %1623 = vmatprep.subr.mxu0 0.0
        %1624 = vmatpush1.msra.mxu0 0.0
        %1625 = vmatprep.subr.mxu0 0.0
        %1626 = vmatpush1.msra.mxu0 0.0
        %1627 = vmatprep.subr.mxu0 0.0
        %1628 = vmatpush1.msra.mxu0 0.0
        %1629 = vmatprep.subr.mxu0 0.0
        %1630 = vmatpush1.msra.mxu0 0.0
        %1631 = vmatprep.subr.mxu0 0.0
        %1632 = vmatpush1.msra.mxu0 0.0
        %1633 = vmatprep.subr.mxu0 0.0
        %1634 = vmatpush1.msra.mxu0 0.0
        %1635 = vmatprep.subr.mxu0 0.0
        %1636 = vmatpush1.msra.mxu0 0.0
        %1637 = vmatprep.subr.mxu0 0.0
        %1638 = vmatpush1.msra.mxu0 %v1480
        %1639 = vmatprep.subr.mxu0 0.0
        %1640 = vmatpush2.msra.mxu0 0.0
        %1641 = vmatprep.subr.mxu0 0.0
        %1642 = vmatpush2.msra.mxu0 0.0
        %1643 = vmatprep.subr.mxu0 0.0
        %1644 = vmatpush2.msra.mxu0 0.0
        %1645 = vmatprep.subr.mxu0 0.0
        %1646 = vmatpush2.msra.mxu0 0.0
        %1647 = vmatprep.subr.mxu0 0.0
        %1648 = vmatpush2.msra.mxu0 0.0
        %1649 = vmatprep.subr.mxu0 0.0
        %1650 = vmatpush2.msra.mxu0 0.0
        %1651 = vmatprep.subr.mxu0 0.0
        %1652 = vmatpush2.msra.mxu0 0.0
        %1653 = vmatprep.subr.mxu0 0.0
        %1654 = vmatpush2.msra.mxu0 0.0
        %1655 = vmatprep.subr.mxu0 0.0
        %1656 = vmatpush2.msra.mxu0 0.0
        %1657 = vmatprep.subr.mxu0 0.0
        %1658 = vmatpush2.msra.mxu0 0.0
        %1659 = vmatprep.subr.mxu0 0.0
        %1660 = vmatpush2.msra.mxu0 0.0
        %1661 = vmatprep.subr.mxu0 0.0
        %1662 = vmatpush2.msra.mxu0 0.0
        %1663 = vmatprep.subr.mxu0 0.0
        %1664 = vmatpush2.msra.mxu0 0.0
        %1665 = vmatprep.subr.mxu0 0.0
        %1666 = vmatpush2.msra.mxu0 0.0
        %1667 = vmatprep.subr.mxu0 0.0
        %1668 = vmatpush2.msra.mxu0 0.0
        %1669 = vmatprep.subr.mxu0 0.0
        %1670 = vmatpush2.msra.mxu0 0.0
        %1671 = vmatprep.mubr.f32.mxu0 0.0
        %1672 = vmatmul.mubr.f32.gmra.mxu0 %v1602
        %v1673 = vpop.f32.mrf.mxu0
        %v1674 = vadd.f32 0.0, %v1673
        %v1675 = vpop.f32.mrf.mxu0
        %1676 = vmatprep.mubr.f32.mxu0 0.0
        %1677 = vmatmul.mubr.f32.gmra.mxu0 %v1605
        %v1678 = vpop.f32.mrf.mxu0
        %v1679 = vadd.f32 0.0, %v1678
        %v1680 = vpop.f32.mrf.mxu0
        %1681 = vdwg.mxu0
        %v1682 = vadd.f32 %v1591, %v1674
        %v1683 = vadd.f32 %v1592, %v1679
        %v1685 = vsel %vm1488, %v1399, 0
        %1687 = vmatprep.subr.mxu0 0.0
        %1688 = vmatpush1.xpose.msra.mxu0 0.0
        %1689 = vmatprep.subr.mxu0 0.0
        %1690 = vmatpush1.xpose.msra.mxu0 0.0
        %1691 = vmatprep.subr.mxu0 0.0
        %1692 = vmatpush1.xpose.msra.mxu0 0.0
        %1693 = vmatprep.subr.mxu0 0.0
        %1694 = vmatpush1.xpose.msra.mxu0 0.0
        %1695 = vmatprep.subr.mxu0 0.0
        %1696 = vmatpush1.xpose.msra.mxu0 0.0
        %1697 = vmatprep.subr.mxu0 0.0
        %1698 = vmatpush1.xpose.msra.mxu0 0.0
        %1699 = vmatprep.subr.mxu0 0.0
        %1700 = vmatpush1.xpose.msra.mxu0 0.0
        %1701 = vmatprep.subr.mxu0 0.0
        %1702 = vmatpush1.xpose.msra.mxu0 0.0
        %1703 = vmatprep.subr.mxu0 0.0
        %1704 = vmatpush1.xpose.msra.mxu0 0.0
        %1705 = vmatprep.subr.mxu0 0.0
        %1706 = vmatpush1.xpose.msra.mxu0 0.0
        %1707 = vmatprep.subr.mxu0 0.0
        %1708 = vmatpush1.xpose.msra.mxu0 0.0
        %1709 = vmatprep.subr.mxu0 0.0
        %1710 = vmatpush1.xpose.msra.mxu0 0.0
        %1711 = vmatprep.subr.mxu0 0.0
        %1712 = vmatpush1.xpose.msra.mxu0 0.0
        %1713 = vmatprep.subr.mxu0 0.0
        %1714 = vmatpush1.xpose.msra.mxu0 0.0
        %1715 = vmatprep.subr.mxu0 0.0
        %1716 = vmatpush1.xpose.msra.mxu0 0.0
        %1717 = vmatprep.subr.mxu0 0.0
        %1718 = vmatpush1.xpose.msra.mxu0 %v1685
        %1719 = vmatprep.subr.mxu0 0.0
        %1720 = vmatpush2.xpose.msra.mxu0 0.0
        %1721 = vmatprep.subr.mxu0 0.0
        %1722 = vmatpush2.xpose.msra.mxu0 0.0
        %1723 = vmatprep.subr.mxu0 0.0
        %1724 = vmatpush2.xpose.msra.mxu0 0.0
        %1725 = vmatprep.subr.mxu0 0.0
        %1726 = vmatpush2.xpose.msra.mxu0 0.0
        %1727 = vmatprep.subr.mxu0 0.0
        %1728 = vmatpush2.xpose.msra.mxu0 0.0
        %1729 = vmatprep.subr.mxu0 0.0
        %1730 = vmatpush2.xpose.msra.mxu0 0.0
        %1731 = vmatprep.subr.mxu0 0.0
        %1732 = vmatpush2.xpose.msra.mxu0 0.0
        %1733 = vmatprep.subr.mxu0 0.0
        %1734 = vmatpush2.xpose.msra.mxu0 0.0
        %1735 = vmatprep.subr.mxu0 0.0
        %1736 = vmatpush2.xpose.msra.mxu0 0.0
        %1737 = vmatprep.subr.mxu0 0.0
        %1738 = vmatpush2.xpose.msra.mxu0 0.0
        %1739 = vmatprep.subr.mxu0 0.0
        %1740 = vmatpush2.xpose.msra.mxu0 0.0
        %1741 = vmatprep.subr.mxu0 0.0
        %1742 = vmatpush2.xpose.msra.mxu0 0.0
        %1743 = vmatprep.subr.mxu0 0.0
        %1744 = vmatpush2.xpose.msra.mxu0 0.0
        %1745 = vmatprep.subr.mxu0 0.0
        %1746 = vmatpush2.xpose.msra.mxu0 0.0
        %1747 = vmatprep.subr.mxu0 0.0
        %1748 = vmatpush2.xpose.msra.mxu0 0.0
        %1749 = vmatprep.subr.mxu0 0.0
        %1750 = vmatpush2.xpose.msra.mxu0 0.0
        %1751 = vmatprep.mubr.f32.mxu0 0.0
        %1752 = vmatmul.mubr.f32.gmra.mxu0 %v1490
        %v1753 = vpop.f32.mrf.mxu0
        %v1754 = vadd.f32 0.0, %v1753
        %v1755 = vpop.f32.mrf.mxu0
        %1756 = vmatprep.mubr.f32.mxu0 0.0
        %1757 = vmatmul.mubr.f32.gmra.mxu0 %v1493
        %v1758 = vpop.f32.mrf.mxu0
        %v1759 = vadd.f32 0.0, %v1758
        %v1760 = vpop.f32.mrf.mxu0
        %1761 = vdwg.mxu0
        %v1762 = vsel %vm1488, %v1754, -inf
        %1763 = vmax.xlane.f32.xlu0 %v1762
        %v1764 = vpop.xlane.xlu0 %1763
        %v1765 = vsel %vm1488, %v1759, -inf
        %1766 = vmax.xlane.f32.xlu0 %v1765
        %v1767 = vpop.xlane.xlu0 %1766
        %v1768 = vmax.f32 %v1575, %v1764
        %v1769 = vmax.f32 %v1578, %v1767
        %v1770 = vsub.f32 %v1575, %v1768
        %v1771 = vsub.f32 %v1578, %v1769
        %v1772 = vmul.f32 %v1770, 1.442695
        %v1773 = vpow.pop %v1772
        %v1774 = vmul.f32 %v1771, 1.442695
        %v1775 = vpow.pop %v1774
        %v1776 = vsub.f32 %v1754, %v1768
        %v1777 = vsub.f32 %v1759, %v1769
        %v1778 = vmul.f32 %v1776, 1.442695
        %v1779 = vpow.pop %v1778
        %v1780 = vmul.f32 %v1777, 1.442695
        %v1781 = vpow.pop %v1780
        %v1782 = vmul.f32 %v1773, %v1599
        %v1783 = vmul.f32 %v1775, %v1600
        %v1784 = vsel %vm1488, %v1779, 0.0
        %1785 = vadd.xlane.f32.xlu0 %v1784
        %v1786 = vpop.xlane.xlu0 %1785
        %v1787 = vsel %vm1488, %v1781, 0.0
        %1788 = vadd.xlane.f32.xlu0 %v1787
        %v1789 = vpop.xlane.xlu0 %1788
        %v1790 = vadd.f32 %v1782, %v1786
        %v1791 = vadd.f32 %v1783, %v1789
        %v1792 = vmul.f32 %v1773, %v1682
        %v1793 = vmul.f32 %v1775, %v1683
        %v1795 = vsel %vm1488, %v1779, 0
        %v1798 = vsel %vm1488, %v1781, 0
        %1800 = vmatprep.subr.mxu0 0.0
        %1801 = vmatpush1.msra.mxu0 0.0
        %1802 = vmatprep.subr.mxu0 0.0
        %1803 = vmatpush1.msra.mxu0 0.0
        %1804 = vmatprep.subr.mxu0 0.0
        %1805 = vmatpush1.msra.mxu0 0.0
        %1806 = vmatprep.subr.mxu0 0.0
        %1807 = vmatpush1.msra.mxu0 0.0
        %1808 = vmatprep.subr.mxu0 0.0
        %1809 = vmatpush1.msra.mxu0 0.0
        %1810 = vmatprep.subr.mxu0 0.0
        %1811 = vmatpush1.msra.mxu0 0.0
        %1812 = vmatprep.subr.mxu0 0.0
        %1813 = vmatpush1.msra.mxu0 0.0
        %1814 = vmatprep.subr.mxu0 0.0
        %1815 = vmatpush1.msra.mxu0 0.0
        %1816 = vmatprep.subr.mxu0 0.0
        %1817 = vmatpush1.msra.mxu0 0.0
        %1818 = vmatprep.subr.mxu0 0.0
        %1819 = vmatpush1.msra.mxu0 0.0
        %1820 = vmatprep.subr.mxu0 0.0
        %1821 = vmatpush1.msra.mxu0 0.0
        %1822 = vmatprep.subr.mxu0 0.0
        %1823 = vmatpush1.msra.mxu0 0.0
        %1824 = vmatprep.subr.mxu0 0.0
        %1825 = vmatpush1.msra.mxu0 0.0
        %1826 = vmatprep.subr.mxu0 0.0
        %1827 = vmatpush1.msra.mxu0 0.0
        %1828 = vmatprep.subr.mxu0 0.0
        %1829 = vmatpush1.msra.mxu0 0.0
        %1830 = vmatprep.subr.mxu0 0.0
        %1831 = vmatpush1.msra.mxu0 %v1485
        %1832 = vmatprep.subr.mxu0 0.0
        %1833 = vmatpush2.msra.mxu0 0.0
        %1834 = vmatprep.subr.mxu0 0.0
        %1835 = vmatpush2.msra.mxu0 0.0
        %1836 = vmatprep.subr.mxu0 0.0
        %1837 = vmatpush2.msra.mxu0 0.0
        %1838 = vmatprep.subr.mxu0 0.0
        %1839 = vmatpush2.msra.mxu0 0.0
        %1840 = vmatprep.subr.mxu0 0.0
        %1841 = vmatpush2.msra.mxu0 0.0
        %1842 = vmatprep.subr.mxu0 0.0
        %1843 = vmatpush2.msra.mxu0 0.0
        %1844 = vmatprep.subr.mxu0 0.0
        %1845 = vmatpush2.msra.mxu0 0.0
        %1846 = vmatprep.subr.mxu0 0.0
        %1847 = vmatpush2.msra.mxu0 0.0
        %1848 = vmatprep.subr.mxu0 0.0
        %1849 = vmatpush2.msra.mxu0 0.0
        %1850 = vmatprep.subr.mxu0 0.0
        %1851 = vmatpush2.msra.mxu0 0.0
        %1852 = vmatprep.subr.mxu0 0.0
        %1853 = vmatpush2.msra.mxu0 0.0
        %1854 = vmatprep.subr.mxu0 0.0
        %1855 = vmatpush2.msra.mxu0 0.0
        %1856 = vmatprep.subr.mxu0 0.0
        %1857 = vmatpush2.msra.mxu0 0.0
        %1858 = vmatprep.subr.mxu0 0.0
        %1859 = vmatpush2.msra.mxu0 0.0
        %1860 = vmatprep.subr.mxu0 0.0
        %1861 = vmatpush2.msra.mxu0 0.0
        %1862 = vmatprep.subr.mxu0 0.0
        %1863 = vmatpush2.msra.mxu0 0.0
        %1864 = vmatprep.mubr.f32.mxu0 0.0
        %1865 = vmatmul.mubr.f32.gmra.mxu0 %v1795
        %v1866 = vpop.f32.mrf.mxu0
        %v1867 = vadd.f32 0.0, %v1866
        %v1868 = vpop.f32.mrf.mxu0
        %1869 = vmatprep.mubr.f32.mxu0 0.0
        %1870 = vmatmul.mubr.f32.gmra.mxu0 %v1798
        %v1871 = vpop.f32.mrf.mxu0
        %v1872 = vadd.f32 0.0, %v1871
        %v1873 = vpop.f32.mrf.mxu0
        %1874 = vdwg.mxu0
        %v1875 = vadd.f32 %v1792, %v1867
        %v1876 = vadd.f32 %v1793, %v1872
        %v1877 = vrcp.pop %v1790
        %v1878 = vmul.f32 %v1875, %v1877
        %v1879 = vrcp.pop %v1791
        %v1880 = vmul.f32 %v1876, %v1879
        %v1881 = vld [vmem:[%s903] sm:$0xff]
        %s1882 = scalar_lea.vmem %s876, 32
        %v1883 = vld [vmem:[%s1882] sm:$0xff]
        %v1884 = vld [vmem:[%s1882 + $0x8] sm:$0xff]
        %v1885 = vld [vmem:[%s1882 + $0x10] sm:$0xff]
        %v1886 = vld [vmem:[%s1882 + $0x18] sm:$0xff]
        %s1887 = scalar_lea.vmem %s880, 1
        %v1888 = vld [vmem:[%s1887] sm:$0x1]
        %v1890 = vlaneseq
        %v1891 = vshrl.u32 %v1890, 7
        %v1892 = vsub.s32 0, %v1891
        %v1893 = vrot.slane %v1888, %v1892
        %1895 = vmatprep.subr.mxu0 0.0
        %1896 = vmatpush1.msra.mxu0 0.0
        %1897 = vmatprep.subr.mxu0 0.0
        %1898 = vmatpush1.msra.mxu0 0.0
        %1899 = vmatprep.subr.mxu0 0.0
        %1900 = vmatpush1.msra.mxu0 0.0
        %1901 = vmatprep.subr.mxu0 0.0
        %1902 = vmatpush1.msra.mxu0 0.0
        %1903 = vmatprep.subr.mxu0 0.0
        %1904 = vmatpush1.msra.mxu0 0.0
        %1905 = vmatprep.subr.mxu0 0.0
        %1906 = vmatpush1.msra.mxu0 0.0
        %1907 = vmatprep.subr.mxu0 0.0
        %1908 = vmatpush1.msra.mxu0 0.0
        %1909 = vmatprep.subr.mxu0 0.0
        %1910 = vmatpush1.msra.mxu0 0.0
        %1911 = vmatprep.subr.mxu0 0.0
        %1912 = vmatpush1.msra.mxu0 0.0
        %1913 = vmatprep.subr.mxu0 0.0
        %1914 = vmatpush1.msra.mxu0 0.0
        %1915 = vmatprep.subr.mxu0 0.0
        %1916 = vmatpush1.msra.mxu0 0.0
        %1917 = vmatprep.subr.mxu0 0.0
        %1918 = vmatpush1.msra.mxu0 0.0
        %1919 = vmatprep.subr.mxu0 0.0
        %1920 = vmatpush1.msra.mxu0 %v1886
        %1921 = vmatprep.subr.mxu0 0.0
        %1922 = vmatpush1.msra.mxu0 %v1885
        %1923 = vmatprep.subr.mxu0 0.0
        %1924 = vmatpush1.msra.mxu0 %v1884
        %1925 = vmatprep.subr.mxu0 0.0
        %1926 = vmatpush1.msra.mxu0 %v1883
        %1927 = vmatprep.subr.mxu0 0.0
        %1928 = vmatpush2.msra.mxu0 0.0
        %1929 = vmatprep.subr.mxu0 0.0
        %1930 = vmatpush2.msra.mxu0 0.0
        %1931 = vmatprep.subr.mxu0 0.0
        %1932 = vmatpush2.msra.mxu0 0.0
        %1933 = vmatprep.subr.mxu0 0.0
        %1934 = vmatpush2.msra.mxu0 0.0
        %1935 = vmatprep.subr.mxu0 0.0
        %1936 = vmatpush2.msra.mxu0 0.0
        %1937 = vmatprep.subr.mxu0 0.0
        %1938 = vmatpush2.msra.mxu0 0.0
        %1939 = vmatprep.subr.mxu0 0.0
        %1940 = vmatpush2.msra.mxu0 0.0
        %1941 = vmatprep.subr.mxu0 0.0
        %1942 = vmatpush2.msra.mxu0 0.0
        %1943 = vmatprep.subr.mxu0 0.0
        %1944 = vmatpush2.msra.mxu0 0.0
        %1945 = vmatprep.subr.mxu0 0.0
        %1946 = vmatpush2.msra.mxu0 0.0
        %1947 = vmatprep.subr.mxu0 0.0
        %1948 = vmatpush2.msra.mxu0 0.0
        %1949 = vmatprep.subr.mxu0 0.0
        %1950 = vmatpush2.msra.mxu0 0.0
        %1951 = vmatprep.subr.mxu0 0.0
        %1952 = vmatpush2.msra.mxu0 0.0
        %1953 = vmatprep.subr.mxu0 0.0
        %1954 = vmatpush2.msra.mxu0 0.0
        %1955 = vmatprep.subr.mxu0 0.0
        %1956 = vmatpush2.msra.mxu0 0.0
        %1957 = vmatprep.subr.mxu0 0.0
        %1958 = vmatpush2.msra.mxu0 0.0
        %1959 = vmatprep.mubr.f32.mxu0 0.0
        %1960 = vmatmul.mubr.f32.gmra.mxu0 %v1236
        %v1961 = vpop.f32.mrf.mxu0
        %v1962 = vadd.f32 %v1893, %v1961
        %v1963 = vpop.f32.mrf.mxu0
        %1964 = vmatprep.mubr.f32.mxu0 0.0
        %1965 = vmatmul.mubr.f32.gmra.mxu0 %v1239
        %v1966 = vpop.f32.mrf.mxu0
        %v1967 = vadd.f32 %v1893, %v1966
        %v1968 = vpop.f32.mrf.mxu0
        %1969 = vdwg.mxu0
        %s1970 = scalar_lea.vmem %s885, 32
        %v1971 = vld [vmem:[%s1970] sm:$0xff]
        %v1972 = vld [vmem:[%s1970 + $0x8] sm:$0xff]
        %v1973 = vld [vmem:[%s1970 + $0x10] sm:$0xff]
        %v1974 = vld [vmem:[%s1970 + $0x18] sm:$0xff]
        %s1975 = scalar_lea.vmem %s889, 1
        %v1976 = vld [vmem:[%s1975] sm:$0x1]
        %v1978 = vlaneseq
        %v1979 = vshrl.u32 %v1978, 7
        %v1980 = vsub.s32 0, %v1979
        %v1981 = vrot.slane %v1976, %v1980
        %1983 = vmatprep.subr.mxu0 0.0
        %1984 = vmatpush1.msra.mxu0 0.0
        %1985 = vmatprep.subr.mxu0 0.0
        %1986 = vmatpush1.msra.mxu0 0.0
        %1987 = vmatprep.subr.mxu0 0.0
        %1988 = vmatpush1.msra.mxu0 0.0
        %1989 = vmatprep.subr.mxu0 0.0
        %1990 = vmatpush1.msra.mxu0 0.0
        %1991 = vmatprep.subr.mxu0 0.0
        %1992 = vmatpush1.msra.mxu0 0.0
        %1993 = vmatprep.subr.mxu0 0.0
        %1994 = vmatpush1.msra.mxu0 0.0
        %1995 = vmatprep.subr.mxu0 0.0
        %1996 = vmatpush1.msra.mxu0 0.0
        %1997 = vmatprep.subr.mxu0 0.0
        %1998 = vmatpush1.msra.mxu0 0.0
        %1999 = vmatprep.subr.mxu0 0.0
        %2000 = vmatpush1.msra.mxu0 0.0
        %2001 = vmatprep.subr.mxu0 0.0
        %2002 = vmatpush1.msra.mxu0 0.0
        %2003 = vmatprep.subr.mxu0 0.0
        %2004 = vmatpush1.msra.mxu0 0.0
        %2005 = vmatprep.subr.mxu0 0.0
        %2006 = vmatpush1.msra.mxu0 0.0
        %2007 = vmatprep.subr.mxu0 0.0
        %2008 = vmatpush1.msra.mxu0 %v1974
        %2009 = vmatprep.subr.mxu0 0.0
        %2010 = vmatpush1.msra.mxu0 %v1973
        %2011 = vmatprep.subr.mxu0 0.0
        %2012 = vmatpush1.msra.mxu0 %v1972
        %2013 = vmatprep.subr.mxu0 0.0
        %2014 = vmatpush1.msra.mxu0 %v1971
        %2015 = vmatprep.subr.mxu0 0.0
        %2016 = vmatpush2.msra.mxu0 0.0
        %2017 = vmatprep.subr.mxu0 0.0
        %2018 = vmatpush2.msra.mxu0 0.0
        %2019 = vmatprep.subr.mxu0 0.0
        %2020 = vmatpush2.msra.mxu0 0.0
        %2021 = vmatprep.subr.mxu0 0.0
        %2022 = vmatpush2.msra.mxu0 0.0
        %2023 = vmatprep.subr.mxu0 0.0
        %2024 = vmatpush2.msra.mxu0 0.0
        %2025 = vmatprep.subr.mxu0 0.0
        %2026 = vmatpush2.msra.mxu0 0.0
        %2027 = vmatprep.subr.mxu0 0.0
        %2028 = vmatpush2.msra.mxu0 0.0
        %2029 = vmatprep.subr.mxu0 0.0
        %2030 = vmatpush2.msra.mxu0 0.0
        %2031 = vmatprep.subr.mxu0 0.0
        %2032 = vmatpush2.msra.mxu0 0.0
        %2033 = vmatprep.subr.mxu0 0.0
        %2034 = vmatpush2.msra.mxu0 0.0
        %2035 = vmatprep.subr.mxu0 0.0
        %2036 = vmatpush2.msra.mxu0 0.0
        %2037 = vmatprep.subr.mxu0 0.0
        %2038 = vmatpush2.msra.mxu0 0.0
        %2039 = vmatprep.subr.mxu0 0.0
        %2040 = vmatpush2.msra.mxu0 0.0
        %2041 = vmatprep.subr.mxu0 0.0
        %2042 = vmatpush2.msra.mxu0 0.0
        %2043 = vmatprep.subr.mxu0 0.0
        %2044 = vmatpush2.msra.mxu0 0.0
        %2045 = vmatprep.subr.mxu0 0.0
        %2046 = vmatpush2.msra.mxu0 0.0
        %2047 = vmatprep.mubr.f32.mxu0 0.0
        %2048 = vmatmul.mubr.f32.gmra.mxu0 %v1236
        %v2049 = vpop.f32.mrf.mxu0
        %v2050 = vadd.f32 %v1981, %v2049
        %v2051 = vpop.f32.mrf.mxu0
        %2052 = vmatprep.mubr.f32.mxu0 0.0
        %2053 = vmatmul.mubr.f32.gmra.mxu0 %v1239
        %v2054 = vpop.f32.mrf.mxu0
        %v2055 = vadd.f32 %v1981, %v2054
        %v2056 = vpop.f32.mrf.mxu0
        %2057 = vdwg.mxu0
        %s2058 = scalar_lea.vmem %s894, 32
        %v2059 = vld [vmem:[%s2058] sm:$0xff]
        %v2060 = vld [vmem:[%s2058 + $0x8] sm:$0xff]
        %v2061 = vld [vmem:[%s2058 + $0x10] sm:$0xff]
        %v2062 = vld [vmem:[%s2058 + $0x18] sm:$0xff]
        %s2063 = scalar_lea.vmem %s898, 1
        %v2064 = vld [vmem:[%s2063] sm:$0x1]
        %v2066 = vlaneseq
        %v2067 = vshrl.u32 %v2066, 7
        %v2068 = vsub.s32 0, %v2067
        %v2069 = vrot.slane %v2064, %v2068
        %2071 = vmatprep.subr.mxu0 0.0
        %2072 = vmatpush1.msra.mxu0 0.0
        %2073 = vmatprep.subr.mxu0 0.0
        %2074 = vmatpush1.msra.mxu0 0.0
        %2075 = vmatprep.subr.mxu0 0.0
        %2076 = vmatpush1.msra.mxu0 0.0
        %2077 = vmatprep.subr.mxu0 0.0
        %2078 = vmatpush1.msra.mxu0 0.0
        %2079 = vmatprep.subr.mxu0 0.0
        %2080 = vmatpush1.msra.mxu0 0.0
        %2081 = vmatprep.subr.mxu0 0.0
        %2082 = vmatpush1.msra.mxu0 0.0
        %2083 = vmatprep.subr.mxu0 0.0
        %2084 = vmatpush1.msra.mxu0 0.0
        %2085 = vmatprep.subr.mxu0 0.0
        %2086 = vmatpush1.msra.mxu0 0.0
        %2087 = vmatprep.subr.mxu0 0.0
        %2088 = vmatpush1.msra.mxu0 0.0
        %2089 = vmatprep.subr.mxu0 0.0
        %2090 = vmatpush1.msra.mxu0 0.0
        %2091 = vmatprep.subr.mxu0 0.0
        %2092 = vmatpush1.msra.mxu0 0.0
        %2093 = vmatprep.subr.mxu0 0.0
        %2094 = vmatpush1.msra.mxu0 0.0
        %2095 = vmatprep.subr.mxu0 0.0
        %2096 = vmatpush1.msra.mxu0 %v2062
        %2097 = vmatprep.subr.mxu0 0.0
        %2098 = vmatpush1.msra.mxu0 %v2061
        %2099 = vmatprep.subr.mxu0 0.0
        %2100 = vmatpush1.msra.mxu0 %v2060
        %2101 = vmatprep.subr.mxu0 0.0
        %2102 = vmatpush1.msra.mxu0 %v2059
        %2103 = vmatprep.subr.mxu0 0.0
        %2104 = vmatpush2.msra.mxu0 0.0
        %2105 = vmatprep.subr.mxu0 0.0
        %2106 = vmatpush2.msra.mxu0 0.0
        %2107 = vmatprep.subr.mxu0 0.0
        %2108 = vmatpush2.msra.mxu0 0.0
        %2109 = vmatprep.subr.mxu0 0.0
        %2110 = vmatpush2.msra.mxu0 0.0
        %2111 = vmatprep.subr.mxu0 0.0
        %2112 = vmatpush2.msra.mxu0 0.0
        %2113 = vmatprep.subr.mxu0 0.0
        %2114 = vmatpush2.msra.mxu0 0.0
        %2115 = vmatprep.subr.mxu0 0.0
        %2116 = vmatpush2.msra.mxu0 0.0
        %2117 = vmatprep.subr.mxu0 0.0
        %2118 = vmatpush2.msra.mxu0 0.0
        %2119 = vmatprep.subr.mxu0 0.0
        %2120 = vmatpush2.msra.mxu0 0.0
        %2121 = vmatprep.subr.mxu0 0.0
        %2122 = vmatpush2.msra.mxu0 0.0
        %2123 = vmatprep.subr.mxu0 0.0
        %2124 = vmatpush2.msra.mxu0 0.0
        %2125 = vmatprep.subr.mxu0 0.0
        %2126 = vmatpush2.msra.mxu0 0.0
        %2127 = vmatprep.subr.mxu0 0.0
        %2128 = vmatpush2.msra.mxu0 0.0
        %2129 = vmatprep.subr.mxu0 0.0
        %2130 = vmatpush2.msra.mxu0 0.0
        %2131 = vmatprep.subr.mxu0 0.0
        %2132 = vmatpush2.msra.mxu0 0.0
        %2133 = vmatprep.subr.mxu0 0.0
        %2134 = vmatpush2.msra.mxu0 0.0
        %2135 = vmatprep.mubr.f32.mxu0 0.0
        %2136 = vmatmul.mubr.f32.gmra.mxu0 %v1236
        %v2137 = vpop.f32.mrf.mxu0
        %v2138 = vadd.f32 %v2069, %v2137
        %v2139 = vpop.f32.mrf.mxu0
        %2140 = vmatprep.mubr.f32.mxu0 0.0
        %2141 = vmatmul.mubr.f32.gmra.mxu0 %v1239
        %v2142 = vpop.f32.mrf.mxu0
        %v2143 = vadd.f32 %v2069, %v2142
        %v2144 = vpop.f32.mrf.mxu0
        %2145 = vdwg.mxu0
        %v2147 = vsel %vm1488, %v1962, 0
        %v2150 = vsel %vm1488, %v1967, 0
        %v2153 = vsel %vm1488, %v2050, 0
        %2155 = vmatprep.subr.mxu0 0.0
        %2156 = vmatpush1.xpose.msra.mxu0 0.0
        %2157 = vmatprep.subr.mxu0 0.0
        %2158 = vmatpush1.xpose.msra.mxu0 0.0
        %2159 = vmatprep.subr.mxu0 0.0
        %2160 = vmatpush1.xpose.msra.mxu0 0.0
        %2161 = vmatprep.subr.mxu0 0.0
        %2162 = vmatpush1.xpose.msra.mxu0 0.0
        %2163 = vmatprep.subr.mxu0 0.0
        %2164 = vmatpush1.xpose.msra.mxu0 0.0
        %2165 = vmatprep.subr.mxu0 0.0
        %2166 = vmatpush1.xpose.msra.mxu0 0.0
        %2167 = vmatprep.subr.mxu0 0.0
        %2168 = vmatpush1.xpose.msra.mxu0 0.0
        %2169 = vmatprep.subr.mxu0 0.0
        %2170 = vmatpush1.xpose.msra.mxu0 0.0
        %2171 = vmatprep.subr.mxu0 0.0
        %2172 = vmatpush1.xpose.msra.mxu0 0.0
        %2173 = vmatprep.subr.mxu0 0.0
        %2174 = vmatpush1.xpose.msra.mxu0 0.0
        %2175 = vmatprep.subr.mxu0 0.0
        %2176 = vmatpush1.xpose.msra.mxu0 0.0
        %2177 = vmatprep.subr.mxu0 0.0
        %2178 = vmatpush1.xpose.msra.mxu0 0.0
        %2179 = vmatprep.subr.mxu0 0.0
        %2180 = vmatpush1.xpose.msra.mxu0 0.0
        %2181 = vmatprep.subr.mxu0 0.0
        %2182 = vmatpush1.xpose.msra.mxu0 0.0
        %2183 = vmatprep.subr.mxu0 0.0
        %2184 = vmatpush1.xpose.msra.mxu0 0.0
        %2185 = vmatprep.subr.mxu0 0.0
        %2186 = vmatpush1.xpose.msra.mxu0 %v2153
        %2187 = vmatprep.subr.mxu0 0.0
        %2188 = vmatpush2.xpose.msra.mxu0 0.0
        %2189 = vmatprep.subr.mxu0 0.0
        %2190 = vmatpush2.xpose.msra.mxu0 0.0
        %2191 = vmatprep.subr.mxu0 0.0
        %2192 = vmatpush2.xpose.msra.mxu0 0.0
        %2193 = vmatprep.subr.mxu0 0.0
        %2194 = vmatpush2.xpose.msra.mxu0 0.0
        %2195 = vmatprep.subr.mxu0 0.0
        %2196 = vmatpush2.xpose.msra.mxu0 0.0
        %2197 = vmatprep.subr.mxu0 0.0
        %2198 = vmatpush2.xpose.msra.mxu0 0.0
        %2199 = vmatprep.subr.mxu0 0.0
        %2200 = vmatpush2.xpose.msra.mxu0 0.0
        %2201 = vmatprep.subr.mxu0 0.0
        %2202 = vmatpush2.xpose.msra.mxu0 0.0
        %2203 = vmatprep.subr.mxu0 0.0
        %2204 = vmatpush2.xpose.msra.mxu0 0.0
        %2205 = vmatprep.subr.mxu0 0.0
        %2206 = vmatpush2.xpose.msra.mxu0 0.0
        %2207 = vmatprep.subr.mxu0 0.0
        %2208 = vmatpush2.xpose.msra.mxu0 0.0
        %2209 = vmatprep.subr.mxu0 0.0
        %2210 = vmatpush2.xpose.msra.mxu0 0.0
        %2211 = vmatprep.subr.mxu0 0.0
        %2212 = vmatpush2.xpose.msra.mxu0 0.0
        %2213 = vmatprep.subr.mxu0 0.0
        %2214 = vmatpush2.xpose.msra.mxu0 0.0
        %2215 = vmatprep.subr.mxu0 0.0
        %2216 = vmatpush2.xpose.msra.mxu0 0.0
        %2217 = vmatprep.subr.mxu0 0.0
        %2218 = vmatpush2.xpose.msra.mxu0 0.0
        %2219 = vmatprep.mubr.f32.mxu0 0.0
        %2220 = vmatmul.mubr.f32.gmra.mxu0 %v2147
        %v2221 = vpop.f32.mrf.mxu0
        %v2222 = vadd.f32 0.0, %v2221
        %v2223 = vpop.f32.mrf.mxu0
        %2224 = vmatprep.mubr.f32.mxu0 0.0
        %2225 = vmatmul.mubr.f32.gmra.mxu0 %v2150
        %v2226 = vpop.f32.mrf.mxu0
        %v2227 = vadd.f32 0.0, %v2226
        %v2228 = vpop.f32.mrf.mxu0
        %2229 = vdwg.mxu0
        %v2230 = vsel %vm1488, %v2222, -inf
        %2231 = vmax.xlane.f32.xlu0 %v2230
        %v2232 = vpop.xlane.xlu0 %2231
        %v2233 = vsel %vm1488, %v2227, -inf
        %2234 = vmax.xlane.f32.xlu0 %v2233
        %v2235 = vpop.xlane.xlu0 %2234
        %v2236 = vsub.f32 -inf, %v2232
        %v2237 = vsub.f32 -inf, %v2235
        %v2238 = vmul.f32 %v2236, 1.442695
        %v2239 = vpow.pop %v2238
        %v2240 = vmul.f32 %v2237, 1.442695
        %v2241 = vpow.pop %v2240
        %v2242 = vsub.f32 %v2222, %v2232
        %v2243 = vsub.f32 %v2227, %v2235
        %v2244 = vmul.f32 %v2242, 1.442695
        %v2245 = vpow.pop %v2244
        %v2246 = vmul.f32 %v2243, 1.442695
        %v2247 = vpow.pop %v2246
        %v2248 = vmul.f32 %v2239, 0.0
        %v2249 = vmul.f32 %v2241, 0.0
        %v2250 = vsel %vm1488, %v2245, 0.0
        %2251 = vadd.xlane.f32.xlu0 %v2250
        %v2252 = vpop.xlane.xlu0 %2251
        %v2253 = vsel %vm1488, %v2247, 0.0
        %2254 = vadd.xlane.f32.xlu0 %v2253
        %v2255 = vpop.xlane.xlu0 %2254
        %v2256 = vadd.f32 %v2248, %v2252
        %v2257 = vadd.f32 %v2249, %v2255
        %v2259 = vsel %vm1488, %v2245, 0
        %v2262 = vsel %vm1488, %v2247, 0
        %2264 = vmatprep.subr.mxu0 0.0
        %2265 = vmatpush1.msra.mxu0 0.0
        %2266 = vmatprep.subr.mxu0 0.0
        %2267 = vmatpush1.msra.mxu0 0.0
        %2268 = vmatprep.subr.mxu0 0.0
        %2269 = vmatpush1.msra.mxu0 0.0
        %2270 = vmatprep.subr.mxu0 0.0
        %2271 = vmatpush1.msra.mxu0 0.0
        %2272 = vmatprep.subr.mxu0 0.0
        %2273 = vmatpush1.msra.mxu0 0.0
        %2274 = vmatprep.subr.mxu0 0.0
        %2275 = vmatpush1.msra.mxu0 0.0
        %2276 = vmatprep.subr.mxu0 0.0
        %2277 = vmatpush1.msra.mxu0 0.0
        %2278 = vmatprep.subr.mxu0 0.0
        %2279 = vmatpush1.msra.mxu0 0.0
        %2280 = vmatprep.subr.mxu0 0.0
        %2281 = vmatpush1.msra.mxu0 0.0
        %2282 = vmatprep.subr.mxu0 0.0
        %2283 = vmatpush1.msra.mxu0 0.0
        %2284 = vmatprep.subr.mxu0 0.0
        %2285 = vmatpush1.msra.mxu0 0.0
        %2286 = vmatprep.subr.mxu0 0.0
        %2287 = vmatpush1.msra.mxu0 0.0
        %2288 = vmatprep.subr.mxu0 0.0
        %2289 = vmatpush1.msra.mxu0 0.0
        %2290 = vmatprep.subr.mxu0 0.0
        %2291 = vmatpush1.msra.mxu0 0.0
        %2292 = vmatprep.subr.mxu0 0.0
        %2293 = vmatpush1.msra.mxu0 0.0
        %2294 = vmatprep.subr.mxu0 0.0
        %2295 = vmatpush1.msra.mxu0 %v2138
        %2296 = vmatprep.subr.mxu0 0.0
        %2297 = vmatpush2.msra.mxu0 0.0
        %2298 = vmatprep.subr.mxu0 0.0
        %2299 = vmatpush2.msra.mxu0 0.0
        %2300 = vmatprep.subr.mxu0 0.0
        %2301 = vmatpush2.msra.mxu0 0.0
        %2302 = vmatprep.subr.mxu0 0.0
        %2303 = vmatpush2.msra.mxu0 0.0
        %2304 = vmatprep.subr.mxu0 0.0
        %2305 = vmatpush2.msra.mxu0 0.0
        %2306 = vmatprep.subr.mxu0 0.0
        %2307 = vmatpush2.msra.mxu0 0.0
        %2308 = vmatprep.subr.mxu0 0.0
        %2309 = vmatpush2.msra.mxu0 0.0
        %2310 = vmatprep.subr.mxu0 0.0
        %2311 = vmatpush2.msra.mxu0 0.0
        %2312 = vmatprep.subr.mxu0 0.0
        %2313 = vmatpush2.msra.mxu0 0.0
        %2314 = vmatprep.subr.mxu0 0.0
        %2315 = vmatpush2.msra.mxu0 0.0
        %2316 = vmatprep.subr.mxu0 0.0
        %2317 = vmatpush2.msra.mxu0 0.0
        %2318 = vmatprep.subr.mxu0 0.0
        %2319 = vmatpush2.msra.mxu0 0.0
        %2320 = vmatprep.subr.mxu0 0.0
        %2321 = vmatpush2.msra.mxu0 0.0
        %2322 = vmatprep.subr.mxu0 0.0
        %2323 = vmatpush2.msra.mxu0 0.0
        %2324 = vmatprep.subr.mxu0 0.0
        %2325 = vmatpush2.msra.mxu0 0.0
        %2326 = vmatprep.subr.mxu0 0.0
        %2327 = vmatpush2.msra.mxu0 0.0
        %2328 = vmatprep.mubr.f32.mxu0 0.0
        %2329 = vmatmul.mubr.f32.gmra.mxu0 %v2259
        %v2330 = vpop.f32.mrf.mxu0
        %v2331 = vadd.f32 0.0, %v2330
        %v2332 = vpop.f32.mrf.mxu0
        %2333 = vmatprep.mubr.f32.mxu0 0.0
        %2334 = vmatmul.mubr.f32.gmra.mxu0 %v2262
        %v2335 = vpop.f32.mrf.mxu0
        %v2336 = vadd.f32 0.0, %v2335
        %v2337 = vpop.f32.mrf.mxu0
        %2338 = vdwg.mxu0
        %v2339 = vadd.f32 %v2248, %v2331
        %v2340 = vadd.f32 %v2249, %v2336
        %v2342 = vsel %vm1488, %v2055, 0
        %2344 = vmatprep.subr.mxu0 0.0
        %2345 = vmatpush1.xpose.msra.mxu0 0.0
        %2346 = vmatprep.subr.mxu0 0.0
        %2347 = vmatpush1.xpose.msra.mxu0 0.0
        %2348 = vmatprep.subr.mxu0 0.0
        %2349 = vmatpush1.xpose.msra.mxu0 0.0
        %2350 = vmatprep.subr.mxu0 0.0
        %2351 = vmatpush1.xpose.msra.mxu0 0.0
        %2352 = vmatprep.subr.mxu0 0.0
        %2353 = vmatpush1.xpose.msra.mxu0 0.0
        %2354 = vmatprep.subr.mxu0 0.0
        %2355 = vmatpush1.xpose.msra.mxu0 0.0
        %2356 = vmatprep.subr.mxu0 0.0
        %2357 = vmatpush1.xpose.msra.mxu0 0.0
        %2358 = vmatprep.subr.mxu0 0.0
        %2359 = vmatpush1.xpose.msra.mxu0 0.0
        %2360 = vmatprep.subr.mxu0 0.0
        %2361 = vmatpush1.xpose.msra.mxu0 0.0
        %2362 = vmatprep.subr.mxu0 0.0
        %2363 = vmatpush1.xpose.msra.mxu0 0.0
        %2364 = vmatprep.subr.mxu0 0.0
        %2365 = vmatpush1.xpose.msra.mxu0 0.0
        %2366 = vmatprep.subr.mxu0 0.0
        %2367 = vmatpush1.xpose.msra.mxu0 0.0
        %2368 = vmatprep.subr.mxu0 0.0
        %2369 = vmatpush1.xpose.msra.mxu0 0.0
        %2370 = vmatprep.subr.mxu0 0.0
        %2371 = vmatpush1.xpose.msra.mxu0 0.0
        %2372 = vmatprep.subr.mxu0 0.0
        %2373 = vmatpush1.xpose.msra.mxu0 0.0
        %2374 = vmatprep.subr.mxu0 0.0
        %2375 = vmatpush1.xpose.msra.mxu0 %v2342
        %2376 = vmatprep.subr.mxu0 0.0
        %2377 = vmatpush2.xpose.msra.mxu0 0.0
        %2378 = vmatprep.subr.mxu0 0.0
        %2379 = vmatpush2.xpose.msra.mxu0 0.0
        %2380 = vmatprep.subr.mxu0 0.0
        %2381 = vmatpush2.xpose.msra.mxu0 0.0
        %2382 = vmatprep.subr.mxu0 0.0
        %2383 = vmatpush2.xpose.msra.mxu0 0.0
        %2384 = vmatprep.subr.mxu0 0.0
        %2385 = vmatpush2.xpose.msra.mxu0 0.0
        %2386 = vmatprep.subr.mxu0 0.0
        %2387 = vmatpush2.xpose.msra.mxu0 0.0
        %2388 = vmatprep.subr.mxu0 0.0
        %2389 = vmatpush2.xpose.msra.mxu0 0.0
        %2390 = vmatprep.subr.mxu0 0.0
        %2391 = vmatpush2.xpose.msra.mxu0 0.0
        %2392 = vmatprep.subr.mxu0 0.0
        %2393 = vmatpush2.xpose.msra.mxu0 0.0
        %2394 = vmatprep.subr.mxu0 0.0
        %2395 = vmatpush2.xpose.msra.mxu0 0.0
        %2396 = vmatprep.subr.mxu0 0.0
        %2397 = vmatpush2.xpose.msra.mxu0 0.0
        %2398 = vmatprep.subr.mxu0 0.0
        %2399 = vmatpush2.xpose.msra.mxu0 0.0
        %2400 = vmatprep.subr.mxu0 0.0
        %2401 = vmatpush2.xpose.msra.mxu0 0.0
        %2402 = vmatprep.subr.mxu0 0.0
        %2403 = vmatpush2.xpose.msra.mxu0 0.0
        %2404 = vmatprep.subr.mxu0 0.0
        %2405 = vmatpush2.xpose.msra.mxu0 0.0
        %2406 = vmatprep.subr.mxu0 0.0
        %2407 = vmatpush2.xpose.msra.mxu0 0.0
        %2408 = vmatprep.mubr.f32.mxu0 0.0
        %2409 = vmatmul.mubr.f32.gmra.mxu0 %v2147
        %v2410 = vpop.f32.mrf.mxu0
        %v2411 = vadd.f32 0.0, %v2410
        %v2412 = vpop.f32.mrf.mxu0
        %2413 = vmatprep.mubr.f32.mxu0 0.0
        %2414 = vmatmul.mubr.f32.gmra.mxu0 %v2150
        %v2415 = vpop.f32.mrf.mxu0
        %v2416 = vadd.f32 0.0, %v2415
        %v2417 = vpop.f32.mrf.mxu0
        %2418 = vdwg.mxu0
        %v2419 = vsel %vm1488, %v2411, -inf
        %2420 = vmax.xlane.f32.xlu0 %v2419
        %v2421 = vpop.xlane.xlu0 %2420
        %v2422 = vsel %vm1488, %v2416, -inf
        %2423 = vmax.xlane.f32.xlu0 %v2422
        %v2424 = vpop.xlane.xlu0 %2423
        %v2425 = vmax.f32 %v2232, %v2421
        %v2426 = vmax.f32 %v2235, %v2424
        %v2427 = vsub.f32 %v2232, %v2425
        %v2428 = vsub.f32 %v2235, %v2426
        %v2429 = vmul.f32 %v2427, 1.442695
        %v2430 = vpow.pop %v2429
        %v2431 = vmul.f32 %v2428, 1.442695
        %v2432 = vpow.pop %v2431
        %v2433 = vsub.f32 %v2411, %v2425
        %v2434 = vsub.f32 %v2416, %v2426
        %v2435 = vmul.f32 %v2433, 1.442695
        %v2436 = vpow.pop %v2435
        %v2437 = vmul.f32 %v2434, 1.442695
        %v2438 = vpow.pop %v2437
        %v2439 = vmul.f32 %v2430, %v2256
        %v2440 = vmul.f32 %v2432, %v2257
        %v2441 = vsel %vm1488, %v2436, 0.0
        %2442 = vadd.xlane.f32.xlu0 %v2441
        %v2443 = vpop.xlane.xlu0 %2442
        %v2444 = vsel %vm1488, %v2438, 0.0
        %2445 = vadd.xlane.f32.xlu0 %v2444
        %v2446 = vpop.xlane.xlu0 %2445
        %v2447 = vadd.f32 %v2439, %v2443
        %v2448 = vadd.f32 %v2440, %v2446
        %v2449 = vmul.f32 %v2430, %v2339
        %v2450 = vmul.f32 %v2432, %v2340
        %v2452 = vsel %vm1488, %v2436, 0
        %v2455 = vsel %vm1488, %v2438, 0
        %2457 = vmatprep.subr.mxu0 0.0
        %2458 = vmatpush1.msra.mxu0 0.0
        %2459 = vmatprep.subr.mxu0 0.0
        %2460 = vmatpush1.msra.mxu0 0.0
        %2461 = vmatprep.subr.mxu0 0.0
        %2462 = vmatpush1.msra.mxu0 0.0
        %2463 = vmatprep.subr.mxu0 0.0
        %2464 = vmatpush1.msra.mxu0 0.0
        %2465 = vmatprep.subr.mxu0 0.0
        %2466 = vmatpush1.msra.mxu0 0.0
        %2467 = vmatprep.subr.mxu0 0.0
        %2468 = vmatpush1.msra.mxu0 0.0
        %2469 = vmatprep.subr.mxu0 0.0
        %2470 = vmatpush1.msra.mxu0 0.0
        %2471 = vmatprep.subr.mxu0 0.0
        %2472 = vmatpush1.msra.mxu0 0.0
        %2473 = vmatprep.subr.mxu0 0.0
        %2474 = vmatpush1.msra.mxu0 0.0
        %2475 = vmatprep.subr.mxu0 0.0
        %2476 = vmatpush1.msra.mxu0 0.0
        %2477 = vmatprep.subr.mxu0 0.0
        %2478 = vmatpush1.msra.mxu0 0.0
        %2479 = vmatprep.subr.mxu0 0.0
        %2480 = vmatpush1.msra.mxu0 0.0
        %2481 = vmatprep.subr.mxu0 0.0
        %2482 = vmatpush1.msra.mxu0 0.0
        %2483 = vmatprep.subr.mxu0 0.0
        %2484 = vmatpush1.msra.mxu0 0.0
        %2485 = vmatprep.subr.mxu0 0.0
        %2486 = vmatpush1.msra.mxu0 0.0
        %2487 = vmatprep.subr.mxu0 0.0
        %2488 = vmatpush1.msra.mxu0 %v2143
        %2489 = vmatprep.subr.mxu0 0.0
        %2490 = vmatpush2.msra.mxu0 0.0
        %2491 = vmatprep.subr.mxu0 0.0
        %2492 = vmatpush2.msra.mxu0 0.0
        %2493 = vmatprep.subr.mxu0 0.0
        %2494 = vmatpush2.msra.mxu0 0.0
        %2495 = vmatprep.subr.mxu0 0.0
        %2496 = vmatpush2.msra.mxu0 0.0
        %2497 = vmatprep.subr.mxu0 0.0
        %2498 = vmatpush2.msra.mxu0 0.0
        %2499 = vmatprep.subr.mxu0 0.0
        %2500 = vmatpush2.msra.mxu0 0.0
        %2501 = vmatprep.subr.mxu0 0.0
        %2502 = vmatpush2.msra.mxu0 0.0
        %2503 = vmatprep.subr.mxu0 0.0
        %2504 = vmatpush2.msra.mxu0 0.0
        %2505 = vmatprep.subr.mxu0 0.0
        %2506 = vmatpush2.msra.mxu0 0.0
        %2507 = vmatprep.subr.mxu0 0.0
        %2508 = vmatpush2.msra.mxu0 0.0
        %2509 = vmatprep.subr.mxu0 0.0
        %2510 = vmatpush2.msra.mxu0 0.0
        %2511 = vmatprep.subr.mxu0 0.0
        %2512 = vmatpush2.msra.mxu0 0.0
        %2513 = vmatprep.subr.mxu0 0.0
        %2514 = vmatpush2.msra.mxu0 0.0
        %2515 = vmatprep.subr.mxu0 0.0
        %2516 = vmatpush2.msra.mxu0 0.0
        %2517 = vmatprep.subr.mxu0 0.0
        %2518 = vmatpush2.msra.mxu0 0.0
        %2519 = vmatprep.subr.mxu0 0.0
        %2520 = vmatpush2.msra.mxu0 0.0
        %2521 = vmatprep.mubr.f32.mxu0 0.0
        %2522 = vmatmul.mubr.f32.gmra.mxu0 %v2452
        %v2523 = vpop.f32.mrf.mxu0
        %v2524 = vadd.f32 0.0, %v2523
        %v2525 = vpop.f32.mrf.mxu0
        %2526 = vmatprep.mubr.f32.mxu0 0.0
        %2527 = vmatmul.mubr.f32.gmra.mxu0 %v2455
        %v2528 = vpop.f32.mrf.mxu0
        %v2529 = vadd.f32 0.0, %v2528
        %v2530 = vpop.f32.mrf.mxu0
        %2531 = vdwg.mxu0
        %v2532 = vadd.f32 %v2449, %v2524
        %v2533 = vadd.f32 %v2450, %v2529
        %v2534 = vrcp.pop %v2447
        %v2535 = vmul.f32 %v2532, %v2534
        %v2536 = vrcp.pop %v2448
        %v2537 = vmul.f32 %v2533, %v2536
        %s2538 = scalar_lea.vmem %s903, 8
        %v2539 = vld [vmem:[%s2538] sm:$0xff]
        %v2541 = vsel %vm1488, %v2535, 0
        %v2544 = vsel %vm1488, %v2537, 0
        %2546 = vmatprep.subr.mxu0 0.0
        %2547 = vmatpush1.msra.mxu0 0.0
        %2548 = vmatprep.subr.mxu0 0.0
        %2549 = vmatpush1.msra.mxu0 0.0
        %2550 = vmatprep.subr.mxu0 0.0
        %2551 = vmatpush1.msra.mxu0 0.0
        %2552 = vmatprep.subr.mxu0 0.0
        %2553 = vmatpush1.msra.mxu0 0.0
        %2554 = vmatprep.subr.mxu0 0.0
        %2555 = vmatpush1.msra.mxu0 0.0
        %2556 = vmatprep.subr.mxu0 0.0
        %2557 = vmatpush1.msra.mxu0 0.0
        %2558 = vmatprep.subr.mxu0 0.0
        %2559 = vmatpush1.msra.mxu0 0.0
        %2560 = vmatprep.subr.mxu0 0.0
        %2561 = vmatpush1.msra.mxu0 0.0
        %2562 = vmatprep.subr.mxu0 0.0
        %2563 = vmatpush1.msra.mxu0 0.0
        %2564 = vmatprep.subr.mxu0 0.0
        %2565 = vmatpush1.msra.mxu0 0.0
        %2566 = vmatprep.subr.mxu0 0.0
        %2567 = vmatpush1.msra.mxu0 0.0
        %2568 = vmatprep.subr.mxu0 0.0
        %2569 = vmatpush1.msra.mxu0 0.0
        %2570 = vmatprep.subr.mxu0 0.0
        %2571 = vmatpush1.msra.mxu0 0.0
        %2572 = vmatprep.subr.mxu0 0.0
        %2573 = vmatpush1.msra.mxu0 0.0
        %2574 = vmatprep.subr.mxu0 0.0
        %2575 = vmatpush1.msra.mxu0 0.0
        %2576 = vmatprep.subr.mxu0 0.0
        %2577 = vmatpush1.msra.mxu0 %v2539
        %2578 = vmatprep.subr.mxu0 0.0
        %2579 = vmatpush2.msra.mxu0 0.0
        %2580 = vmatprep.subr.mxu0 0.0
        %2581 = vmatpush2.msra.mxu0 0.0
        %2582 = vmatprep.subr.mxu0 0.0
        %2583 = vmatpush2.msra.mxu0 0.0
        %2584 = vmatprep.subr.mxu0 0.0
        %2585 = vmatpush2.msra.mxu0 0.0
        %2586 = vmatprep.subr.mxu0 0.0
        %2587 = vmatpush2.msra.mxu0 0.0
        %2588 = vmatprep.subr.mxu0 0.0
        %2589 = vmatpush2.msra.mxu0 0.0
        %2590 = vmatprep.subr.mxu0 0.0
        %2591 = vmatpush2.msra.mxu0 0.0
        %2592 = vmatprep.subr.mxu0 0.0
        %2593 = vmatpush2.msra.mxu0 0.0
        %2594 = vmatprep.subr.mxu0 0.0
        %2595 = vmatpush2.msra.mxu0 0.0
        %2596 = vmatprep.subr.mxu0 0.0
        %2597 = vmatpush2.msra.mxu0 0.0
        %2598 = vmatprep.subr.mxu0 0.0
        %2599 = vmatpush2.msra.mxu0 0.0
        %2600 = vmatprep.subr.mxu0 0.0
        %2601 = vmatpush2.msra.mxu0 0.0
        %2602 = vmatprep.subr.mxu0 0.0
        %2603 = vmatpush2.msra.mxu0 0.0
        %2604 = vmatprep.subr.mxu0 0.0
        %2605 = vmatpush2.msra.mxu0 0.0
        %2606 = vmatprep.subr.mxu0 0.0
        %2607 = vmatpush2.msra.mxu0 0.0
        %2608 = vmatprep.subr.mxu0 0.0
        %2609 = vmatpush2.msra.mxu0 0.0
        %2610 = vmatprep.mubr.f32.mxu0 0.0
        %2611 = vmatmul.mubr.f32.gmra.mxu0 %v2541
        %v2612 = vpop.f32.mrf.mxu0
        %v2613 = vadd.f32 0.0, %v2612
        %v2614 = vpop.f32.mrf.mxu0
        %2615 = vmatprep.mubr.f32.mxu0 0.0
        %2616 = vmatmul.mubr.f32.gmra.mxu0 %v2544
        %v2617 = vpop.f32.mrf.mxu0
        %v2618 = vadd.f32 0.0, %v2617
        %v2619 = vpop.f32.mrf.mxu0
        %2620 = vdwg.mxu0
        %v2622 = vsel %vm1488, %v1878, 0
        %v2625 = vsel %vm1488, %v1880, 0
        %2627 = vmatprep.subr.mxu0 0.0
        %2628 = vmatpush1.msra.mxu0 0.0
        %2629 = vmatprep.subr.mxu0 0.0
        %2630 = vmatpush1.msra.mxu0 0.0
        %2631 = vmatprep.subr.mxu0 0.0
        %2632 = vmatpush1.msra.mxu0 0.0
        %2633 = vmatprep.subr.mxu0 0.0
        %2634 = vmatpush1.msra.mxu0 0.0
        %2635 = vmatprep.subr.mxu0 0.0
        %2636 = vmatpush1.msra.mxu0 0.0
        %2637 = vmatprep.subr.mxu0 0.0
        %2638 = vmatpush1.msra.mxu0 0.0
        %2639 = vmatprep.subr.mxu0 0.0
        %2640 = vmatpush1.msra.mxu0 0.0
        %2641 = vmatprep.subr.mxu0 0.0
        %2642 = vmatpush1.msra.mxu0 0.0
        %2643 = vmatprep.subr.mxu0 0.0
        %2644 = vmatpush1.msra.mxu0 0.0
        %2645 = vmatprep.subr.mxu0 0.0
        %2646 = vmatpush1.msra.mxu0 0.0
        %2647 = vmatprep.subr.mxu0 0.0
        %2648 = vmatpush1.msra.mxu0 0.0
        %2649 = vmatprep.subr.mxu0 0.0
        %2650 = vmatpush1.msra.mxu0 0.0
        %2651 = vmatprep.subr.mxu0 0.0
        %2652 = vmatpush1.msra.mxu0 0.0
        %2653 = vmatprep.subr.mxu0 0.0
        %2654 = vmatpush1.msra.mxu0 0.0
        %2655 = vmatprep.subr.mxu0 0.0
        %2656 = vmatpush1.msra.mxu0 0.0
        %2657 = vmatprep.subr.mxu0 0.0
        %2658 = vmatpush1.msra.mxu0 %v1881
        %2659 = vmatprep.subr.mxu0 0.0
        %2660 = vmatpush2.msra.mxu0 0.0
        %2661 = vmatprep.subr.mxu0 0.0
        %2662 = vmatpush2.msra.mxu0 0.0
        %2663 = vmatprep.subr.mxu0 0.0
        %2664 = vmatpush2.msra.mxu0 0.0
        %2665 = vmatprep.subr.mxu0 0.0
        %2666 = vmatpush2.msra.mxu0 0.0
        %2667 = vmatprep.subr.mxu0 0.0
        %2668 = vmatpush2.msra.mxu0 0.0
        %2669 = vmatprep.subr.mxu0 0.0
        %2670 = vmatpush2.msra.mxu0 0.0
        %2671 = vmatprep.subr.mxu0 0.0
        %2672 = vmatpush2.msra.mxu0 0.0
        %2673 = vmatprep.subr.mxu0 0.0
        %2674 = vmatpush2.msra.mxu0 0.0
        %2675 = vmatprep.subr.mxu0 0.0
        %2676 = vmatpush2.msra.mxu0 0.0
        %2677 = vmatprep.subr.mxu0 0.0
        %2678 = vmatpush2.msra.mxu0 0.0
        %2679 = vmatprep.subr.mxu0 0.0
        %2680 = vmatpush2.msra.mxu0 0.0
        %2681 = vmatprep.subr.mxu0 0.0
        %2682 = vmatpush2.msra.mxu0 0.0
        %2683 = vmatprep.subr.mxu0 0.0
        %2684 = vmatpush2.msra.mxu0 0.0
        %2685 = vmatprep.subr.mxu0 0.0
        %2686 = vmatpush2.msra.mxu0 0.0
        %2687 = vmatprep.subr.mxu0 0.0
        %2688 = vmatpush2.msra.mxu0 0.0
        %2689 = vmatprep.subr.mxu0 0.0
        %2690 = vmatpush2.msra.mxu0 0.0
        %2691 = vmatprep.mubr.f32.mxu0 0.0
        %2692 = vmatmul.mubr.f32.gmra.mxu0 %v2622
        %v2693 = vpop.f32.mrf.mxu0
        %v2694 = vadd.f32 %v2613, %v2693
        %v2695 = vpop.f32.mrf.mxu0
        %2696 = vmatprep.mubr.f32.mxu0 0.0
        %2697 = vmatmul.mubr.f32.gmra.mxu0 %v2625
        %v2698 = vpop.f32.mrf.mxu0
        %v2699 = vadd.f32 %v2618, %v2698
        %v2700 = vpop.f32.mrf.mxu0
        %2701 = vdwg.mxu0
        %s2702 = scalar_lea.vmem %s876, 64
        %v2703 = vld [vmem:[%s2702] sm:$0xff]
        %v2704 = vld [vmem:[%s2702 + $0x8] sm:$0xff]
        %v2705 = vld [vmem:[%s2702 + $0x10] sm:$0xff]
        %v2706 = vld [vmem:[%s2702 + $0x18] sm:$0xff]
        %s2707 = scalar_lea.vmem %s880, 2
        %v2708 = vld [vmem:[%s2707] sm:$0x1]
        %v2710 = vlaneseq
        %v2711 = vshrl.u32 %v2710, 7
        %v2712 = vsub.s32 0, %v2711
        %v2713 = vrot.slane %v2708, %v2712
        %2715 = vmatprep.subr.mxu0 0.0
        %2716 = vmatpush1.msra.mxu0 0.0
        %2717 = vmatprep.subr.mxu0 0.0
        %2718 = vmatpush1.msra.mxu0 0.0
        %2719 = vmatprep.subr.mxu0 0.0
        %2720 = vmatpush1.msra.mxu0 0.0
        %2721 = vmatprep.subr.mxu0 0.0
        %2722 = vmatpush1.msra.mxu0 0.0
        %2723 = vmatprep.subr.mxu0 0.0
        %2724 = vmatpush1.msra.mxu0 0.0
        %2725 = vmatprep.subr.mxu0 0.0
        %2726 = vmatpush1.msra.mxu0 0.0
        %2727 = vmatprep.subr.mxu0 0.0
        %2728 = vmatpush1.msra.mxu0 0.0
        %2729 = vmatprep.subr.mxu0 0.0
        %2730 = vmatpush1.msra.mxu0 0.0
        %2731 = vmatprep.subr.mxu0 0.0
        %2732 = vmatpush1.msra.mxu0 0.0
        %2733 = vmatprep.subr.mxu0 0.0
        %2734 = vmatpush1.msra.mxu0 0.0
        %2735 = vmatprep.subr.mxu0 0.0
        %2736 = vmatpush1.msra.mxu0 0.0
        %2737 = vmatprep.subr.mxu0 0.0
        %2738 = vmatpush1.msra.mxu0 0.0
        %2739 = vmatprep.subr.mxu0 0.0
        %2740 = vmatpush1.msra.mxu0 %v2706
        %2741 = vmatprep.subr.mxu0 0.0
        %2742 = vmatpush1.msra.mxu0 %v2705
        %2743 = vmatprep.subr.mxu0 0.0
        %2744 = vmatpush1.msra.mxu0 %v2704
        %2745 = vmatprep.subr.mxu0 0.0
        %2746 = vmatpush1.msra.mxu0 %v2703
        %2747 = vmatprep.subr.mxu0 0.0
        %2748 = vmatpush2.msra.mxu0 0.0
        %2749 = vmatprep.subr.mxu0 0.0
        %2750 = vmatpush2.msra.mxu0 0.0
        %2751 = vmatprep.subr.mxu0 0.0
        %2752 = vmatpush2.msra.mxu0 0.0
        %2753 = vmatprep.subr.mxu0 0.0
        %2754 = vmatpush2.msra.mxu0 0.0
        %2755 = vmatprep.subr.mxu0 0.0
        %2756 = vmatpush2.msra.mxu0 0.0
        %2757 = vmatprep.subr.mxu0 0.0
        %2758 = vmatpush2.msra.mxu0 0.0
        %2759 = vmatprep.subr.mxu0 0.0
        %2760 = vmatpush2.msra.mxu0 0.0
        %2761 = vmatprep.subr.mxu0 0.0
        %2762 = vmatpush2.msra.mxu0 0.0
        %2763 = vmatprep.subr.mxu0 0.0
        %2764 = vmatpush2.msra.mxu0 0.0
        %2765 = vmatprep.subr.mxu0 0.0
        %2766 = vmatpush2.msra.mxu0 0.0
        %2767 = vmatprep.subr.mxu0 0.0
        %2768 = vmatpush2.msra.mxu0 0.0
        %2769 = vmatprep.subr.mxu0 0.0
        %2770 = vmatpush2.msra.mxu0 0.0
        %2771 = vmatprep.subr.mxu0 0.0
        %2772 = vmatpush2.msra.mxu0 0.0
        %2773 = vmatprep.subr.mxu0 0.0
        %2774 = vmatpush2.msra.mxu0 0.0
        %2775 = vmatprep.subr.mxu0 0.0
        %2776 = vmatpush2.msra.mxu0 0.0
        %2777 = vmatprep.subr.mxu0 0.0
        %2778 = vmatpush2.msra.mxu0 0.0
        %2779 = vmatprep.mubr.f32.mxu0 0.0
        %2780 = vmatmul.mubr.f32.gmra.mxu0 %v1236
        %v2781 = vpop.f32.mrf.mxu0
        %v2782 = vadd.f32 %v2713, %v2781
        %v2783 = vpop.f32.mrf.mxu0
        %2784 = vmatprep.mubr.f32.mxu0 0.0
        %2785 = vmatmul.mubr.f32.gmra.mxu0 %v1239
        %v2786 = vpop.f32.mrf.mxu0
        %v2787 = vadd.f32 %v2713, %v2786
        %v2788 = vpop.f32.mrf.mxu0
        %2789 = vdwg.mxu0
        %s2790 = scalar_lea.vmem %s885, 64
        %v2791 = vld [vmem:[%s2790] sm:$0xff]
        %v2792 = vld [vmem:[%s2790 + $0x8] sm:$0xff]
        %v2793 = vld [vmem:[%s2790 + $0x10] sm:$0xff]
        %v2794 = vld [vmem:[%s2790 + $0x18] sm:$0xff]
        %s2795 = scalar_lea.vmem %s889, 2
        %v2796 = vld [vmem:[%s2795] sm:$0x1]
        %v2798 = vlaneseq
        %v2799 = vshrl.u32 %v2798, 7
        %v2800 = vsub.s32 0, %v2799
        %v2801 = vrot.slane %v2796, %v2800
        %2803 = vmatprep.subr.mxu0 0.0
        %2804 = vmatpush1.msra.mxu0 0.0
        %2805 = vmatprep.subr.mxu0 0.0
        %2806 = vmatpush1.msra.mxu0 0.0
        %2807 = vmatprep.subr.mxu0 0.0
        %2808 = vmatpush1.msra.mxu0 0.0
        %2809 = vmatprep.subr.mxu0 0.0
        %2810 = vmatpush1.msra.mxu0 0.0
        %2811 = vmatprep.subr.mxu0 0.0
        %2812 = vmatpush1.msra.mxu0 0.0
        %2813 = vmatprep.subr.mxu0 0.0
        %2814 = vmatpush1.msra.mxu0 0.0
        %2815 = vmatprep.subr.mxu0 0.0
        %2816 = vmatpush1.msra.mxu0 0.0
        %2817 = vmatprep.subr.mxu0 0.0
        %2818 = vmatpush1.msra.mxu0 0.0
        %2819 = vmatprep.subr.mxu0 0.0
        %2820 = vmatpush1.msra.mxu0 0.0
        %2821 = vmatprep.subr.mxu0 0.0
        %2822 = vmatpush1.msra.mxu0 0.0
        %2823 = vmatprep.subr.mxu0 0.0
        %2824 = vmatpush1.msra.mxu0 0.0
        %2825 = vmatprep.subr.mxu0 0.0
        %2826 = vmatpush1.msra.mxu0 0.0
        %2827 = vmatprep.subr.mxu0 0.0
        %2828 = vmatpush1.msra.mxu0 %v2794
        %2829 = vmatprep.subr.mxu0 0.0
        %2830 = vmatpush1.msra.mxu0 %v2793
        %2831 = vmatprep.subr.mxu0 0.0
        %2832 = vmatpush1.msra.mxu0 %v2792
        %2833 = vmatprep.subr.mxu0 0.0
        %2834 = vmatpush1.msra.mxu0 %v2791
        %2835 = vmatprep.subr.mxu0 0.0
        %2836 = vmatpush2.msra.mxu0 0.0
        %2837 = vmatprep.subr.mxu0 0.0
        %2838 = vmatpush2.msra.mxu0 0.0
        %2839 = vmatprep.subr.mxu0 0.0
        %2840 = vmatpush2.msra.mxu0 0.0
        %2841 = vmatprep.subr.mxu0 0.0
        %2842 = vmatpush2.msra.mxu0 0.0
        %2843 = vmatprep.subr.mxu0 0.0
        %2844 = vmatpush2.msra.mxu0 0.0
        %2845 = vmatprep.subr.mxu0 0.0
        %2846 = vmatpush2.msra.mxu0 0.0
        %2847 = vmatprep.subr.mxu0 0.0
        %2848 = vmatpush2.msra.mxu0 0.0
        %2849 = vmatprep.subr.mxu0 0.0
        %2850 = vmatpush2.msra.mxu0 0.0
        %2851 = vmatprep.subr.mxu0 0.0
        %2852 = vmatpush2.msra.mxu0 0.0
        %2853 = vmatprep.subr.mxu0 0.0
        %2854 = vmatpush2.msra.mxu0 0.0
        %2855 = vmatprep.subr.mxu0 0.0
        %2856 = vmatpush2.msra.mxu0 0.0
        %2857 = vmatprep.subr.mxu0 0.0
        %2858 = vmatpush2.msra.mxu0 0.0
        %2859 = vmatprep.subr.mxu0 0.0
        %2860 = vmatpush2.msra.mxu0 0.0
        %2861 = vmatprep.subr.mxu0 0.0
        %2862 = vmatpush2.msra.mxu0 0.0
        %2863 = vmatprep.subr.mxu0 0.0
        %2864 = vmatpush2.msra.mxu0 0.0
        %2865 = vmatprep.subr.mxu0 0.0
        %2866 = vmatpush2.msra.mxu0 0.0
        %2867 = vmatprep.mubr.f32.mxu0 0.0
        %2868 = vmatmul.mubr.f32.gmra.mxu0 %v1236
        %v2869 = vpop.f32.mrf.mxu0
        %v2870 = vadd.f32 %v2801, %v2869
        %v2871 = vpop.f32.mrf.mxu0
        %2872 = vmatprep.mubr.f32.mxu0 0.0
        %2873 = vmatmul.mubr.f32.gmra.mxu0 %v1239
        %v2874 = vpop.f32.mrf.mxu0
        %v2875 = vadd.f32 %v2801, %v2874
        %v2876 = vpop.f32.mrf.mxu0
        %2877 = vdwg.mxu0
        %s2878 = scalar_lea.vmem %s894, 64
        %v2879 = vld [vmem:[%s2878] sm:$0xff]
        %v2880 = vld [vmem:[%s2878 + $0x8] sm:$0xff]
        %v2881 = vld [vmem:[%s2878 + $0x10] sm:$0xff]
        %v2882 = vld [vmem:[%s2878 + $0x18] sm:$0xff]
        %s2883 = scalar_lea.vmem %s898, 2
        %v2884 = vld [vmem:[%s2883] sm:$0x1]
        %v2886 = vlaneseq
        %v2887 = vshrl.u32 %v2886, 7
        %v2888 = vsub.s32 0, %v2887
        %v2889 = vrot.slane %v2884, %v2888
        %2891 = vmatprep.subr.mxu0 0.0
        %2892 = vmatpush1.msra.mxu0 0.0
        %2893 = vmatprep.subr.mxu0 0.0
        %2894 = vmatpush1.msra.mxu0 0.0
        %2895 = vmatprep.subr.mxu0 0.0
        %2896 = vmatpush1.msra.mxu0 0.0
        %2897 = vmatprep.subr.mxu0 0.0
        %2898 = vmatpush1.msra.mxu0 0.0
        %2899 = vmatprep.subr.mxu0 0.0
        %2900 = vmatpush1.msra.mxu0 0.0
        %2901 = vmatprep.subr.mxu0 0.0
        %2902 = vmatpush1.msra.mxu0 0.0
        %2903 = vmatprep.subr.mxu0 0.0
        %2904 = vmatpush1.msra.mxu0 0.0
        %2905 = vmatprep.subr.mxu0 0.0
        %2906 = vmatpush1.msra.mxu0 0.0
        %2907 = vmatprep.subr.mxu0 0.0
        %2908 = vmatpush1.msra.mxu0 0.0
        %2909 = vmatprep.subr.mxu0 0.0
        %2910 = vmatpush1.msra.mxu0 0.0
        %2911 = vmatprep.subr.mxu0 0.0
        %2912 = vmatpush1.msra.mxu0 0.0
        %2913 = vmatprep.subr.mxu0 0.0
        %2914 = vmatpush1.msra.mxu0 0.0
        %2915 = vmatprep.subr.mxu0 0.0
        %2916 = vmatpush1.msra.mxu0 %v2882
        %2917 = vmatprep.subr.mxu0 0.0
        %2918 = vmatpush1.msra.mxu0 %v2881
        %2919 = vmatprep.subr.mxu0 0.0
        %2920 = vmatpush1.msra.mxu0 %v2880
        %2921 = vmatprep.subr.mxu0 0.0
        %2922 = vmatpush1.msra.mxu0 %v2879
        %2923 = vmatprep.subr.mxu0 0.0
        %2924 = vmatpush2.msra.mxu0 0.0
        %2925 = vmatprep.subr.mxu0 0.0
        %2926 = vmatpush2.msra.mxu0 0.0
        %2927 = vmatprep.subr.mxu0 0.0
        %2928 = vmatpush2.msra.mxu0 0.0
        %2929 = vmatprep.subr.mxu0 0.0
        %2930 = vmatpush2.msra.mxu0 0.0
        %2931 = vmatprep.subr.mxu0 0.0
        %2932 = vmatpush2.msra.mxu0 0.0
        %2933 = vmatprep.subr.mxu0 0.0
        %2934 = vmatpush2.msra.mxu0 0.0
        %2935 = vmatprep.subr.mxu0 0.0
        %2936 = vmatpush2.msra.mxu0 0.0
        %2937 = vmatprep.subr.mxu0 0.0
        %2938 = vmatpush2.msra.mxu0 0.0
        %2939 = vmatprep.subr.mxu0 0.0
        %2940 = vmatpush2.msra.mxu0 0.0
        %2941 = vmatprep.subr.mxu0 0.0
        %2942 = vmatpush2.msra.mxu0 0.0
        %2943 = vmatprep.subr.mxu0 0.0
        %2944 = vmatpush2.msra.mxu0 0.0
        %2945 = vmatprep.subr.mxu0 0.0
        %2946 = vmatpush2.msra.mxu0 0.0
        %2947 = vmatprep.subr.mxu0 0.0
        %2948 = vmatpush2.msra.mxu0 0.0
        %2949 = vmatprep.subr.mxu0 0.0
        %2950 = vmatpush2.msra.mxu0 0.0
        %2951 = vmatprep.subr.mxu0 0.0
        %2952 = vmatpush2.msra.mxu0 0.0
        %2953 = vmatprep.subr.mxu0 0.0
        %2954 = vmatpush2.msra.mxu0 0.0
        %2955 = vmatprep.mubr.f32.mxu0 0.0
        %2956 = vmatmul.mubr.f32.gmra.mxu0 %v1236
        %v2957 = vpop.f32.mrf.mxu0
        %v2958 = vadd.f32 %v2889, %v2957
        %v2959 = vpop.f32.mrf.mxu0
        %2960 = vmatprep.mubr.f32.mxu0 0.0
        %2961 = vmatmul.mubr.f32.gmra.mxu0 %v1239
        %v2962 = vpop.f32.mrf.mxu0
        %v2963 = vadd.f32 %v2889, %v2962
        %v2964 = vpop.f32.mrf.mxu0
        %2965 = vdwg.mxu0
        %v2967 = vsel %vm1488, %v2782, 0
        %v2970 = vsel %vm1488, %v2787, 0
        %v2973 = vsel %vm1488, %v2870, 0
        %2975 = vmatprep.subr.mxu0 0.0
        %2976 = vmatpush1.xpose.msra.mxu0 0.0
        %2977 = vmatprep.subr.mxu0 0.0
        %2978 = vmatpush1.xpose.msra.mxu0 0.0
        %2979 = vmatprep.subr.mxu0 0.0
        %2980 = vmatpush1.xpose.msra.mxu0 0.0
        %2981 = vmatprep.subr.mxu0 0.0
        %2982 = vmatpush1.xpose.msra.mxu0 0.0
        %2983 = vmatprep.subr.mxu0 0.0
        %2984 = vmatpush1.xpose.msra.mxu0 0.0
        %2985 = vmatprep.subr.mxu0 0.0
        %2986 = vmatpush1.xpose.msra.mxu0 0.0
        %2987 = vmatprep.subr.mxu0 0.0
        %2988 = vmatpush1.xpose.msra.mxu0 0.0
        %2989 = vmatprep.subr.mxu0 0.0
        %2990 = vmatpush1.xpose.msra.mxu0 0.0
        %2991 = vmatprep.subr.mxu0 0.0
        %2992 = vmatpush1.xpose.msra.mxu0 0.0
        %2993 = vmatprep.subr.mxu0 0.0
        %2994 = vmatpush1.xpose.msra.mxu0 0.0
        %2995 = vmatprep.subr.mxu0 0.0
        %2996 = vmatpush1.xpose.msra.mxu0 0.0
        %2997 = vmatprep.subr.mxu0 0.0
        %2998 = vmatpush1.xpose.msra.mxu0 0.0
        %2999 = vmatprep.subr.mxu0 0.0
        %3000 = vmatpush1.xpose.msra.mxu0 0.0
        %3001 = vmatprep.subr.mxu0 0.0
        %3002 = vmatpush1.xpose.msra.mxu0 0.0
        %3003 = vmatprep.subr.mxu0 0.0
        %3004 = vmatpush1.xpose.msra.mxu0 0.0
        %3005 = vmatprep.subr.mxu0 0.0
        %3006 = vmatpush1.xpose.msra.mxu0 %v2973
        %3007 = vmatprep.subr.mxu0 0.0
        %3008 = vmatpush2.xpose.msra.mxu0 0.0
        %3009 = vmatprep.subr.mxu0 0.0
        %3010 = vmatpush2.xpose.msra.mxu0 0.0
        %3011 = vmatprep.subr.mxu0 0.0
        %3012 = vmatpush2.xpose.msra.mxu0 0.0
        %3013 = vmatprep.subr.mxu0 0.0
        %3014 = vmatpush2.xpose.msra.mxu0 0.0
        %3015 = vmatprep.subr.mxu0 0.0
        %3016 = vmatpush2.xpose.msra.mxu0 0.0
        %3017 = vmatprep.subr.mxu0 0.0
        %3018 = vmatpush2.xpose.msra.mxu0 0.0
        %3019 = vmatprep.subr.mxu0 0.0
        %3020 = vmatpush2.xpose.msra.mxu0 0.0
        %3021 = vmatprep.subr.mxu0 0.0
        %3022 = vmatpush2.xpose.msra.mxu0 0.0
        %3023 = vmatprep.subr.mxu0 0.0
        %3024 = vmatpush2.xpose.msra.mxu0 0.0
        %3025 = vmatprep.subr.mxu0 0.0
        %3026 = vmatpush2.xpose.msra.mxu0 0.0
        %3027 = vmatprep.subr.mxu0 0.0
        %3028 = vmatpush2.xpose.msra.mxu0 0.0
        %3029 = vmatprep.subr.mxu0 0.0
        %3030 = vmatpush2.xpose.msra.mxu0 0.0
        %3031 = vmatprep.subr.mxu0 0.0
        %3032 = vmatpush2.xpose.msra.mxu0 0.0
        %3033 = vmatprep.subr.mxu0 0.0
        %3034 = vmatpush2.xpose.msra.mxu0 0.0
        %3035 = vmatprep.subr.mxu0 0.0
        %3036 = vmatpush2.xpose.msra.mxu0 0.0
        %3037 = vmatprep.subr.mxu0 0.0
        %3038 = vmatpush2.xpose.msra.mxu0 0.0
        %3039 = vmatprep.mubr.f32.mxu0 0.0
        %3040 = vmatmul.mubr.f32.gmra.mxu0 %v2967
        %v3041 = vpop.f32.mrf.mxu0
        %v3042 = vadd.f32 0.0, %v3041
        %v3043 = vpop.f32.mrf.mxu0
        %3044 = vmatprep.mubr.f32.mxu0 0.0
        %3045 = vmatmul.mubr.f32.gmra.mxu0 %v2970
        %v3046 = vpop.f32.mrf.mxu0
        %v3047 = vadd.f32 0.0, %v3046
        %v3048 = vpop.f32.mrf.mxu0
        %3049 = vdwg.mxu0
        %v3050 = vsel %vm1488, %v3042, -inf
        %3051 = vmax.xlane.f32.xlu0 %v3050
        %v3052 = vpop.xlane.xlu0 %3051
        %v3053 = vsel %vm1488, %v3047, -inf
        %3054 = vmax.xlane.f32.xlu0 %v3053
        %v3055 = vpop.xlane.xlu0 %3054
        %v3056 = vsub.f32 -inf, %v3052
        %v3057 = vsub.f32 -inf, %v3055
        %v3058 = vmul.f32 %v3056, 1.442695
        %v3059 = vpow.pop %v3058
        %v3060 = vmul.f32 %v3057, 1.442695
        %v3061 = vpow.pop %v3060
        %v3062 = vsub.f32 %v3042, %v3052
        %v3063 = vsub.f32 %v3047, %v3055
        %v3064 = vmul.f32 %v3062, 1.442695
        %v3065 = vpow.pop %v3064
        %v3066 = vmul.f32 %v3063, 1.442695
        %v3067 = vpow.pop %v3066
        %v3068 = vmul.f32 %v3059, 0.0
        %v3069 = vmul.f32 %v3061, 0.0
        %v3070 = vsel %vm1488, %v3065, 0.0
        %3071 = vadd.xlane.f32.xlu0 %v3070
        %v3072 = vpop.xlane.xlu0 %3071
        %v3073 = vsel %vm1488, %v3067, 0.0
        %3074 = vadd.xlane.f32.xlu0 %v3073
        %v3075 = vpop.xlane.xlu0 %3074
        %v3076 = vadd.f32 %v3068, %v3072
        %v3077 = vadd.f32 %v3069, %v3075
        %v3079 = vsel %vm1488, %v3065, 0
        %v3082 = vsel %vm1488, %v3067, 0
        %3084 = vmatprep.subr.mxu0 0.0
        %3085 = vmatpush1.msra.mxu0 0.0
        %3086 = vmatprep.subr.mxu0 0.0
        %3087 = vmatpush1.msra.mxu0 0.0
        %3088 = vmatprep.subr.mxu0 0.0
        %3089 = vmatpush1.msra.mxu0 0.0
        %3090 = vmatprep.subr.mxu0 0.0
        %3091 = vmatpush1.msra.mxu0 0.0
        %3092 = vmatprep.subr.mxu0 0.0
        %3093 = vmatpush1.msra.mxu0 0.0
        %3094 = vmatprep.subr.mxu0 0.0
        %3095 = vmatpush1.msra.mxu0 0.0
        %3096 = vmatprep.subr.mxu0 0.0
        %3097 = vmatpush1.msra.mxu0 0.0
        %3098 = vmatprep.subr.mxu0 0.0
        %3099 = vmatpush1.msra.mxu0 0.0
        %3100 = vmatprep.subr.mxu0 0.0
        %3101 = vmatpush1.msra.mxu0 0.0
        %3102 = vmatprep.subr.mxu0 0.0
        %3103 = vmatpush1.msra.mxu0 0.0
        %3104 = vmatprep.subr.mxu0 0.0
        %3105 = vmatpush1.msra.mxu0 0.0
        %3106 = vmatprep.subr.mxu0 0.0
        %3107 = vmatpush1.msra.mxu0 0.0
        %3108 = vmatprep.subr.mxu0 0.0
        %3109 = vmatpush1.msra.mxu0 0.0
        %3110 = vmatprep.subr.mxu0 0.0
        %3111 = vmatpush1.msra.mxu0 0.0
        %3112 = vmatprep.subr.mxu0 0.0
        %3113 = vmatpush1.msra.mxu0 0.0
        %3114 = vmatprep.subr.mxu0 0.0
        %3115 = vmatpush1.msra.mxu0 %v2958
        %3116 = vmatprep.subr.mxu0 0.0
        %3117 = vmatpush2.msra.mxu0 0.0
        %3118 = vmatprep.subr.mxu0 0.0
        %3119 = vmatpush2.msra.mxu0 0.0
        %3120 = vmatprep.subr.mxu0 0.0
        %3121 = vmatpush2.msra.mxu0 0.0
        %3122 = vmatprep.subr.mxu0 0.0
        %3123 = vmatpush2.msra.mxu0 0.0
        %3124 = vmatprep.subr.mxu0 0.0
        %3125 = vmatpush2.msra.mxu0 0.0
        %3126 = vmatprep.subr.mxu0 0.0
        %3127 = vmatpush2.msra.mxu0 0.0
        %3128 = vmatprep.subr.mxu0 0.0
        %3129 = vmatpush2.msra.mxu0 0.0
        %3130 = vmatprep.subr.mxu0 0.0
        %3131 = vmatpush2.msra.mxu0 0.0
        %3132 = vmatprep.subr.mxu0 0.0
        %3133 = vmatpush2.msra.mxu0 0.0
        %3134 = vmatprep.subr.mxu0 0.0
        %3135 = vmatpush2.msra.mxu0 0.0
        %3136 = vmatprep.subr.mxu0 0.0
        %3137 = vmatpush2.msra.mxu0 0.0
        %3138 = vmatprep.subr.mxu0 0.0
        %3139 = vmatpush2.msra.mxu0 0.0
        %3140 = vmatprep.subr.mxu0 0.0
        %3141 = vmatpush2.msra.mxu0 0.0
        %3142 = vmatprep.subr.mxu0 0.0
        %3143 = vmatpush2.msra.mxu0 0.0
        %3144 = vmatprep.subr.mxu0 0.0
        %3145 = vmatpush2.msra.mxu0 0.0
        %3146 = vmatprep.subr.mxu0 0.0
        %3147 = vmatpush2.msra.mxu0 0.0
        %3148 = vmatprep.mubr.f32.mxu0 0.0
        %3149 = vmatmul.mubr.f32.gmra.mxu0 %v3079
        %v3150 = vpop.f32.mrf.mxu0
        %v3151 = vadd.f32 0.0, %v3150
        %v3152 = vpop.f32.mrf.mxu0
        %3153 = vmatprep.mubr.f32.mxu0 0.0
        %3154 = vmatmul.mubr.f32.gmra.mxu0 %v3082
        %v3155 = vpop.f32.mrf.mxu0
        %v3156 = vadd.f32 0.0, %v3155
        %v3157 = vpop.f32.mrf.mxu0
        %3158 = vdwg.mxu0
        %v3159 = vadd.f32 %v3068, %v3151
        %v3160 = vadd.f32 %v3069, %v3156
        %v3162 = vsel %vm1488, %v2875, 0
        %3164 = vmatprep.subr.mxu0 0.0
        %3165 = vmatpush1.xpose.msra.mxu0 0.0
        %3166 = vmatprep.subr.mxu0 0.0
        %3167 = vmatpush1.xpose.msra.mxu0 0.0
        %3168 = vmatprep.subr.mxu0 0.0
        %3169 = vmatpush1.xpose.msra.mxu0 0.0
        %3170 = vmatprep.subr.mxu0 0.0
        %3171 = vmatpush1.xpose.msra.mxu0 0.0
        %3172 = vmatprep.subr.mxu0 0.0
        %3173 = vmatpush1.xpose.msra.mxu0 0.0
        %3174 = vmatprep.subr.mxu0 0.0
        %3175 = vmatpush1.xpose.msra.mxu0 0.0
        %3176 = vmatprep.subr.mxu0 0.0
        %3177 = vmatpush1.xpose.msra.mxu0 0.0
        %3178 = vmatprep.subr.mxu0 0.0
        %3179 = vmatpush1.xpose.msra.mxu0 0.0
        %3180 = vmatprep.subr.mxu0 0.0
        %3181 = vmatpush1.xpose.msra.mxu0 0.0
        %3182 = vmatprep.subr.mxu0 0.0
        %3183 = vmatpush1.xpose.msra.mxu0 0.0
        %3184 = vmatprep.subr.mxu0 0.0
        %3185 = vmatpush1.xpose.msra.mxu0 0.0
        %3186 = vmatprep.subr.mxu0 0.0
        %3187 = vmatpush1.xpose.msra.mxu0 0.0
        %3188 = vmatprep.subr.mxu0 0.0
        %3189 = vmatpush1.xpose.msra.mxu0 0.0
        %3190 = vmatprep.subr.mxu0 0.0
        %3191 = vmatpush1.xpose.msra.mxu0 0.0
        %3192 = vmatprep.subr.mxu0 0.0
        %3193 = vmatpush1.xpose.msra.mxu0 0.0
        %3194 = vmatprep.subr.mxu0 0.0
        %3195 = vmatpush1.xpose.msra.mxu0 %v3162
        %3196 = vmatprep.subr.mxu0 0.0
        %3197 = vmatpush2.xpose.msra.mxu0 0.0
        %3198 = vmatprep.subr.mxu0 0.0
        %3199 = vmatpush2.xpose.msra.mxu0 0.0
        %3200 = vmatprep.subr.mxu0 0.0
        %3201 = vmatpush2.xpose.msra.mxu0 0.0
        %3202 = vmatprep.subr.mxu0 0.0
        %3203 = vmatpush2.xpose.msra.mxu0 0.0
        %3204 = vmatprep.subr.mxu0 0.0
        %3205 = vmatpush2.xpose.msra.mxu0 0.0
        %3206 = vmatprep.subr.mxu0 0.0
        %3207 = vmatpush2.xpose.msra.mxu0 0.0
        %3208 = vmatprep.subr.mxu0 0.0
        %3209 = vmatpush2.xpose.msra.mxu0 0.0
        %3210 = vmatprep.subr.mxu0 0.0
        %3211 = vmatpush2.xpose.msra.mxu0 0.0
        %3212 = vmatprep.subr.mxu0 0.0
        %3213 = vmatpush2.xpose.msra.mxu0 0.0
        %3214 = vmatprep.subr.mxu0 0.0
        %3215 = vmatpush2.xpose.msra.mxu0 0.0
        %3216 = vmatprep.subr.mxu0 0.0
        %3217 = vmatpush2.xpose.msra.mxu0 0.0
        %3218 = vmatprep.subr.mxu0 0.0
        %3219 = vmatpush2.xpose.msra.mxu0 0.0
        %3220 = vmatprep.subr.mxu0 0.0
        %3221 = vmatpush2.xpose.msra.mxu0 0.0
        %3222 = vmatprep.subr.mxu0 0.0
        %3223 = vmatpush2.xpose.msra.mxu0 0.0
        %3224 = vmatprep.subr.mxu0 0.0
        %3225 = vmatpush2.xpose.msra.mxu0 0.0
        %3226 = vmatprep.subr.mxu0 0.0
        %3227 = vmatpush2.xpose.msra.mxu0 0.0
        %3228 = vmatprep.mubr.f32.mxu0 0.0
        %3229 = vmatmul.mubr.f32.gmra.mxu0 %v2967
        %v3230 = vpop.f32.mrf.mxu0
        %v3231 = vadd.f32 0.0, %v3230
        %v3232 = vpop.f32.mrf.mxu0
        %3233 = vmatprep.mubr.f32.mxu0 0.0
        %3234 = vmatmul.mubr.f32.gmra.mxu0 %v2970
        %v3235 = vpop.f32.mrf.mxu0
        %v3236 = vadd.f32 0.0, %v3235
        %v3237 = vpop.f32.mrf.mxu0
        %3238 = vdwg.mxu0
        %v3239 = vsel %vm1488, %v3231, -inf
        %3240 = vmax.xlane.f32.xlu0 %v3239
        %v3241 = vpop.xlane.xlu0 %3240
        %v3242 = vsel %vm1488, %v3236, -inf
        %3243 = vmax.xlane.f32.xlu0 %v3242
        %v3244 = vpop.xlane.xlu0 %3243
        %v3245 = vmax.f32 %v3052, %v3241
        %v3246 = vmax.f32 %v3055, %v3244
        %v3247 = vsub.f32 %v3052, %v3245
        %v3248 = vsub.f32 %v3055, %v3246
        %v3249 = vmul.f32 %v3247, 1.442695
        %v3250 = vpow.pop %v3249
        %v3251 = vmul.f32 %v3248, 1.442695
        %v3252 = vpow.pop %v3251
        %v3253 = vsub.f32 %v3231, %v3245
        %v3254 = vsub.f32 %v3236, %v3246
        %v3255 = vmul.f32 %v3253, 1.442695
        %v3256 = vpow.pop %v3255
        %v3257 = vmul.f32 %v3254, 1.442695
        %v3258 = vpow.pop %v3257
        %v3259 = vmul.f32 %v3250, %v3076
        %v3260 = vmul.f32 %v3252, %v3077
        %v3261 = vsel %vm1488, %v3256, 0.0
        %3262 = vadd.xlane.f32.xlu0 %v3261
        %v3263 = vpop.xlane.xlu0 %3262
        %v3264 = vsel %vm1488, %v3258, 0.0
        %3265 = vadd.xlane.f32.xlu0 %v3264
        %v3266 = vpop.xlane.xlu0 %3265
        %v3267 = vadd.f32 %v3259, %v3263
        %v3268 = vadd.f32 %v3260, %v3266
        %v3269 = vmul.f32 %v3250, %v3159
        %v3270 = vmul.f32 %v3252, %v3160
        %v3272 = vsel %vm1488, %v3256, 0
        %v3275 = vsel %vm1488, %v3258, 0
        %3277 = vmatprep.subr.mxu0 0.0
        %3278 = vmatpush1.msra.mxu0 0.0
        %3279 = vmatprep.subr.mxu0 0.0
        %3280 = vmatpush1.msra.mxu0 0.0
        %3281 = vmatprep.subr.mxu0 0.0
        %3282 = vmatpush1.msra.mxu0 0.0
        %3283 = vmatprep.subr.mxu0 0.0
        %3284 = vmatpush1.msra.mxu0 0.0
        %3285 = vmatprep.subr.mxu0 0.0
        %3286 = vmatpush1.msra.mxu0 0.0
        %3287 = vmatprep.subr.mxu0 0.0
        %3288 = vmatpush1.msra.mxu0 0.0
        %3289 = vmatprep.subr.mxu0 0.0
        %3290 = vmatpush1.msra.mxu0 0.0
        %3291 = vmatprep.subr.mxu0 0.0
        %3292 = vmatpush1.msra.mxu0 0.0
        %3293 = vmatprep.subr.mxu0 0.0
        %3294 = vmatpush1.msra.mxu0 0.0
        %3295 = vmatprep.subr.mxu0 0.0
        %3296 = vmatpush1.msra.mxu0 0.0
        %3297 = vmatprep.subr.mxu0 0.0
        %3298 = vmatpush1.msra.mxu0 0.0
        %3299 = vmatprep.subr.mxu0 0.0
        %3300 = vmatpush1.msra.mxu0 0.0
        %3301 = vmatprep.subr.mxu0 0.0
        %3302 = vmatpush1.msra.mxu0 0.0
        %3303 = vmatprep.subr.mxu0 0.0
        %3304 = vmatpush1.msra.mxu0 0.0
        %3305 = vmatprep.subr.mxu0 0.0
        %3306 = vmatpush1.msra.mxu0 0.0
        %3307 = vmatprep.subr.mxu0 0.0
        %3308 = vmatpush1.msra.mxu0 %v2963
        %3309 = vmatprep.subr.mxu0 0.0
        %3310 = vmatpush2.msra.mxu0 0.0
        %3311 = vmatprep.subr.mxu0 0.0
        %3312 = vmatpush2.msra.mxu0 0.0
        %3313 = vmatprep.subr.mxu0 0.0
        %3314 = vmatpush2.msra.mxu0 0.0
        %3315 = vmatprep.subr.mxu0 0.0
        %3316 = vmatpush2.msra.mxu0 0.0
        %3317 = vmatprep.subr.mxu0 0.0
        %3318 = vmatpush2.msra.mxu0 0.0
        %3319 = vmatprep.subr.mxu0 0.0
        %3320 = vmatpush2.msra.mxu0 0.0
        %3321 = vmatprep.subr.mxu0 0.0
        %3322 = vmatpush2.msra.mxu0 0.0
        %3323 = vmatprep.subr.mxu0 0.0
        %3324 = vmatpush2.msra.mxu0 0.0
        %3325 = vmatprep.subr.mxu0 0.0
        %3326 = vmatpush2.msra.mxu0 0.0
        %3327 = vmatprep.subr.mxu0 0.0
        %3328 = vmatpush2.msra.mxu0 0.0
        %3329 = vmatprep.subr.mxu0 0.0
        %3330 = vmatpush2.msra.mxu0 0.0
        %3331 = vmatprep.subr.mxu0 0.0
        %3332 = vmatpush2.msra.mxu0 0.0
        %3333 = vmatprep.subr.mxu0 0.0
        %3334 = vmatpush2.msra.mxu0 0.0
        %3335 = vmatprep.subr.mxu0 0.0
        %3336 = vmatpush2.msra.mxu0 0.0
        %3337 = vmatprep.subr.mxu0 0.0
        %3338 = vmatpush2.msra.mxu0 0.0
        %3339 = vmatprep.subr.mxu0 0.0
        %3340 = vmatpush2.msra.mxu0 0.0
        %3341 = vmatprep.mubr.f32.mxu0 0.0
        %3342 = vmatmul.mubr.f32.gmra.mxu0 %v3272
        %v3343 = vpop.f32.mrf.mxu0
        %v3344 = vadd.f32 0.0, %v3343
        %v3345 = vpop.f32.mrf.mxu0
        %3346 = vmatprep.mubr.f32.mxu0 0.0
        %3347 = vmatmul.mubr.f32.gmra.mxu0 %v3275
        %v3348 = vpop.f32.mrf.mxu0
        %v3349 = vadd.f32 0.0, %v3348
        %v3350 = vpop.f32.mrf.mxu0
        %3351 = vdwg.mxu0
        %v3352 = vadd.f32 %v3269, %v3344
        %v3353 = vadd.f32 %v3270, %v3349
        %v3354 = vrcp.pop %v3267
        %v3355 = vmul.f32 %v3352, %v3354
        %v3356 = vrcp.pop %v3268
        %v3357 = vmul.f32 %v3353, %v3356
        %s3358 = scalar_lea.vmem %s903, 16
        %v3359 = vld [vmem:[%s3358] sm:$0xff]
        %v3361 = vsel %vm1488, %v3355, 0
        %v3364 = vsel %vm1488, %v3357, 0
        %3366 = vmatprep.subr.mxu0 0.0
        %3367 = vmatpush1.msra.mxu0 0.0
        %3368 = vmatprep.subr.mxu0 0.0
        %3369 = vmatpush1.msra.mxu0 0.0
        %3370 = vmatprep.subr.mxu0 0.0
        %3371 = vmatpush1.msra.mxu0 0.0
        %3372 = vmatprep.subr.mxu0 0.0
        %3373 = vmatpush1.msra.mxu0 0.0
        %3374 = vmatprep.subr.mxu0 0.0
        %3375 = vmatpush1.msra.mxu0 0.0
        %3376 = vmatprep.subr.mxu0 0.0
        %3377 = vmatpush1.msra.mxu0 0.0
        %3378 = vmatprep.subr.mxu0 0.0
        %3379 = vmatpush1.msra.mxu0 0.0
        %3380 = vmatprep.subr.mxu0 0.0
        %3381 = vmatpush1.msra.mxu0 0.0
        %3382 = vmatprep.subr.mxu0 0.0
        %3383 = vmatpush1.msra.mxu0 0.0
        %3384 = vmatprep.subr.mxu0 0.0
        %3385 = vmatpush1.msra.mxu0 0.0
        %3386 = vmatprep.subr.mxu0 0.0
        %3387 = vmatpush1.msra.mxu0 0.0
        %3388 = vmatprep.subr.mxu0 0.0
        %3389 = vmatpush1.msra.mxu0 0.0
        %3390 = vmatprep.subr.mxu0 0.0
        %3391 = vmatpush1.msra.mxu0 0.0
        %3392 = vmatprep.subr.mxu0 0.0
        %3393 = vmatpush1.msra.mxu0 0.0
        %3394 = vmatprep.subr.mxu0 0.0
        %3395 = vmatpush1.msra.mxu0 0.0
        %3396 = vmatprep.subr.mxu0 0.0
        %3397 = vmatpush1.msra.mxu0 %v3359
        %3398 = vmatprep.subr.mxu0 0.0
        %3399 = vmatpush2.msra.mxu0 0.0
        %3400 = vmatprep.subr.mxu0 0.0
        %3401 = vmatpush2.msra.mxu0 0.0
        %3402 = vmatprep.subr.mxu0 0.0
        %3403 = vmatpush2.msra.mxu0 0.0
        %3404 = vmatprep.subr.mxu0 0.0
        %3405 = vmatpush2.msra.mxu0 0.0
        %3406 = vmatprep.subr.mxu0 0.0
        %3407 = vmatpush2.msra.mxu0 0.0
        %3408 = vmatprep.subr.mxu0 0.0
        %3409 = vmatpush2.msra.mxu0 0.0
        %3410 = vmatprep.subr.mxu0 0.0
        %3411 = vmatpush2.msra.mxu0 0.0
        %3412 = vmatprep.subr.mxu0 0.0
        %3413 = vmatpush2.msra.mxu0 0.0
        %3414 = vmatprep.subr.mxu0 0.0
        %3415 = vmatpush2.msra.mxu0 0.0
        %3416 = vmatprep.subr.mxu0 0.0
        %3417 = vmatpush2.msra.mxu0 0.0
        %3418 = vmatprep.subr.mxu0 0.0
        %3419 = vmatpush2.msra.mxu0 0.0
        %3420 = vmatprep.subr.mxu0 0.0
        %3421 = vmatpush2.msra.mxu0 0.0
        %3422 = vmatprep.subr.mxu0 0.0
        %3423 = vmatpush2.msra.mxu0 0.0
        %3424 = vmatprep.subr.mxu0 0.0
        %3425 = vmatpush2.msra.mxu0 0.0
        %3426 = vmatprep.subr.mxu0 0.0
        %3427 = vmatpush2.msra.mxu0 0.0
        %3428 = vmatprep.subr.mxu0 0.0
        %3429 = vmatpush2.msra.mxu0 0.0
        %3430 = vmatprep.mubr.f32.mxu0 0.0
        %3431 = vmatmul.mubr.f32.gmra.mxu0 %v3361
        %v3432 = vpop.f32.mrf.mxu0
        %v3433 = vadd.f32 0.0, %v3432
        %v3434 = vpop.f32.mrf.mxu0
        %3435 = vmatprep.mubr.f32.mxu0 0.0
        %3436 = vmatmul.mubr.f32.gmra.mxu0 %v3364
        %v3437 = vpop.f32.mrf.mxu0
        %v3438 = vadd.f32 0.0, %v3437
        %v3439 = vpop.f32.mrf.mxu0
        %3440 = vdwg.mxu0
        %v3441 = vadd.f32 %v2694, %v3433
        %v3442 = vadd.f32 %v2699, %v3438
        %s3443 = scalar_lea.vmem %s876, 96
        %v3444 = vld [vmem:[%s3443] sm:$0xff]
        %v3445 = vld [vmem:[%s3443 + $0x8] sm:$0xff]
        %v3446 = vld [vmem:[%s3443 + $0x10] sm:$0xff]
        %v3447 = vld [vmem:[%s3443 + $0x18] sm:$0xff]
        %s3448 = scalar_lea.vmem %s880, 3
        %v3449 = vld [vmem:[%s3448] sm:$0x1]
        %v3451 = vlaneseq
        %v3452 = vshrl.u32 %v3451, 7
        %v3453 = vsub.s32 0, %v3452
        %v3454 = vrot.slane %v3449, %v3453
        %3456 = vmatprep.subr.mxu0 0.0
        %3457 = vmatpush1.msra.mxu0 0.0
        %3458 = vmatprep.subr.mxu0 0.0
        %3459 = vmatpush1.msra.mxu0 0.0
        %3460 = vmatprep.subr.mxu0 0.0
        %3461 = vmatpush1.msra.mxu0 0.0
        %3462 = vmatprep.subr.mxu0 0.0
        %3463 = vmatpush1.msra.mxu0 0.0
        %3464 = vmatprep.subr.mxu0 0.0
        %3465 = vmatpush1.msra.mxu0 0.0
        %3466 = vmatprep.subr.mxu0 0.0
        %3467 = vmatpush1.msra.mxu0 0.0
        %3468 = vmatprep.subr.mxu0 0.0
        %3469 = vmatpush1.msra.mxu0 0.0
        %3470 = vmatprep.subr.mxu0 0.0
        %3471 = vmatpush1.msra.mxu0 0.0
        %3472 = vmatprep.subr.mxu0 0.0
        %3473 = vmatpush1.msra.mxu0 0.0
        %3474 = vmatprep.subr.mxu0 0.0
        %3475 = vmatpush1.msra.mxu0 0.0
        %3476 = vmatprep.subr.mxu0 0.0
        %3477 = vmatpush1.msra.mxu0 0.0
        %3478 = vmatprep.subr.mxu0 0.0
        %3479 = vmatpush1.msra.mxu0 0.0
        %3480 = vmatprep.subr.mxu0 0.0
        %3481 = vmatpush1.msra.mxu0 %v3447
        %3482 = vmatprep.subr.mxu0 0.0
        %3483 = vmatpush1.msra.mxu0 %v3446
        %3484 = vmatprep.subr.mxu0 0.0
        %3485 = vmatpush1.msra.mxu0 %v3445
        %3486 = vmatprep.subr.mxu0 0.0
        %3487 = vmatpush1.msra.mxu0 %v3444
        %3488 = vmatprep.subr.mxu0 0.0
        %3489 = vmatpush2.msra.mxu0 0.0
        %3490 = vmatprep.subr.mxu0 0.0
        %3491 = vmatpush2.msra.mxu0 0.0
        %3492 = vmatprep.subr.mxu0 0.0
        %3493 = vmatpush2.msra.mxu0 0.0
        %3494 = vmatprep.subr.mxu0 0.0
        %3495 = vmatpush2.msra.mxu0 0.0
        %3496 = vmatprep.subr.mxu0 0.0
        %3497 = vmatpush2.msra.mxu0 0.0
        %3498 = vmatprep.subr.mxu0 0.0
        %3499 = vmatpush2.msra.mxu0 0.0
        %3500 = vmatprep.subr.mxu0 0.0
        %3501 = vmatpush2.msra.mxu0 0.0
        %3502 = vmatprep.subr.mxu0 0.0
        %3503 = vmatpush2.msra.mxu0 0.0
        %3504 = vmatprep.subr.mxu0 0.0
        %3505 = vmatpush2.msra.mxu0 0.0
        %3506 = vmatprep.subr.mxu0 0.0
        %3507 = vmatpush2.msra.mxu0 0.0
        %3508 = vmatprep.subr.mxu0 0.0
        %3509 = vmatpush2.msra.mxu0 0.0
        %3510 = vmatprep.subr.mxu0 0.0
        %3511 = vmatpush2.msra.mxu0 0.0
        %3512 = vmatprep.subr.mxu0 0.0
        %3513 = vmatpush2.msra.mxu0 0.0
        %3514 = vmatprep.subr.mxu0 0.0
        %3515 = vmatpush2.msra.mxu0 0.0
        %3516 = vmatprep.subr.mxu0 0.0
        %3517 = vmatpush2.msra.mxu0 0.0
        %3518 = vmatprep.subr.mxu0 0.0
        %3519 = vmatpush2.msra.mxu0 0.0
        %3520 = vmatprep.mubr.f32.mxu0 0.0
        %3521 = vmatmul.mubr.f32.gmra.mxu0 %v1236
        %v3522 = vpop.f32.mrf.mxu0
        %v3523 = vadd.f32 %v3454, %v3522
        %v3524 = vpop.f32.mrf.mxu0
        %3525 = vmatprep.mubr.f32.mxu0 0.0
        %3526 = vmatmul.mubr.f32.gmra.mxu0 %v1239
        %v3527 = vpop.f32.mrf.mxu0
        %v3528 = vadd.f32 %v3454, %v3527
        %v3529 = vpop.f32.mrf.mxu0
        %3530 = vdwg.mxu0
        %s3531 = scalar_lea.vmem %s885, 96
        %v3532 = vld [vmem:[%s3531] sm:$0xff]
        %v3533 = vld [vmem:[%s3531 + $0x8] sm:$0xff]
        %v3534 = vld [vmem:[%s3531 + $0x10] sm:$0xff]
        %v3535 = vld [vmem:[%s3531 + $0x18] sm:$0xff]
        %s3536 = scalar_lea.vmem %s889, 3
        %v3537 = vld [vmem:[%s3536] sm:$0x1]
        %v3539 = vlaneseq
        %v3540 = vshrl.u32 %v3539, 7
        %v3541 = vsub.s32 0, %v3540
        %v3542 = vrot.slane %v3537, %v3541
        %3544 = vmatprep.subr.mxu0 0.0
        %3545 = vmatpush1.msra.mxu0 0.0
        %3546 = vmatprep.subr.mxu0 0.0
        %3547 = vmatpush1.msra.mxu0 0.0
        %3548 = vmatprep.subr.mxu0 0.0
        %3549 = vmatpush1.msra.mxu0 0.0
        %3550 = vmatprep.subr.mxu0 0.0
        %3551 = vmatpush1.msra.mxu0 0.0
        %3552 = vmatprep.subr.mxu0 0.0
        %3553 = vmatpush1.msra.mxu0 0.0
        %3554 = vmatprep.subr.mxu0 0.0
        %3555 = vmatpush1.msra.mxu0 0.0
        %3556 = vmatprep.subr.mxu0 0.0
        %3557 = vmatpush1.msra.mxu0 0.0
        %3558 = vmatprep.subr.mxu0 0.0
        %3559 = vmatpush1.msra.mxu0 0.0
        %3560 = vmatprep.subr.mxu0 0.0
        %3561 = vmatpush1.msra.mxu0 0.0
        %3562 = vmatprep.subr.mxu0 0.0
        %3563 = vmatpush1.msra.mxu0 0.0
        %3564 = vmatprep.subr.mxu0 0.0
        %3565 = vmatpush1.msra.mxu0 0.0
        %3566 = vmatprep.subr.mxu0 0.0
        %3567 = vmatpush1.msra.mxu0 0.0
        %3568 = vmatprep.subr.mxu0 0.0
        %3569 = vmatpush1.msra.mxu0 %v3535
        %3570 = vmatprep.subr.mxu0 0.0
        %3571 = vmatpush1.msra.mxu0 %v3534
        %3572 = vmatprep.subr.mxu0 0.0
        %3573 = vmatpush1.msra.mxu0 %v3533
        %3574 = vmatprep.subr.mxu0 0.0
        %3575 = vmatpush1.msra.mxu0 %v3532
        %3576 = vmatprep.subr.mxu0 0.0
        %3577 = vmatpush2.msra.mxu0 0.0
        %3578 = vmatprep.subr.mxu0 0.0
        %3579 = vmatpush2.msra.mxu0 0.0
        %3580 = vmatprep.subr.mxu0 0.0
        %3581 = vmatpush2.msra.mxu0 0.0
        %3582 = vmatprep.subr.mxu0 0.0
        %3583 = vmatpush2.msra.mxu0 0.0
        %3584 = vmatprep.subr.mxu0 0.0
        %3585 = vmatpush2.msra.mxu0 0.0
        %3586 = vmatprep.subr.mxu0 0.0
        %3587 = vmatpush2.msra.mxu0 0.0
        %3588 = vmatprep.subr.mxu0 0.0
        %3589 = vmatpush2.msra.mxu0 0.0
        %3590 = vmatprep.subr.mxu0 0.0
        %3591 = vmatpush2.msra.mxu0 0.0
        %3592 = vmatprep.subr.mxu0 0.0
        %3593 = vmatpush2.msra.mxu0 0.0
        %3594 = vmatprep.subr.mxu0 0.0
        %3595 = vmatpush2.msra.mxu0 0.0
        %3596 = vmatprep.subr.mxu0 0.0
        %3597 = vmatpush2.msra.mxu0 0.0
        %3598 = vmatprep.subr.mxu0 0.0
        %3599 = vmatpush2.msra.mxu0 0.0
        %3600 = vmatprep.subr.mxu0 0.0
        %3601 = vmatpush2.msra.mxu0 0.0
        %3602 = vmatprep.subr.mxu0 0.0
        %3603 = vmatpush2.msra.mxu0 0.0
        %3604 = vmatprep.subr.mxu0 0.0
        %3605 = vmatpush2.msra.mxu0 0.0
        %3606 = vmatprep.subr.mxu0 0.0
        %3607 = vmatpush2.msra.mxu0 0.0
        %3608 = vmatprep.mubr.f32.mxu0 0.0
        %3609 = vmatmul.mubr.f32.gmra.mxu0 %v1236
        %v3610 = vpop.f32.mrf.mxu0
        %v3611 = vadd.f32 %v3542, %v3610
        %v3612 = vpop.f32.mrf.mxu0
        %3613 = vmatprep.mubr.f32.mxu0 0.0
        %3614 = vmatmul.mubr.f32.gmra.mxu0 %v1239
        %v3615 = vpop.f32.mrf.mxu0
        %v3616 = vadd.f32 %v3542, %v3615
        %v3617 = vpop.f32.mrf.mxu0
        %3618 = vdwg.mxu0
        %s3619 = scalar_lea.vmem %s894, 96
        %v3620 = vld [vmem:[%s3619] sm:$0xff]
        %v3621 = vld [vmem:[%s3619 + $0x8] sm:$0xff]
        %v3622 = vld [vmem:[%s3619 + $0x10] sm:$0xff]
        %v3623 = vld [vmem:[%s3619 + $0x18] sm:$0xff]
        %s3624 = scalar_lea.vmem %s898, 3
        %v3625 = vld [vmem:[%s3624] sm:$0x1]
        %v3627 = vlaneseq
        %v3628 = vshrl.u32 %v3627, 7
        %v3629 = vsub.s32 0, %v3628
        %v3630 = vrot.slane %v3625, %v3629
        %3632 = vmatprep.subr.mxu0 0.0
        %3633 = vmatpush1.msra.mxu0 0.0
        %3634 = vmatprep.subr.mxu0 0.0
        %3635 = vmatpush1.msra.mxu0 0.0
        %3636 = vmatprep.subr.mxu0 0.0
        %3637 = vmatpush1.msra.mxu0 0.0
        %3638 = vmatprep.subr.mxu0 0.0
        %3639 = vmatpush1.msra.mxu0 0.0
        %3640 = vmatprep.subr.mxu0 0.0
        %3641 = vmatpush1.msra.mxu0 0.0
        %3642 = vmatprep.subr.mxu0 0.0
        %3643 = vmatpush1.msra.mxu0 0.0
        %3644 = vmatprep.subr.mxu0 0.0
        %3645 = vmatpush1.msra.mxu0 0.0
        %3646 = vmatprep.subr.mxu0 0.0
        %3647 = vmatpush1.msra.mxu0 0.0
        %3648 = vmatprep.subr.mxu0 0.0
        %3649 = vmatpush1.msra.mxu0 0.0
        %3650 = vmatprep.subr.mxu0 0.0
        %3651 = vmatpush1.msra.mxu0 0.0
        %3652 = vmatprep.subr.mxu0 0.0
        %3653 = vmatpush1.msra.mxu0 0.0
        %3654 = vmatprep.subr.mxu0 0.0
        %3655 = vmatpush1.msra.mxu0 0.0
        %3656 = vmatprep.subr.mxu0 0.0
        %3657 = vmatpush1.msra.mxu0 %v3623
        %3658 = vmatprep.subr.mxu0 0.0
        %3659 = vmatpush1.msra.mxu0 %v3622
        %3660 = vmatprep.subr.mxu0 0.0
        %3661 = vmatpush1.msra.mxu0 %v3621
        %3662 = vmatprep.subr.mxu0 0.0
        %3663 = vmatpush1.msra.mxu0 %v3620
        %3664 = vmatprep.subr.mxu0 0.0
        %3665 = vmatpush2.msra.mxu0 0.0
        %3666 = vmatprep.subr.mxu0 0.0
        %3667 = vmatpush2.msra.mxu0 0.0
        %3668 = vmatprep.subr.mxu0 0.0
        %3669 = vmatpush2.msra.mxu0 0.0
        %3670 = vmatprep.subr.mxu0 0.0
        %3671 = vmatpush2.msra.mxu0 0.0
        %3672 = vmatprep.subr.mxu0 0.0
        %3673 = vmatpush2.msra.mxu0 0.0
        %3674 = vmatprep.subr.mxu0 0.0
        %3675 = vmatpush2.msra.mxu0 0.0
        %3676 = vmatprep.subr.mxu0 0.0
        %3677 = vmatpush2.msra.mxu0 0.0
        %3678 = vmatprep.subr.mxu0 0.0
        %3679 = vmatpush2.msra.mxu0 0.0
        %3680 = vmatprep.subr.mxu0 0.0
        %3681 = vmatpush2.msra.mxu0 0.0
        %3682 = vmatprep.subr.mxu0 0.0
        %3683 = vmatpush2.msra.mxu0 0.0
        %3684 = vmatprep.subr.mxu0 0.0
        %3685 = vmatpush2.msra.mxu0 0.0
        %3686 = vmatprep.subr.mxu0 0.0
        %3687 = vmatpush2.msra.mxu0 0.0
        %3688 = vmatprep.subr.mxu0 0.0
        %3689 = vmatpush2.msra.mxu0 0.0
        %3690 = vmatprep.subr.mxu0 0.0
        %3691 = vmatpush2.msra.mxu0 0.0
        %3692 = vmatprep.subr.mxu0 0.0
        %3693 = vmatpush2.msra.mxu0 0.0
        %3694 = vmatprep.subr.mxu0 0.0
        %3695 = vmatpush2.msra.mxu0 0.0
        %3696 = vmatprep.mubr.f32.mxu0 0.0
        %3697 = vmatmul.mubr.f32.gmra.mxu0 %v1236
        %v3698 = vpop.f32.mrf.mxu0
        %v3699 = vadd.f32 %v3630, %v3698
        %v3700 = vpop.f32.mrf.mxu0
        %3701 = vmatprep.mubr.f32.mxu0 0.0
        %3702 = vmatmul.mubr.f32.gmra.mxu0 %v1239
        %v3703 = vpop.f32.mrf.mxu0
        %v3704 = vadd.f32 %v3630, %v3703
        %v3705 = vpop.f32.mrf.mxu0
        %3706 = vdwg.mxu0
        %v3708 = vsel %vm1488, %v3523, 0
        %v3711 = vsel %vm1488, %v3528, 0
        %v3714 = vsel %vm1488, %v3611, 0
        %3716 = vmatprep.subr.mxu0 0.0
        %3717 = vmatpush1.xpose.msra.mxu0 0.0
        %3718 = vmatprep.subr.mxu0 0.0
        %3719 = vmatpush1.xpose.msra.mxu0 0.0
        %3720 = vmatprep.subr.mxu0 0.0
        %3721 = vmatpush1.xpose.msra.mxu0 0.0
        %3722 = vmatprep.subr.mxu0 0.0
        %3723 = vmatpush1.xpose.msra.mxu0 0.0
        %3724 = vmatprep.subr.mxu0 0.0
        %3725 = vmatpush1.xpose.msra.mxu0 0.0
        %3726 = vmatprep.subr.mxu0 0.0
        %3727 = vmatpush1.xpose.msra.mxu0 0.0
        %3728 = vmatprep.subr.mxu0 0.0
        %3729 = vmatpush1.xpose.msra.mxu0 0.0
        %3730 = vmatprep.subr.mxu0 0.0
        %3731 = vmatpush1.xpose.msra.mxu0 0.0
        %3732 = vmatprep.subr.mxu0 0.0
        %3733 = vmatpush1.xpose.msra.mxu0 0.0
        %3734 = vmatprep.subr.mxu0 0.0
        %3735 = vmatpush1.xpose.msra.mxu0 0.0
        %3736 = vmatprep.subr.mxu0 0.0
        %3737 = vmatpush1.xpose.msra.mxu0 0.0
        %3738 = vmatprep.subr.mxu0 0.0
        %3739 = vmatpush1.xpose.msra.mxu0 0.0
        %3740 = vmatprep.subr.mxu0 0.0
        %3741 = vmatpush1.xpose.msra.mxu0 0.0
        %3742 = vmatprep.subr.mxu0 0.0
        %3743 = vmatpush1.xpose.msra.mxu0 0.0
        %3744 = vmatprep.subr.mxu0 0.0
        %3745 = vmatpush1.xpose.msra.mxu0 0.0
        %3746 = vmatprep.subr.mxu0 0.0
        %3747 = vmatpush1.xpose.msra.mxu0 %v3714
        %3748 = vmatprep.subr.mxu0 0.0
        %3749 = vmatpush2.xpose.msra.mxu0 0.0
        %3750 = vmatprep.subr.mxu0 0.0
        %3751 = vmatpush2.xpose.msra.mxu0 0.0
        %3752 = vmatprep.subr.mxu0 0.0
        %3753 = vmatpush2.xpose.msra.mxu0 0.0
        %3754 = vmatprep.subr.mxu0 0.0
        %3755 = vmatpush2.xpose.msra.mxu0 0.0
        %3756 = vmatprep.subr.mxu0 0.0
        %3757 = vmatpush2.xpose.msra.mxu0 0.0
        %3758 = vmatprep.subr.mxu0 0.0
        %3759 = vmatpush2.xpose.msra.mxu0 0.0
        %3760 = vmatprep.subr.mxu0 0.0
        %3761 = vmatpush2.xpose.msra.mxu0 0.0
        %3762 = vmatprep.subr.mxu0 0.0
        %3763 = vmatpush2.xpose.msra.mxu0 0.0
        %3764 = vmatprep.subr.mxu0 0.0
        %3765 = vmatpush2.xpose.msra.mxu0 0.0
        %3766 = vmatprep.subr.mxu0 0.0
        %3767 = vmatpush2.xpose.msra.mxu0 0.0
        %3768 = vmatprep.subr.mxu0 0.0
        %3769 = vmatpush2.xpose.msra.mxu0 0.0
        %3770 = vmatprep.subr.mxu0 0.0
        %3771 = vmatpush2.xpose.msra.mxu0 0.0
        %3772 = vmatprep.subr.mxu0 0.0
        %3773 = vmatpush2.xpose.msra.mxu0 0.0
        %3774 = vmatprep.subr.mxu0 0.0
        %3775 = vmatpush2.xpose.msra.mxu0 0.0
        %3776 = vmatprep.subr.mxu0 0.0
        %3777 = vmatpush2.xpose.msra.mxu0 0.0
        %3778 = vmatprep.subr.mxu0 0.0
        %3779 = vmatpush2.xpose.msra.mxu0 0.0
        %3780 = vmatprep.mubr.f32.mxu0 0.0
        %3781 = vmatmul.mubr.f32.gmra.mxu0 %v3708
        %v3782 = vpop.f32.mrf.mxu0
        %v3783 = vadd.f32 0.0, %v3782
        %v3784 = vpop.f32.mrf.mxu0
        %3785 = vmatprep.mubr.f32.mxu0 0.0
        %3786 = vmatmul.mubr.f32.gmra.mxu0 %v3711
        %v3787 = vpop.f32.mrf.mxu0
        %v3788 = vadd.f32 0.0, %v3787
        %v3789 = vpop.f32.mrf.mxu0
        %3790 = vdwg.mxu0
        %v3791 = vsel %vm1488, %v3783, -inf
        %3792 = vmax.xlane.f32.xlu0 %v3791
        %v3793 = vpop.xlane.xlu0 %3792
        %v3794 = vsel %vm1488, %v3788, -inf
        %3795 = vmax.xlane.f32.xlu0 %v3794
        %v3796 = vpop.xlane.xlu0 %3795
        %v3797 = vsub.f32 -inf, %v3793
        %v3798 = vsub.f32 -inf, %v3796
        %v3799 = vmul.f32 %v3797, 1.442695
        %v3800 = vpow.pop %v3799
        %v3801 = vmul.f32 %v3798, 1.442695
        %v3802 = vpow.pop %v3801
        %v3803 = vsub.f32 %v3783, %v3793
        %v3804 = vsub.f32 %v3788, %v3796
        %v3805 = vmul.f32 %v3803, 1.442695
        %v3806 = vpow.pop %v3805
        %v3807 = vmul.f32 %v3804, 1.442695
        %v3808 = vpow.pop %v3807
        %v3809 = vmul.f32 %v3800, 0.0
        %v3810 = vmul.f32 %v3802, 0.0
        %v3811 = vsel %vm1488, %v3806, 0.0
        %3812 = vadd.xlane.f32.xlu0 %v3811
        %v3813 = vpop.xlane.xlu0 %3812
        %v3814 = vsel %vm1488, %v3808, 0.0
        %3815 = vadd.xlane.f32.xlu0 %v3814
        %v3816 = vpop.xlane.xlu0 %3815
        %v3817 = vadd.f32 %v3809, %v3813
        %v3818 = vadd.f32 %v3810, %v3816
        %v3820 = vsel %vm1488, %v3806, 0
        %v3823 = vsel %vm1488, %v3808, 0
        %3825 = vmatprep.subr.mxu0 0.0
        %3826 = vmatpush1.msra.mxu0 0.0
        %3827 = vmatprep.subr.mxu0 0.0
        %3828 = vmatpush1.msra.mxu0 0.0
        %3829 = vmatprep.subr.mxu0 0.0
        %3830 = vmatpush1.msra.mxu0 0.0
        %3831 = vmatprep.subr.mxu0 0.0
        %3832 = vmatpush1.msra.mxu0 0.0
        %3833 = vmatprep.subr.mxu0 0.0
        %3834 = vmatpush1.msra.mxu0 0.0
        %3835 = vmatprep.subr.mxu0 0.0
        %3836 = vmatpush1.msra.mxu0 0.0
        %3837 = vmatprep.subr.mxu0 0.0
        %3838 = vmatpush1.msra.mxu0 0.0
        %3839 = vmatprep.subr.mxu0 0.0
        %3840 = vmatpush1.msra.mxu0 0.0
        %3841 = vmatprep.subr.mxu0 0.0
        %3842 = vmatpush1.msra.mxu0 0.0
        %3843 = vmatprep.subr.mxu0 0.0
        %3844 = vmatpush1.msra.mxu0 0.0
        %3845 = vmatprep.subr.mxu0 0.0
        %3846 = vmatpush1.msra.mxu0 0.0
        %3847 = vmatprep.subr.mxu0 0.0
        %3848 = vmatpush1.msra.mxu0 0.0
        %3849 = vmatprep.subr.mxu0 0.0
        %3850 = vmatpush1.msra.mxu0 0.0
        %3851 = vmatprep.subr.mxu0 0.0
        %3852 = vmatpush1.msra.mxu0 0.0
        %3853 = vmatprep.subr.mxu0 0.0
        %3854 = vmatpush1.msra.mxu0 0.0
        %3855 = vmatprep.subr.mxu0 0.0
        %3856 = vmatpush1.msra.mxu0 %v3699
        %3857 = vmatprep.subr.mxu0 0.0
        %3858 = vmatpush2.msra.mxu0 0.0
        %3859 = vmatprep.subr.mxu0 0.0
        %3860 = vmatpush2.msra.mxu0 0.0
        %3861 = vmatprep.subr.mxu0 0.0
        %3862 = vmatpush2.msra.mxu0 0.0
        %3863 = vmatprep.subr.mxu0 0.0
        %3864 = vmatpush2.msra.mxu0 0.0
        %3865 = vmatprep.subr.mxu0 0.0
        %3866 = vmatpush2.msra.mxu0 0.0
        %3867 = vmatprep.subr.mxu0 0.0
        %3868 = vmatpush2.msra.mxu0 0.0
        %3869 = vmatprep.subr.mxu0 0.0
        %3870 = vmatpush2.msra.mxu0 0.0
        %3871 = vmatprep.subr.mxu0 0.0
        %3872 = vmatpush2.msra.mxu0 0.0
        %3873 = vmatprep.subr.mxu0 0.0
        %3874 = vmatpush2.msra.mxu0 0.0
        %3875 = vmatprep.subr.mxu0 0.0
        %3876 = vmatpush2.msra.mxu0 0.0
        %3877 = vmatprep.subr.mxu0 0.0
        %3878 = vmatpush2.msra.mxu0 0.0
        %3879 = vmatprep.subr.mxu0 0.0
        %3880 = vmatpush2.msra.mxu0 0.0
        %3881 = vmatprep.subr.mxu0 0.0
        %3882 = vmatpush2.msra.mxu0 0.0
        %3883 = vmatprep.subr.mxu0 0.0
        %3884 = vmatpush2.msra.mxu0 0.0
        %3885 = vmatprep.subr.mxu0 0.0
        %3886 = vmatpush2.msra.mxu0 0.0
        %3887 = vmatprep.subr.mxu0 0.0
        %3888 = vmatpush2.msra.mxu0 0.0
        %3889 = vmatprep.mubr.f32.mxu0 0.0
        %3890 = vmatmul.mubr.f32.gmra.mxu0 %v3820
        %v3891 = vpop.f32.mrf.mxu0
        %v3892 = vadd.f32 0.0, %v3891
        %v3893 = vpop.f32.mrf.mxu0
        %3894 = vmatprep.mubr.f32.mxu0 0.0
        %3895 = vmatmul.mubr.f32.gmra.mxu0 %v3823
        %v3896 = vpop.f32.mrf.mxu0
        %v3897 = vadd.f32 0.0, %v3896
        %v3898 = vpop.f32.mrf.mxu0
        %3899 = vdwg.mxu0
        %v3900 = vadd.f32 %v3809, %v3892
        %v3901 = vadd.f32 %v3810, %v3897
        %v3903 = vsel %vm1488, %v3616, 0
        %3905 = vmatprep.subr.mxu0 0.0
        %3906 = vmatpush1.xpose.msra.mxu0 0.0
        %3907 = vmatprep.subr.mxu0 0.0
        %3908 = vmatpush1.xpose.msra.mxu0 0.0
        %3909 = vmatprep.subr.mxu0 0.0
        %3910 = vmatpush1.xpose.msra.mxu0 0.0
        %3911 = vmatprep.subr.mxu0 0.0
        %3912 = vmatpush1.xpose.msra.mxu0 0.0
        %3913 = vmatprep.subr.mxu0 0.0
        %3914 = vmatpush1.xpose.msra.mxu0 0.0
        %3915 = vmatprep.subr.mxu0 0.0
        %3916 = vmatpush1.xpose.msra.mxu0 0.0
        %3917 = vmatprep.subr.mxu0 0.0
        %3918 = vmatpush1.xpose.msra.mxu0 0.0
        %3919 = vmatprep.subr.mxu0 0.0
        %3920 = vmatpush1.xpose.msra.mxu0 0.0
        %3921 = vmatprep.subr.mxu0 0.0
        %3922 = vmatpush1.xpose.msra.mxu0 0.0
        %3923 = vmatprep.subr.mxu0 0.0
        %3924 = vmatpush1.xpose.msra.mxu0 0.0
        %3925 = vmatprep.subr.mxu0 0.0
        %3926 = vmatpush1.xpose.msra.mxu0 0.0
        %3927 = vmatprep.subr.mxu0 0.0
        %3928 = vmatpush1.xpose.msra.mxu0 0.0
        %3929 = vmatprep.subr.mxu0 0.0
        %3930 = vmatpush1.xpose.msra.mxu0 0.0
        %3931 = vmatprep.subr.mxu0 0.0
        %3932 = vmatpush1.xpose.msra.mxu0 0.0
        %3933 = vmatprep.subr.mxu0 0.0
        %3934 = vmatpush1.xpose.msra.mxu0 0.0
        %3935 = vmatprep.subr.mxu0 0.0
        %3936 = vmatpush1.xpose.msra.mxu0 %v3903
        %3937 = vmatprep.subr.mxu0 0.0
        %3938 = vmatpush2.xpose.msra.mxu0 0.0
        %3939 = vmatprep.subr.mxu0 0.0
        %3940 = vmatpush2.xpose.msra.mxu0 0.0
        %3941 = vmatprep.subr.mxu0 0.0
        %3942 = vmatpush2.xpose.msra.mxu0 0.0
        %3943 = vmatprep.subr.mxu0 0.0
        %3944 = vmatpush2.xpose.msra.mxu0 0.0
        %3945 = vmatprep.subr.mxu0 0.0
        %3946 = vmatpush2.xpose.msra.mxu0 0.0
        %3947 = vmatprep.subr.mxu0 0.0
        %3948 = vmatpush2.xpose.msra.mxu0 0.0
        %3949 = vmatprep.subr.mxu0 0.0
        %3950 = vmatpush2.xpose.msra.mxu0 0.0
        %3951 = vmatprep.subr.mxu0 0.0
        %3952 = vmatpush2.xpose.msra.mxu0 0.0
        %3953 = vmatprep.subr.mxu0 0.0
        %3954 = vmatpush2.xpose.msra.mxu0 0.0
        %3955 = vmatprep.subr.mxu0 0.0
        %3956 = vmatpush2.xpose.msra.mxu0 0.0
        %3957 = vmatprep.subr.mxu0 0.0
        %3958 = vmatpush2.xpose.msra.mxu0 0.0
        %3959 = vmatprep.subr.mxu0 0.0
        %3960 = vmatpush2.xpose.msra.mxu0 0.0
        %3961 = vmatprep.subr.mxu0 0.0
        %3962 = vmatpush2.xpose.msra.mxu0 0.0
        %3963 = vmatprep.subr.mxu0 0.0
        %3964 = vmatpush2.xpose.msra.mxu0 0.0
        %3965 = vmatprep.subr.mxu0 0.0
        %3966 = vmatpush2.xpose.msra.mxu0 0.0
        %3967 = vmatprep.subr.mxu0 0.0
        %3968 = vmatpush2.xpose.msra.mxu0 0.0
        %3969 = vmatprep.mubr.f32.mxu0 0.0
        %3970 = vmatmul.mubr.f32.gmra.mxu0 %v3708
        %v3971 = vpop.f32.mrf.mxu0
        %v3972 = vadd.f32 0.0, %v3971
        %v3973 = vpop.f32.mrf.mxu0
        %3974 = vmatprep.mubr.f32.mxu0 0.0
        %3975 = vmatmul.mubr.f32.gmra.mxu0 %v3711
        %v3976 = vpop.f32.mrf.mxu0
        %v3977 = vadd.f32 0.0, %v3976
        %v3978 = vpop.f32.mrf.mxu0
        %3979 = vdwg.mxu0
        %v3980 = vsel %vm1488, %v3972, -inf
        %3981 = vmax.xlane.f32.xlu0 %v3980
        %v3982 = vpop.xlane.xlu0 %3981
        %v3983 = vsel %vm1488, %v3977, -inf
        %3984 = vmax.xlane.f32.xlu0 %v3983
        %v3985 = vpop.xlane.xlu0 %3984
        %v3986 = vmax.f32 %v3793, %v3982
        %v3987 = vmax.f32 %v3796, %v3985
        %v3988 = vsub.f32 %v3793, %v3986
        %v3989 = vsub.f32 %v3796, %v3987
        %v3990 = vmul.f32 %v3988, 1.442695
        %v3991 = vpow.pop %v3990
        %v3992 = vmul.f32 %v3989, 1.442695
        %v3993 = vpow.pop %v3992
        %v3994 = vsub.f32 %v3972, %v3986
        %v3995 = vsub.f32 %v3977, %v3987
        %v3996 = vmul.f32 %v3994, 1.442695
        %v3997 = vpow.pop %v3996
        %v3998 = vmul.f32 %v3995, 1.442695
        %v3999 = vpow.pop %v3998
        %v4000 = vmul.f32 %v3991, %v3817
        %v4001 = vmul.f32 %v3993, %v3818
        %v4002 = vsel %vm1488, %v3997, 0.0
        %4003 = vadd.xlane.f32.xlu0 %v4002
        %v4004 = vpop.xlane.xlu0 %4003
        %v4005 = vsel %vm1488, %v3999, 0.0
        %4006 = vadd.xlane.f32.xlu0 %v4005
        %v4007 = vpop.xlane.xlu0 %4006
        %v4008 = vadd.f32 %v4000, %v4004
        %v4009 = vadd.f32 %v4001, %v4007
        %v4010 = vmul.f32 %v3991, %v3900
        %v4011 = vmul.f32 %v3993, %v3901
        %v4013 = vsel %vm1488, %v3997, 0
        %v4016 = vsel %vm1488, %v3999, 0
        %4018 = vmatprep.subr.mxu0 0.0
        %4019 = vmatpush1.msra.mxu0 0.0
        %4020 = vmatprep.subr.mxu0 0.0
        %4021 = vmatpush1.msra.mxu0 0.0
        %4022 = vmatprep.subr.mxu0 0.0
        %4023 = vmatpush1.msra.mxu0 0.0
        %4024 = vmatprep.subr.mxu0 0.0
        %4025 = vmatpush1.msra.mxu0 0.0
        %4026 = vmatprep.subr.mxu0 0.0
        %4027 = vmatpush1.msra.mxu0 0.0
        %4028 = vmatprep.subr.mxu0 0.0
        %4029 = vmatpush1.msra.mxu0 0.0
        %4030 = vmatprep.subr.mxu0 0.0
        %4031 = vmatpush1.msra.mxu0 0.0
        %4032 = vmatprep.subr.mxu0 0.0
        %4033 = vmatpush1.msra.mxu0 0.0
        %4034 = vmatprep.subr.mxu0 0.0
        %4035 = vmatpush1.msra.mxu0 0.0
        %4036 = vmatprep.subr.mxu0 0.0
        %4037 = vmatpush1.msra.mxu0 0.0
        %4038 = vmatprep.subr.mxu0 0.0
        %4039 = vmatpush1.msra.mxu0 0.0
        %4040 = vmatprep.subr.mxu0 0.0
        %4041 = vmatpush1.msra.mxu0 0.0
        %4042 = vmatprep.subr.mxu0 0.0
        %4043 = vmatpush1.msra.mxu0 0.0
        %4044 = vmatprep.subr.mxu0 0.0
        %4045 = vmatpush1.msra.mxu0 0.0
        %4046 = vmatprep.subr.mxu0 0.0
        %4047 = vmatpush1.msra.mxu0 0.0
        %4048 = vmatprep.subr.mxu0 0.0
        %4049 = vmatpush1.msra.mxu0 %v3704
        %4050 = vmatprep.subr.mxu0 0.0
        %4051 = vmatpush2.msra.mxu0 0.0
        %4052 = vmatprep.subr.mxu0 0.0
        %4053 = vmatpush2.msra.mxu0 0.0
        %4054 = vmatprep.subr.mxu0 0.0
        %4055 = vmatpush2.msra.mxu0 0.0
        %4056 = vmatprep.subr.mxu0 0.0
        %4057 = vmatpush2.msra.mxu0 0.0
        %4058 = vmatprep.subr.mxu0 0.0
        %4059 = vmatpush2.msra.mxu0 0.0
        %4060 = vmatprep.subr.mxu0 0.0
        %4061 = vmatpush2.msra.mxu0 0.0
        %4062 = vmatprep.subr.mxu0 0.0
        %4063 = vmatpush2.msra.mxu0 0.0
        %4064 = vmatprep.subr.mxu0 0.0
        %4065 = vmatpush2.msra.mxu0 0.0
        %4066 = vmatprep.subr.mxu0 0.0
        %4067 = vmatpush2.msra.mxu0 0.0
        %4068 = vmatprep.subr.mxu0 0.0
        %4069 = vmatpush2.msra.mxu0 0.0
        %4070 = vmatprep.subr.mxu0 0.0
        %4071 = vmatpush2.msra.mxu0 0.0
        %4072 = vmatprep.subr.mxu0 0.0
        %4073 = vmatpush2.msra.mxu0 0.0
        %4074 = vmatprep.subr.mxu0 0.0
        %4075 = vmatpush2.msra.mxu0 0.0
        %4076 = vmatprep.subr.mxu0 0.0
        %4077 = vmatpush2.msra.mxu0 0.0
        %4078 = vmatprep.subr.mxu0 0.0
        %4079 = vmatpush2.msra.mxu0 0.0
        %4080 = vmatprep.subr.mxu0 0.0
        %4081 = vmatpush2.msra.mxu0 0.0
        %4082 = vmatprep.mubr.f32.mxu0 0.0
        %4083 = vmatmul.mubr.f32.gmra.mxu0 %v4013
        %v4084 = vpop.f32.mrf.mxu0
        %v4085 = vadd.f32 0.0, %v4084
        %v4086 = vpop.f32.mrf.mxu0
        %4087 = vmatprep.mubr.f32.mxu0 0.0
        %4088 = vmatmul.mubr.f32.gmra.mxu0 %v4016
        %v4089 = vpop.f32.mrf.mxu0
        %v4090 = vadd.f32 0.0, %v4089
        %v4091 = vpop.f32.mrf.mxu0
        %4092 = vdwg.mxu0
        %v4093 = vadd.f32 %v4010, %v4085
        %v4094 = vadd.f32 %v4011, %v4090
        %v4095 = vrcp.pop %v4008
        %v4096 = vmul.f32 %v4093, %v4095
        %v4097 = vrcp.pop %v4009
        %v4098 = vmul.f32 %v4094, %v4097
        %s4099 = scalar_lea.vmem %s903, 24
        %v4100 = vld [vmem:[%s4099] sm:$0xff]
        %v4102 = vsel %vm1488, %v4096, 0
        %v4105 = vsel %vm1488, %v4098, 0
        %4107 = vmatprep.subr.mxu0 0.0
        %4108 = vmatpush1.msra.mxu0 0.0
        %4109 = vmatprep.subr.mxu0 0.0
        %4110 = vmatpush1.msra.mxu0 0.0
        %4111 = vmatprep.subr.mxu0 0.0
        %4112 = vmatpush1.msra.mxu0 0.0
        %4113 = vmatprep.subr.mxu0 0.0
        %4114 = vmatpush1.msra.mxu0 0.0
        %4115 = vmatprep.subr.mxu0 0.0
        %4116 = vmatpush1.msra.mxu0 0.0
        %4117 = vmatprep.subr.mxu0 0.0
        %4118 = vmatpush1.msra.mxu0 0.0
        %4119 = vmatprep.subr.mxu0 0.0
        %4120 = vmatpush1.msra.mxu0 0.0
        %4121 = vmatprep.subr.mxu0 0.0
        %4122 = vmatpush1.msra.mxu0 0.0
        %4123 = vmatprep.subr.mxu0 0.0
        %4124 = vmatpush1.msra.mxu0 0.0
        %4125 = vmatprep.subr.mxu0 0.0
        %4126 = vmatpush1.msra.mxu0 0.0
        %4127 = vmatprep.subr.mxu0 0.0
        %4128 = vmatpush1.msra.mxu0 0.0
        %4129 = vmatprep.subr.mxu0 0.0
        %4130 = vmatpush1.msra.mxu0 0.0
        %4131 = vmatprep.subr.mxu0 0.0
        %4132 = vmatpush1.msra.mxu0 0.0
        %4133 = vmatprep.subr.mxu0 0.0
        %4134 = vmatpush1.msra.mxu0 0.0
        %4135 = vmatprep.subr.mxu0 0.0
        %4136 = vmatpush1.msra.mxu0 0.0
        %4137 = vmatprep.subr.mxu0 0.0
        %4138 = vmatpush1.msra.mxu0 %v4100
        %4139 = vmatprep.subr.mxu0 0.0
        %4140 = vmatpush2.msra.mxu0 0.0
        %4141 = vmatprep.subr.mxu0 0.0
        %4142 = vmatpush2.msra.mxu0 0.0
        %4143 = vmatprep.subr.mxu0 0.0
        %4144 = vmatpush2.msra.mxu0 0.0
        %4145 = vmatprep.subr.mxu0 0.0
        %4146 = vmatpush2.msra.mxu0 0.0
        %4147 = vmatprep.subr.mxu0 0.0
        %4148 = vmatpush2.msra.mxu0 0.0
        %4149 = vmatprep.subr.mxu0 0.0
        %4150 = vmatpush2.msra.mxu0 0.0
        %4151 = vmatprep.subr.mxu0 0.0
        %4152 = vmatpush2.msra.mxu0 0.0
        %4153 = vmatprep.subr.mxu0 0.0
        %4154 = vmatpush2.msra.mxu0 0.0
        %4155 = vmatprep.subr.mxu0 0.0
        %4156 = vmatpush2.msra.mxu0 0.0
        %4157 = vmatprep.subr.mxu0 0.0
        %4158 = vmatpush2.msra.mxu0 0.0
        %4159 = vmatprep.subr.mxu0 0.0
        %4160 = vmatpush2.msra.mxu0 0.0
        %4161 = vmatprep.subr.mxu0 0.0
        %4162 = vmatpush2.msra.mxu0 0.0
        %4163 = vmatprep.subr.mxu0 0.0
        %4164 = vmatpush2.msra.mxu0 0.0
        %4165 = vmatprep.subr.mxu0 0.0
        %4166 = vmatpush2.msra.mxu0 0.0
        %4167 = vmatprep.subr.mxu0 0.0
        %4168 = vmatpush2.msra.mxu0 0.0
        %4169 = vmatprep.subr.mxu0 0.0
        %4170 = vmatpush2.msra.mxu0 0.0
        %4171 = vmatprep.mubr.f32.mxu0 0.0
        %4172 = vmatmul.mubr.f32.gmra.mxu0 %v4102
        %v4173 = vpop.f32.mrf.mxu0
        %v4174 = vadd.f32 0.0, %v4173
        %v4175 = vpop.f32.mrf.mxu0
        %4176 = vmatprep.mubr.f32.mxu0 0.0
        %4177 = vmatmul.mubr.f32.gmra.mxu0 %v4105
        %v4178 = vpop.f32.mrf.mxu0
        %v4179 = vadd.f32 0.0, %v4178
        %v4180 = vpop.f32.mrf.mxu0
        %4181 = vdwg.mxu0
        %v4182 = vadd.f32 %v3441, %v4174
        %v4183 = vadd.f32 %v3442, %v4179
        %v4184 = vld [vmem:[%s906] sm:$0x1]
        %v4186 = vlaneseq
        %v4187 = vshrl.u32 %v4186, 7
        %v4188 = vsub.s32 0, %v4187
        %v4189 = vrot.slane %v4184, %v4188
        %v4191 = vadd.f32 %v4182, %v4189
        %v4192 = vadd.f32 %v4183, %v4189
        %v4193 = vadd.f32 %v1221, %v4191
        %v4194 = vadd.f32 %v1222, %v4192
        %v4195 = vld [vmem:[%s909] sm:$0x1]
        %v4196 = vld [vmem:[%s912] sm:$0x1]
        %v4197 = vsel %vm1234, %v4193, 0.0
        %4198 = vadd.xlane.f32.xlu0 %v4197
        %v4199 = vpop.xlane.xlu0 %4198
        %v4200 = vsel %vm1234, %v4194, 0.0
        %4201 = vadd.xlane.f32.xlu0 %v4200
        %v4202 = vpop.xlane.xlu0 %4201
        %v4203 = vrcp.pop 32.0
        %v4204 = vmul.f32 %v4199, %v4203
        %v4205 = vmul.f32 %v4202, %v4203
        %v4206 = vsub.f32 %v4193, %v4204
        %v4207 = vsub.f32 %v4194, %v4205
        %v4208 = vmul.f32 %v4206, %v4206
        %v4209 = vmul.f32 %v4207, %v4207
        %v4210 = vsel %vm1234, %v4208, 0.0
        %4211 = vadd.xlane.f32.xlu0 %v4210
        %v4212 = vpop.xlane.xlu0 %4211
        %v4213 = vsel %vm1234, %v4209, 0.0
        %4214 = vadd.xlane.f32.xlu0 %v4213
        %v4215 = vpop.xlane.xlu0 %4214
        %v4216 = vmul.f32 %v4212, %v4203
        %v4217 = vmul.f32 %v4215, %v4203
        %v4218 = vadd.f32 %v4216, 1e-05
        %v4219 = vadd.f32 %v4217, 1e-05
        %v4220 = vrsqrt.pop %v4218
        %v4221 = vrsqrt.pop %v4219
        %v4222 = vmul.f32 %v4206, %v4220
        %v4223 = vmul.f32 %v4207, %v4221
        %v4225 = vlaneseq
        %v4226 = vshrl.u32 %v4225, 7
        %v4227 = vsub.s32 0, %v4226
        %v4228 = vrot.slane %v4195, %v4227
        %v4230 = vmul.f32 %v4222, %v4228
        %v4231 = vmul.f32 %v4223, %v4228
        %v4233 = vlaneseq
        %v4234 = vshrl.u32 %v4233, 7
        %v4235 = vsub.s32 0, %v4234
        %v4236 = vrot.slane %v4196, %v4235
        %v4238 = vadd.f32 %v4230, %v4236
        %v4239 = vadd.f32 %v4231, %v4236
        %v4240 = vld [vmem:[%s917] sm:$0xff]
        %v4241 = vld [vmem:[%s917 + $0x8] sm:$0xff]
        %v4242 = vld [vmem:[%s917 + $0x10] sm:$0xff]
        %v4243 = vld [vmem:[%s917 + $0x18] sm:$0xff]
        %v4244 = vld [vmem:[%s920] sm:$0x1]
        %v4246 = vlaneseq
        %v4247 = vshrl.u32 %v4246, 7
        %v4248 = vsub.s32 0, %v4247
        %v4249 = vrot.slane %v4244, %v4248
        %v4252 = vsel %vm1234, %v4238, 0
        %v4255 = vsel %vm1234, %v4239, 0
        %4257 = vmatprep.subr.mxu0 0.0
        %4258 = vmatpush1.msra.mxu0 0.0
        %4259 = vmatprep.subr.mxu0 0.0
        %4260 = vmatpush1.msra.mxu0 0.0
        %4261 = vmatprep.subr.mxu0 0.0
        %4262 = vmatpush1.msra.mxu0 0.0
        %4263 = vmatprep.subr.mxu0 0.0
        %4264 = vmatpush1.msra.mxu0 0.0
        %4265 = vmatprep.subr.mxu0 0.0
        %4266 = vmatpush1.msra.mxu0 0.0
        %4267 = vmatprep.subr.mxu0 0.0
        %4268 = vmatpush1.msra.mxu0 0.0
        %4269 = vmatprep.subr.mxu0 0.0
        %4270 = vmatpush1.msra.mxu0 0.0
        %4271 = vmatprep.subr.mxu0 0.0
        %4272 = vmatpush1.msra.mxu0 0.0
        %4273 = vmatprep.subr.mxu0 0.0
        %4274 = vmatpush1.msra.mxu0 0.0
        %4275 = vmatprep.subr.mxu0 0.0
        %4276 = vmatpush1.msra.mxu0 0.0
        %4277 = vmatprep.subr.mxu0 0.0
        %4278 = vmatpush1.msra.mxu0 0.0
        %4279 = vmatprep.subr.mxu0 0.0
        %4280 = vmatpush1.msra.mxu0 0.0
        %4281 = vmatprep.subr.mxu0 0.0
        %4282 = vmatpush1.msra.mxu0 %v4243
        %4283 = vmatprep.subr.mxu0 0.0
        %4284 = vmatpush1.msra.mxu0 %v4242
        %4285 = vmatprep.subr.mxu0 0.0
        %4286 = vmatpush1.msra.mxu0 %v4241
        %4287 = vmatprep.subr.mxu0 0.0
        %4288 = vmatpush1.msra.mxu0 %v4240
        %4289 = vmatprep.subr.mxu0 0.0
        %4290 = vmatpush2.msra.mxu0 0.0
        %4291 = vmatprep.subr.mxu0 0.0
        %4292 = vmatpush2.msra.mxu0 0.0
        %4293 = vmatprep.subr.mxu0 0.0
        %4294 = vmatpush2.msra.mxu0 0.0
        %4295 = vmatprep.subr.mxu0 0.0
        %4296 = vmatpush2.msra.mxu0 0.0
        %4297 = vmatprep.subr.mxu0 0.0
        %4298 = vmatpush2.msra.mxu0 0.0
        %4299 = vmatprep.subr.mxu0 0.0
        %4300 = vmatpush2.msra.mxu0 0.0
        %4301 = vmatprep.subr.mxu0 0.0
        %4302 = vmatpush2.msra.mxu0 0.0
        %4303 = vmatprep.subr.mxu0 0.0
        %4304 = vmatpush2.msra.mxu0 0.0
        %4305 = vmatprep.subr.mxu0 0.0
        %4306 = vmatpush2.msra.mxu0 0.0
        %4307 = vmatprep.subr.mxu0 0.0
        %4308 = vmatpush2.msra.mxu0 0.0
        %4309 = vmatprep.subr.mxu0 0.0
        %4310 = vmatpush2.msra.mxu0 0.0
        %4311 = vmatprep.subr.mxu0 0.0
        %4312 = vmatpush2.msra.mxu0 0.0
        %4313 = vmatprep.subr.mxu0 0.0
        %4314 = vmatpush2.msra.mxu0 0.0
        %4315 = vmatprep.subr.mxu0 0.0
        %4316 = vmatpush2.msra.mxu0 0.0
        %4317 = vmatprep.subr.mxu0 0.0
        %4318 = vmatpush2.msra.mxu0 0.0
        %4319 = vmatprep.subr.mxu0 0.0
        %4320 = vmatpush2.msra.mxu0 0.0
        %4321 = vmatprep.mubr.f32.mxu0 0.0
        %4322 = vmatmul.mubr.f32.gmra.mxu0 %v4252
        %v4323 = vpop.f32.mrf.mxu0
        %v4324 = vadd.f32 %v4249, %v4323
        %v4325 = vpop.f32.mrf.mxu0
        %4326 = vmatprep.mubr.f32.mxu0 0.0
        %4327 = vmatmul.mubr.f32.gmra.mxu0 %v4255
        %v4328 = vpop.f32.mrf.mxu0
        %v4329 = vadd.f32 %v4249, %v4328
        %v4330 = vpop.f32.mrf.mxu0
        %4331 = vdwg.mxu0
        %v4332 = vmax.f32 %v4324, 0.0
        %v4333 = vmax.f32 %v4329, 0.0
        %v4334 = vld [vmem:[%s925] sm:$0xff]
        %v4335 = vld [vmem:[%s925 + $0x8] sm:$0xff]
        %v4336 = vld [vmem:[%s925 + $0x10] sm:$0xff]
        %v4337 = vld [vmem:[%s925 + $0x18] sm:$0xff]
        %v4338 = vld [vmem:[%s925 + $0x20] sm:$0xff]
        %v4339 = vld [vmem:[%s925 + $0x28] sm:$0xff]
        %v4340 = vld [vmem:[%s925 + $0x30] sm:$0xff]
        %v4341 = vld [vmem:[%s925 + $0x38] sm:$0xff]
        %v4342 = vld [vmem:[%s925 + $0x40] sm:$0xff]
        %v4343 = vld [vmem:[%s925 + $0x48] sm:$0xff]
        %v4344 = vld [vmem:[%s925 + $0x50] sm:$0xff]
        %v4345 = vld [vmem:[%s925 + $0x58] sm:$0xff]
        %v4346 = vld [vmem:[%s925 + $0x60] sm:$0xff]
        %v4347 = vld [vmem:[%s925 + $0x68] sm:$0xff]
        %v4348 = vld [vmem:[%s925 + $0x70] sm:$0xff]
        %v4349 = vld [vmem:[%s925 + $0x78] sm:$0xff]
        %v4350 = vld [vmem:[%s928] sm:$0x1]
        %v4352 = vlaneseq
        %v4353 = vshrl.u32 %v4352, 7
        %v4354 = vsub.s32 0, %v4353
        %v4355 = vrot.slane %v4350, %v4354
        %4357 = vmatprep.subr.mxu0 0.0
        %4358 = vmatpush1.msra.mxu0 %v4349
        %4359 = vmatprep.subr.mxu0 0.0
        %4360 = vmatpush1.msra.mxu0 %v4348
        %4361 = vmatprep.subr.mxu0 0.0
        %4362 = vmatpush1.msra.mxu0 %v4347
        %4363 = vmatprep.subr.mxu0 0.0
        %4364 = vmatpush1.msra.mxu0 %v4346
        %4365 = vmatprep.subr.mxu0 0.0
        %4366 = vmatpush1.msra.mxu0 %v4345
        %4367 = vmatprep.subr.mxu0 0.0
        %4368 = vmatpush1.msra.mxu0 %v4344
        %4369 = vmatprep.subr.mxu0 0.0
        %4370 = vmatpush1.msra.mxu0 %v4343
        %4371 = vmatprep.subr.mxu0 0.0
        %4372 = vmatpush1.msra.mxu0 %v4342
        %4373 = vmatprep.subr.mxu0 0.0
        %4374 = vmatpush1.msra.mxu0 %v4341
        %4375 = vmatprep.subr.mxu0 0.0
        %4376 = vmatpush1.msra.mxu0 %v4340
        %4377 = vmatprep.subr.mxu0 0.0
        %4378 = vmatpush1.msra.mxu0 %v4339
        %4379 = vmatprep.subr.mxu0 0.0
        %4380 = vmatpush1.msra.mxu0 %v4338
        %4381 = vmatprep.subr.mxu0 0.0
        %4382 = vmatpush1.msra.mxu0 %v4337
        %4383 = vmatprep.subr.mxu0 0.0
        %4384 = vmatpush1.msra.mxu0 %v4336
        %4385 = vmatprep.subr.mxu0 0.0
        %4386 = vmatpush1.msra.mxu0 %v4335
        %4387 = vmatprep.subr.mxu0 0.0
        %4388 = vmatpush1.msra.mxu0 %v4334
        %4389 = vmatprep.subr.mxu0 0.0
        %4390 = vmatpush2.msra.mxu0 0.0
        %4391 = vmatprep.subr.mxu0 0.0
        %4392 = vmatpush2.msra.mxu0 0.0
        %4393 = vmatprep.subr.mxu0 0.0
        %4394 = vmatpush2.msra.mxu0 0.0
        %4395 = vmatprep.subr.mxu0 0.0
        %4396 = vmatpush2.msra.mxu0 0.0
        %4397 = vmatprep.subr.mxu0 0.0
        %4398 = vmatpush2.msra.mxu0 0.0
        %4399 = vmatprep.subr.mxu0 0.0
        %4400 = vmatpush2.msra.mxu0 0.0
        %4401 = vmatprep.subr.mxu0 0.0
        %4402 = vmatpush2.msra.mxu0 0.0
        %4403 = vmatprep.subr.mxu0 0.0
        %4404 = vmatpush2.msra.mxu0 0.0
        %4405 = vmatprep.subr.mxu0 0.0
        %4406 = vmatpush2.msra.mxu0 0.0
        %4407 = vmatprep.subr.mxu0 0.0
        %4408 = vmatpush2.msra.mxu0 0.0
        %4409 = vmatprep.subr.mxu0 0.0
        %4410 = vmatpush2.msra.mxu0 0.0
        %4411 = vmatprep.subr.mxu0 0.0
        %4412 = vmatpush2.msra.mxu0 0.0
        %4413 = vmatprep.subr.mxu0 0.0
        %4414 = vmatpush2.msra.mxu0 0.0
        %4415 = vmatprep.subr.mxu0 0.0
        %4416 = vmatpush2.msra.mxu0 0.0
        %4417 = vmatprep.subr.mxu0 0.0
        %4418 = vmatpush2.msra.mxu0 0.0
        %4419 = vmatprep.subr.mxu0 0.0
        %4420 = vmatpush2.msra.mxu0 0.0
        %4421 = vmatprep.mubr.f32.mxu0 0.0
        %4422 = vmatmul.mubr.f32.gmra.mxu0 %v4332
        %v4423 = vpop.f32.mrf.mxu0
        %v4424 = vadd.f32 %v4355, %v4423
        %v4425 = vpop.f32.mrf.mxu0
        %4426 = vmatprep.mubr.f32.mxu0 0.0
        %4427 = vmatmul.mubr.f32.gmra.mxu0 %v4333
        %v4428 = vpop.f32.mrf.mxu0
        %v4429 = vadd.f32 %v4355, %v4428
        %v4430 = vpop.f32.mrf.mxu0
        %4431 = vdwg.mxu0
        %v4432 = vadd.f32 %v4238, %v4424
        %v4433 = vadd.f32 %v4239, %v4429
        %v4434 = vld [vmem:[%s931] sm:$0x1]
        %v4435 = vld [vmem:[%s934] sm:$0x1]
        %v4436 = vsel %vm1234, %v4432, 0.0
        %4437 = vadd.xlane.f32.xlu0 %v4436
        %v4438 = vpop.xlane.xlu0 %4437
        %v4439 = vsel %vm1234, %v4433, 0.0
        %4440 = vadd.xlane.f32.xlu0 %v4439
        %v4441 = vpop.xlane.xlu0 %4440
        %v4442 = vmul.f32 %v4438, %v4203
        %v4443 = vmul.f32 %v4441, %v4203
        %v4444 = vsub.f32 %v4432, %v4442
        %v4445 = vsub.f32 %v4433, %v4443
        %v4446 = vmul.f32 %v4444, %v4444
        %v4447 = vmul.f32 %v4445, %v4445
        %v4448 = vsel %vm1234, %v4446, 0.0
        %4449 = vadd.xlane.f32.xlu0 %v4448
        %v4450 = vpop.xlane.xlu0 %4449
        %v4451 = vsel %vm1234, %v4447, 0.0
        %4452 = vadd.xlane.f32.xlu0 %v4451
        %v4453 = vpop.xlane.xlu0 %4452
        %v4454 = vmul.f32 %v4450, %v4203
        %v4455 = vmul.f32 %v4453, %v4203
        %v4456 = vadd.f32 %v4454, 1e-05
        %v4457 = vadd.f32 %v4455, 1e-05
        %v4458 = vrsqrt.pop %v4456
        %v4459 = vrsqrt.pop %v4457
        %v4460 = vmul.f32 %v4444, %v4458
        %v4461 = vmul.f32 %v4445, %v4459
        %v4463 = vlaneseq
        %v4464 = vshrl.u32 %v4463, 7
        %v4465 = vsub.s32 0, %v4464
        %v4466 = vrot.slane %v4434, %v4465
        %v4468 = vmul.f32 %v4460, %v4466
        %v4469 = vmul.f32 %v4461, %v4466
        %v4471 = vlaneseq
        %v4472 = vshrl.u32 %v4471, 7
        %v4473 = vsub.s32 0, %v4472
        %v4474 = vrot.slane %v4435, %v4473
        %v4476 = vadd.f32 %v4468, %v4474
        %v4477 = vadd.f32 %v4469, %v4474
        %4478 = vst.msk [vmem:[#allocation2] sm:$0xff] %vm1234, %v4476
        %4479 = vst.msk [vmem:[#allocation2 + $0x8] sm:$0xff] %vm1234, %v4477
        %p4480 = scmp.eq.s32.totalorder %s40, 1
        // Predicated region
        $region109: #{ecg_transformer_forward.1} parent=103 // pred_check
          %p4481 = pneg %p4480
        $region110: #{ecg_transformer_forward.1} parent=103 // pred_check_branch
          %4483 = sbr.rel (%p4481) target = $region112
        $region111: #{ecg_transformer_forward.1} parent=103 // pred_region
          %v4484 = vsel %vm1234, %v4476, 0.0
          %v4485 = vsel %vm1234, %v4477, 0.0
          %v4486 = vadd.f32 %v4484, %v4485
          %v4487 = vrot.slane %v4486, 4
          %v4488 = vadd.f32 %v4486, %v4487
          %v4489 = vrot.slane %v4488, 2
          %v4490 = vadd.f32 %v4488, %v4489
          %v4491 = vrot.slane %v4490, 1
          %v4492 = vadd.f32 %v4490, %v4491
          %v4493 = vrcp.pop 16.0
          %v4494 = vmul.f32 %v4492, %v4493
          %v4495 = vld [vmem:[%s19] sm:$0xff]
          %v4496 = vld [vmem:[%s19 + $0x8] sm:$0xff]
          %v4497 = vld [vmem:[%s19 + $0x10] sm:$0xff]
          %v4498 = vld [vmem:[%s19 + $0x18] sm:$0xff]
          %v4499 = vld [vmem:[%s20] sm:$0x1]
          %v4501 = vsel %vm1234, %v4494, 0
          %4503 = vmatprep.subr.mxu0 0.0
          %4504 = vmatpush1.msra.mxu0 0.0
          %4505 = vmatprep.subr.mxu0 0.0
          %4506 = vmatpush1.msra.mxu0 0.0
          %4507 = vmatprep.subr.mxu0 0.0
          %4508 = vmatpush1.msra.mxu0 0.0
          %4509 = vmatprep.subr.mxu0 0.0
          %4510 = vmatpush1.msra.mxu0 0.0
          %4511 = vmatprep.subr.mxu0 0.0
          %4512 = vmatpush1.msra.mxu0 0.0
          %4513 = vmatprep.subr.mxu0 0.0
          %4514 = vmatpush1.msra.mxu0 0.0
          %4515 = vmatprep.subr.mxu0 0.0
          %4516 = vmatpush1.msra.mxu0 0.0
          %4517 = vmatprep.subr.mxu0 0.0
          %4518 = vmatpush1.msra.mxu0 0.0
          %4519 = vmatprep.subr.mxu0 0.0
          %4520 = vmatpush1.msra.mxu0 0.0
          %4521 = vmatprep.subr.mxu0 0.0
          %4522 = vmatpush1.msra.mxu0 0.0
          %4523 = vmatprep.subr.mxu0 0.0
          %4524 = vmatpush1.msra.mxu0 0.0
          %4525 = vmatprep.subr.mxu0 0.0
          %4526 = vmatpush1.msra.mxu0 0.0
          %4527 = vmatprep.subr.mxu0 0.0
          %4528 = vmatpush1.msra.mxu0 %v4498
          %4529 = vmatprep.subr.mxu0 0.0
          %4530 = vmatpush1.msra.mxu0 %v4497
          %4531 = vmatprep.subr.mxu0 0.0
          %4532 = vmatpush1.msra.mxu0 %v4496
          %4533 = vmatprep.subr.mxu0 0.0
          %4534 = vmatpush1.msra.mxu0 %v4495
          %4535 = vmatprep.subr.mxu0 0.0
          %4536 = vmatpush2.msra.mxu0 0.0
          %4537 = vmatprep.subr.mxu0 0.0
          %4538 = vmatpush2.msra.mxu0 0.0
          %4539 = vmatprep.subr.mxu0 0.0
          %4540 = vmatpush2.msra.mxu0 0.0
          %4541 = vmatprep.subr.mxu0 0.0
          %4542 = vmatpush2.msra.mxu0 0.0
          %4543 = vmatprep.subr.mxu0 0.0
          %4544 = vmatpush2.msra.mxu0 0.0
          %4545 = vmatprep.subr.mxu0 0.0
          %4546 = vmatpush2.msra.mxu0 0.0
          %4547 = vmatprep.subr.mxu0 0.0
          %4548 = vmatpush2.msra.mxu0 0.0
          %4549 = vmatprep.subr.mxu0 0.0
          %4550 = vmatpush2.msra.mxu0 0.0
          %4551 = vmatprep.subr.mxu0 0.0
          %4552 = vmatpush2.msra.mxu0 0.0
          %4553 = vmatprep.subr.mxu0 0.0
          %4554 = vmatpush2.msra.mxu0 0.0
          %4555 = vmatprep.subr.mxu0 0.0
          %4556 = vmatpush2.msra.mxu0 0.0
          %4557 = vmatprep.subr.mxu0 0.0
          %4558 = vmatpush2.msra.mxu0 0.0
          %4559 = vmatprep.subr.mxu0 0.0
          %4560 = vmatpush2.msra.mxu0 0.0
          %4561 = vmatprep.subr.mxu0 0.0
          %4562 = vmatpush2.msra.mxu0 0.0
          %4563 = vmatprep.subr.mxu0 0.0
          %4564 = vmatpush2.msra.mxu0 0.0
          %4565 = vmatprep.subr.mxu0 0.0
          %4566 = vmatpush2.msra.mxu0 0.0
          %4567 = vmatprep.mubr.f32.mxu0 0.0
          %4568 = vmatmul.mubr.f32.gmra.mxu0 %v4501
          %v4569 = vpop.f32.mrf.mxu0
          %v4570 = vadd.f32 %v4499, %v4569
          %v4571 = vpop.f32.mrf.mxu0
          %4572 = vdwg.mxu0
          %4573 = vst [vmem:[%s866] sm:$0x1] %v4570
        $region112: #{ecg_transformer_forward.1} parent=103 // pred_fallthru
          _
        %s4574 = sand.u32 %s581, 1
        %s4575 = scalar_lea.sflag [#allocation4], %s4574
        %s4576 = sand.u32 %s581, 1
        %s4577 = scalar_lea.vmem [#allocation3], %s4576
        // Predicated region
        $region113: #{ecg_transformer_forward.1} parent=103 // pred_check
          %p4578 = pneg %p591
        $region114: #{ecg_transformer_forward.1} parent=103 // pred_check_branch
          %4580 = sbr.rel (%p4578) target = $region116
        $region115: #{ecg_transformer_forward.1} parent=103 // pred_region
          %s4582 = ssub.s32 16, 16
          %4583 = vsyncadd %s4575, %s4582
          %s4584 = smul.addr %s39, 16
          %s4585 = scalar_lea.hbm %s21, %s4584
          %s4587 = sshll.u32 %s4577, 4
          %s4588 = int_to_ptr.vmem [resolvable:$true] %s4587
          %4590 = dma.vmem_to_hbm [thread:$0]  %s4588, 16, %s4585, %s4575
        $region116: #{ecg_transformer_forward.1} parent=103 // pred_fallthru
          _
      $region104: #{ecg_transformer_forward.1} parent=5 // pred_fallthru
        _
      %p4591 = scmp.le.s32.totalorder 2, %s30
      // Predicated region
      $region117: #{ecg_transformer_forward.1} parent=5 // pred_check
        %p4592 = pneg %p4591
      $region118: #{ecg_transformer_forward.1} parent=5 // pred_check_branch
        %4594 = sbr.rel (%p4592) target = $region120
      $region119: #{ecg_transformer_forward.1} parent=5 // pred_region
        %s4595 = ssub.s32 %s30, 2
        // Predicated region
        $region121: #{ecg_transformer_forward.1} parent=119 // pred_check
          %p4596 = pneg %p597
        $region122: #{ecg_transformer_forward.1} parent=119 // pred_check_branch
          %4598 = sbr.rel (%p4596) target = $region124
        $region123: #{ecg_transformer_forward.1} parent=119 // pred_region
          %s4599 = sand.u32 %s582, 1
          %s4600 = scalar_lea.sflag [#allocation4], %s4599
          %s4601 = sand.u32 %s582, 1
          %s4602 = scalar_lea.vmem [#allocation3], %s4601
          %4603 = dma.done %s4600, 16
        $region124: #{ecg_transformer_forward.1} parent=119 // pred_fallthru
          _
      $region120: #{ecg_transformer_forward.1} parent=5 // pred_fallthru
        _
    $region6: #{ecg_transformer_forward.1} parent=1 // loop_footer
      %s34 = sadd.s32 1, %s30
    $region7: #{ecg_transformer_forward.1} parent=1 // loop_footer_branch
      %29 = sbr.rel target = $region3
    $region8: #{ecg_transformer_forward.1} parent=1 // loop_exit
      _
    %4604 = vsyncpa [#allocation4], 1
    %s4605 = scalar_lea.sflag [#allocation4], 1
    %4606 = vsyncpa %s4605, 1

</llo_original>
